<compile_context>
chip_gen: v7x
topology: tpu7x:2x2x1
jax: 0.10.0
libtpu: 0.0.40
codegen_flags: <defaults>
</compile_context>

<pallas_src>
import functools

import jax
import jax.numpy as jnp
from jax.experimental import pallas as pl
from jax.experimental.pallas import tpu as pltpu


# ------------------------------- helpers ----------------------------------- #

def _round_up(x, m):
    return ((x + m - 1) // m) * m


@functools.lru_cache(maxsize=None)
def _vmem_budget_bytes():
    """Per-chip VMEM budget: ~75% of physical, capped at 96 MiB.

    v7x (64 MiB physical) -> 48 MiB; v5e / v6e (128 MiB) -> 96 MiB.
    """
    cap = 64 * 1024 * 1024
    try:
        cap = int(getattr(pltpu.get_tpu_info(), "vmem_capacity_bytes", cap)) or cap
    except Exception:
        pass
    return min((cap * 3) // 4, 96 * 1024 * 1024)


def _pick_tile(n, target, mult):
    """Largest tile <= target that divides n and is a multiple of `mult`;
    falls back to the full dimension (full-dim exception of the (8,128) rule)."""
    if n <= target:
        return n
    t = (min(target, n) // mult) * mult
    while t >= mult:
        if n % t == 0:
            return t
        t -= mult
    return n


def _choose_tm(n, target=512):
    # >= 2 row tiles so the "parallel" row axis can split across v7x's 2 TCs;
    # multiple of 16 (bf16 packs 16 sublanes per vreg).
    cap = max(16, min(target, n // 2))
    return _pick_tile(n, cap, 16)


def _choose_tk(n, tm, resident_bytes, budget):
    # Prefer the whole reduction in one grid step (no per-step overhead, no acc
    # re-read) when the double-buffered A row slab fits the VMEM budget.
    if 2 * tm * n * 2 + resident_bytes <= budget:
        return n
    tk = _pick_tile(n, 2048, 256)        # multiple of 256: MXU contraction width
    while tk > 256 and 2 * tm * tk * 2 + resident_bytes > budget:
        smaller = _pick_tile(n, max(256, tk - 256), 256)
        if smaller >= tk:
            break   # TODO(synk): pad N to a tile multiple for awkward N instead
        tk = smaller
    return tk


# ------------------------------- kernels ----------------------------------- #

def _gcn_fused_kernel(a_ref, x_ref, w1_ref, s1_ref, t1_ref,
                      w2_ref, s2_ref, t2_ref, w3_ref, b3_ref, o_ref,
                      *, num_valid, log_softmax):
    """Whole GCN forward in one kernel; A is VMEM-resident and reused 3x."""
    a = a_ref[...]
    # layer 1: relu(bn1((A @ X) @ W1))      (linear bias folded into t1)
    z = jnp.dot(a, x_ref[...], preferred_element_type=jnp.float32)
    h = jnp.dot(z.astype(jnp.bfloat16), w1_ref[...],
                preferred_element_type=jnp.float32)
    h = jnp.maximum(h * s1_ref[...] + t1_ref[...], 0.0)
    # layer 2: relu(bn2((A @ Z1) @ W2))
    z = jnp.dot(a, h.astype(jnp.bfloat16), preferred_element_type=jnp.float32)
    h = jnp.dot(z.astype(jnp.bfloat16), w2_ref[...],
                preferred_element_type=jnp.float32)
    h = jnp.maximum(h * s2_ref[...] + t2_ref[...], 0.0)
    # output: A @ (Z2 @ W3) + b3   (re-associated so the N^2 step runs at C_pad)
    y = jnp.dot(h.astype(jnp.bfloat16), w3_ref[...],
                preferred_element_type=jnp.float32)
    h = jnp.dot(a, y.astype(jnp.bfloat16),
                preferred_element_type=jnp.float32) + b3_ref[...]
    if log_softmax:
        col = jax.lax.broadcasted_iota(jnp.int32, h.shape, 1)
        valid = col < num_valid
        h = jnp.where(valid, h, -1e30)
        m = jnp.max(h, axis=-1, keepdims=True)
        s = h - m
        e = jnp.where(valid, jnp.exp(s), 0.0)
        h = s - jnp.log(jnp.sum(e, axis=-1, keepdims=True))
    o_ref[...] = h.astype(o_ref.dtype)


def _gcn_hidden_kernel(a_ref, x_ref, w_ref, scale_ref, shift_ref, *rest,
                       tk, project):
    """out = relu(bn((A @ X) @ W)) [optionally @ Wp fused]   (bias in shift).

    Grid: (row tiles i, reduction tiles k).  A is streamed tile-by-tile; X, W,
    scale, shift (and Wp) are VMEM-resident (constant index_maps).  acc_ref
    accumulates the (tm, Din) tile of A @ X in f32 across k.
    """
    if project:
        wp_ref, o_ref, acc_ref = rest
    else:
        o_ref, acc_ref = rest
        wp_ref = None

    k = pl.program_id(1)

    @pl.when(k == 0)
    def _init():
        acc_ref[...] = jnp.zeros_like(acc_ref)

    start = pl.multiple_of(k * tk, tk)
    acc_ref[...] += jnp.dot(a_ref[...], x_ref[pl.ds(start, tk), :],
                            preferred_element_type=jnp.float32)

    @pl.when(k == pl.num_programs(1) - 1)
    def _finalize():
        h = jnp.dot(acc_ref[...].astype(jnp.bfloat16), w_ref[...],
                    preferred_element_type=jnp.float32)
        h = jnp.maximum(h * scale_ref[...] + shift_ref[...], 0.0)
        if project:
            # Fused next-layer projection (Z2 @ W3_pad).
            h = jnp.dot(h.astype(jnp.bfloat16), wp_ref[...],
                        preferred_element_type=jnp.float32)
        o_ref[...] = h.astype(o_ref.dtype)


def _gcn_output_kernel(a_ref, y_ref, b_ref, o_ref, acc_ref, *,
                       tk, num_valid, log_softmax):
    """out = log_softmax(A @ Y + b) over the first num_valid columns.

    Y = Z2 @ W3_pad was fused into the previous layer, so the accumulator is
    only (tm, C_pad) wide.  Pad columns are masked; the caller slices them off.
    """
    k = pl.program_id(1)

    @pl.when(k == 0)
    def _init():
        acc_ref[...] = jnp.zeros_like(acc_ref)

    start = pl.multiple_of(k * tk, tk)
    acc_ref[...] += jnp.dot(a_ref[...], y_ref[pl.ds(start, tk), :],
                            preferred_element_type=jnp.float32)

    @pl.when(k == pl.num_programs(1) - 1)
    def _finalize():
        h = acc_ref[...] + b_ref[...]
        if log_softmax:
            col = jax.lax.broadcasted_iota(jnp.int32, h.shape, 1)
            valid = col < num_valid
            h = jnp.where(valid, h, -1e30)
            m = jnp.max(h, axis=-1, keepdims=True)
            s = h - m
            e = jnp.where(valid, jnp.exp(s), 0.0)
            h = s - jnp.log(jnp.sum(e, axis=-1, keepdims=True))
        o_ref[...] = h.astype(o_ref.dtype)


# ------------------------------- wrappers ----------------------------------- #

def gcn_fused(a16, x16, params, *, num_valid, log_softmax):
    n = a16.shape[0]
    din = x16.shape[1]
    hdim = params["w1_t"].shape[1]
    c_pad = params["w3_t_pad"].shape[1]

    def full(shape):
        return pl.BlockSpec(shape, lambda i: (0,) * len(shape))

    flops = (2 * n * n * (din + hdim + c_pad)
             + 2 * n * (din * hdim + hdim * hdim + hdim * c_pad))
    bytes_accessed = ((n * n + n * din
                       + din * hdim + hdim * hdim + hdim * c_pad) * 2
                      + (4 * hdim + c_pad) * 4 + n * c_pad * 4)

    return pl.pallas_call(
        functools.partial(_gcn_fused_kernel, num_valid=num_valid,
                          log_softmax=log_softmax),
        out_shape=jax.ShapeDtypeStruct((n, c_pad), jnp.float32),
        grid=(1,),
        in_specs=[full((n, n)), full((n, din)),
                  full((din, hdim)), full((1, hdim)), full((1, hdim)),
                  full((hdim, hdim)), full((1, hdim)), full((1, hdim)),
                  full((hdim, c_pad)), full((1, c_pad))],
        out_specs=full((n, c_pad)),
        compiler_params=pltpu.CompilerParams(
            dimension_semantics=("arbitrary",),
            vmem_limit_bytes=_vmem_budget_bytes()),
        cost_estimate=pl.CostEstimate(flops=flops, transcendentals=n * c_pad,
                                      bytes_accessed=bytes_accessed),
    )(a16, x16, params["w1_t"], params["bn1_scale"], params["bn1_shift"],
      params["w2_t"], params["bn2_scale"], params["bn2_shift"],
      params["w3_t_pad"], params["b3_pad"])


def gcn_hidden_layer(a16, x16, w_t, scale, shift, wp=None, *, tiles=None):
    """relu(bn((A @ X) @ W)) [optionally (@ Wp fused)], bf16 output."""
    n = a16.shape[0]
    din = x16.shape[1]
    dout = w_t.shape[1]
    out_dim = wp.shape[1] if wp is not None else dout
    budget = _vmem_budget_bytes()

    if tiles is not None:
        tm = _pick_tile(n, tiles[0], 16)
        tk = _pick_tile(n, tiles[1], 128)
    else:
        tm = _choose_tm(n)
        resident = (2 * n * din * 2
                    + 2 * (din * dout
                           + (dout * out_dim if wp is not None else 0)) * 2
                    + tm * din * 4 + 2 * tm * out_dim * 2)
        tk = _choose_tk(n, tm, resident, budget)
    grid = (n // tm, n // tk)

    in_specs = [
        pl.BlockSpec((tm, tk), lambda i, k: (i, k)),      # A tile (streamed)
        pl.BlockSpec((n, din), lambda i, k: (0, 0)),      # X fully resident
        pl.BlockSpec((din, dout), lambda i, k: (0, 0)),   # W resident
        pl.BlockSpec((1, dout), lambda i, k: (0, 0)),     # bn scale
        pl.BlockSpec((1, dout), lambda i, k: (0, 0)),     # bn shift (+ bias)
    ]
    args = [a16, x16, w_t, scale, shift]
    if wp is not None:
        in_specs.append(pl.BlockSpec((dout, out_dim), lambda i, k: (0, 0)))
        args.append(wp)

    flops = 2 * n * n * din + 2 * n * din * dout
    if wp is not None:
        flops += 2 * n * dout * out_dim
    bytes_accessed = ((a16.size + x16.size + w_t.size) * 2
                      + (scale.size + shift.size) * 4
                      + (wp.size * 2 if wp is not None else 0)
                      + n * out_dim * 2)

    return pl.pallas_call(
        functools.partial(_gcn_hidden_kernel, tk=tk, project=wp is not None),
        out_shape=jax.ShapeDtypeStruct((n, out_dim), jnp.bfloat16),
        grid=grid,
        in_specs=in_specs,
        out_specs=pl.BlockSpec((tm, out_dim), lambda i, k: (i, 0)),
        scratch_shapes=[pltpu.VMEM((tm, din), jnp.float32)],
        compiler_params=pltpu.CompilerParams(
            dimension_semantics=("parallel", "arbitrary"),
            vmem_limit_bytes=budget),
        cost_estimate=pl.CostEstimate(flops=flops, transcendentals=0,
                                      bytes_accessed=bytes_accessed),
    )(*args)


def gcn_output_layer(a16, y16, b_pad, *, num_valid, log_softmax, tiles=None):
    """log_softmax(A @ Y + b) over the first num_valid (padded-to-128) columns."""
    n = a16.shape[0]
    c_pad = y16.shape[1]
    budget = _vmem_budget_bytes()

    if tiles is not None:
        tm = _pick_tile(n, tiles[0], 16)
        tk = _pick_tile(n, tiles[1], 128)
    else:
        tm = _choose_tm(n)
        resident = 2 * n * c_pad * 2 + tm * c_pad * 4 + 2 * tm * c_pad * 4
        tk = _choose_tk(n, tm, resident, budget)
    grid = (n // tm, n // tk)

    flops = 2 * n * n * c_pad
    bytes_accessed = ((a16.size + y16.size) * 2 + b_pad.size * 4
                      + n * c_pad * 4)

    return pl.pallas_call(
        functools.partial(_gcn_output_kernel, tk=tk, num_valid=num_valid,
                          log_softmax=log_softmax),
        out_shape=jax.ShapeDtypeStruct((n, c_pad), jnp.float32),
        grid=grid,
        in_specs=[
            pl.BlockSpec((tm, tk), lambda i, k: (i, k)),    # A tile (streamed)
            pl.BlockSpec((n, c_pad), lambda i, k: (0, 0)),  # Y fully resident
            pl.BlockSpec((1, c_pad), lambda i, k: (0, 0)),  # b resident
        ],
        out_specs=pl.BlockSpec((tm, c_pad), lambda i, k: (i, 0)),
        scratch_shapes=[pltpu.VMEM((tm, c_pad), jnp.float32)],
        compiler_params=pltpu.CompilerParams(
            dimension_semantics=("parallel", "arbitrary"),
            vmem_limit_bytes=budget),
        cost_estimate=pl.CostEstimate(flops=flops, transcendentals=n * c_pad,
                                      bytes_accessed=bytes_accessed),
    )(a16, y16, b_pad)


def _fused_fits(n, din, hdim, c_pad, budget):
    a = n * n * 2
    resident = n * din * 2 + (din * hdim + hdim * hdim + hdim * c_pad) * 2
    temporaries = 6 * n * max(din, hdim, c_pad) * 4
    out = n * c_pad * 4
    return a + resident + temporaries + out <= budget // 2


@functools.partial(jax.jit, static_argnames=("num_classes", "return_embeds",
                                             "force_tiled", "tile_hint"))
def gcn_classifier_forward(x16, a16, params, *, num_classes,
                           return_embeds=False, force_tiled=False,
                           tile_hint=None):
    n = a16.shape[0]
    din = x16.shape[1]
    hdim = params["w1_t"].shape[1]
    c_pad = params["w3_t_pad"].shape[1]
    log_softmax = not return_embeds

    if not force_tiled and _fused_fits(n, din, hdim, c_pad,
                                       _vmem_budget_bytes()):
        # A is DMA'd into VMEM once and reused by all three propagation layers.
        z3 = gcn_fused(a16, x16, params, num_valid=num_classes,
                       log_softmax=log_softmax)
    else:
        # Tiled per-layer fallback (A streamed; row axis parallel across cores).
        z1 = gcn_hidden_layer(a16, x16, params["w1_t"],
                              params["bn1_scale"], params["bn1_shift"],
                              tiles=tile_hint)
        y2 = gcn_hidden_layer(a16, z1, params["w2_t"],
                              params["bn2_scale"], params["bn2_shift"],
                              wp=params["w3_t_pad"], tiles=tile_hint)
        z3 = gcn_output_layer(a16, y2, params["b3_pad"],
                              num_valid=num_classes, log_softmax=log_softmax,
                              tiles=tile_hint)
    return z3[:, :num_classes]


# ------------------------------ param init ---------------------------------- #

def init_params(key, input_dim, hidden_dim, output_dim, eps=1e-5):
    d_in_pad = _round_up(input_dim, 128)
    c_pad = _round_up(output_dim, 128)
    ks = jax.random.split(key, 14)

    def lin(kw, kb, din, dout):
        w_t = jax.random.normal(kw, (din, dout), jnp.float32) / jnp.sqrt(din)
        b = 0.1 * jax.random.normal(kb, (1, dout), jnp.float32)
        return w_t, b

    w1_t, b1 = lin(ks[0], ks[1], input_dim, hidden_dim)
    w2_t, b2 = lin(ks[2], ks[3], hidden_dim, hidden_dim)
    w3_t, b3 = lin(ks[4], ks[5], hidden_dim, output_dim)

    def bn(kg, kb2, km, kv, dim):
        gamma = 1.0 + 0.1 * jax.random.normal(kg, (1, dim), jnp.float32)
        beta = 0.1 * jax.random.normal(kb2, (1, dim), jnp.float32)
        running_mean = 0.1 * jax.random.normal(km, (1, dim), jnp.float32)
        running_var = 1.0 + 0.1 * jax.random.uniform(kv, (1, dim), jnp.float32)
        scale = gamma / jnp.sqrt(running_var + eps)
        shift = beta - running_mean * scale
        return scale, shift

    s1, t1 = bn(ks[6], ks[7], ks[8], ks[9], hidden_dim)
    s2, t2 = bn(ks[10], ks[11], ks[12], ks[13], hidden_dim)
    # Fold the Linear bias into the BN shift: (h+b)*s + t == h*s + (b*s + t).
    t1 = b1 * s1 + t1
    t2 = b2 * s2 + t2

    # Zero-pad the input feature dim and the class dim to 128-lane multiples.
    w1_t_pad = jnp.zeros((d_in_pad, hidden_dim),
                         jnp.float32).at[:input_dim, :].set(w1_t)
    w3_t_pad = jnp.zeros((hidden_dim, c_pad),
                         jnp.float32).at[:, :output_dim].set(w3_t)
    b3_pad = jnp.zeros((1, c_pad), jnp.float32).at[:, :output_dim].set(b3)

    return dict(
        w1_t=w1_t_pad.astype(jnp.bfloat16),
        w2_t=w2_t.astype(jnp.bfloat16),
        w3_t_pad=w3_t_pad.astype(jnp.bfloat16),
        b3_pad=b3_pad,
        bn1_scale=s1, bn1_shift=t1,
        bn2_scale=s2, bn2_shift=t2,
    )


def prepare_inputs(x, transition_matrix, d_in_pad):
    """One-time hoisted preprocessing: bf16 A, zero-padded bf16 X."""
    a16 = transition_matrix.astype(jnp.bfloat16)
    n, din = x.shape
    x16 = jnp.zeros((n, d_in_pad), jnp.bfloat16).at[:, :din].set(
        x.astype(jnp.bfloat16))
    return a16, x16


# ------------------------------- reference ---------------------------------- #

def reference_forward(x16, a16, params, num_classes, return_embeds=False):
    """Pure-JAX reference mirroring the kernel's bf16 cast points."""
    def hidden(xin, w_t, scale, shift):
        z = jnp.dot(a16, xin, preferred_element_type=jnp.float32)
        h = jnp.dot(z.astype(jnp.bfloat16), w_t,
                    preferred_element_type=jnp.float32)
        h = jnp.maximum(h * scale + shift, 0.0)
        return h.astype(jnp.bfloat16)

    z1 = hidden(x16, params["w1_t"], params["bn1_scale"], params["bn1_shift"])
    z2 = hidden(z1, params["w2_t"], params["bn2_scale"], params["bn2_shift"])
    y2 = jnp.dot(z2, params["w3_t_pad"],
                 preferred_element_type=jnp.float32).astype(jnp.bfloat16)
    h3 = jnp.dot(a16, y2, preferred_element_type=jnp.float32) + params["b3_pad"]
    h3 = h3[:, :num_classes]
    if return_embeds:
        return h3
    return jax.nn.log_softmax(h3, axis=-1)


# --------------------------------- main -------------------------------------- #

if __name__ == "__main__":
    # Small but tiling-relevant shapes: the auto path fuses everything with A
    # resident in VMEM; the forced tiled path with tile_hint=(128, 256) gives a
    # (4, 2) grid per layer and exercises the multi-step reduction.
    N, INPUT_DIM, HIDDEN_DIM, OUTPUT_DIM = 512, 64, 128, 10

    key = jax.random.PRNGKey(0)
    k_x, k_a, k_p = jax.random.split(key, 3)

    x = jax.random.normal(k_x, (N, INPUT_DIM), jnp.float32)

    # Row-normalized "transition matrix" (dense stand-in for the sparse matrix).
    a_raw = jax.random.uniform(k_a, (N, N), jnp.float32)
    a_mask = (a_raw > 0.5).astype(jnp.float32) + jnp.eye(N, dtype=jnp.float32)
    transition_matrix = a_mask / jnp.sum(a_mask, axis=1, keepdims=True)

    params = init_params(k_p, INPUT_DIM, HIDDEN_DIM, OUTPUT_DIM)
    # Hoisted one-time casts / padding (not repeated per forward call).
    a16, x16 = prepare_inputs(x, transition_matrix, params["w1_t"].shape[0])

    # 1) default (fused, resident-A) path: log-softmax over classes.
    out = gcn_classifier_forward(x16, a16, params, num_classes=OUTPUT_DIM)
    out = jax.block_until_ready(out)
    ref = reference_forward(x16, a16, params, OUTPUT_DIM)
    assert out.shape == (N, OUTPUT_DIM)
    assert jnp.allclose(out, ref, atol=2e-2, rtol=2e-2), float(
        jnp.max(jnp.abs(out - ref)))

    # 2) return_embeds=True (pre-softmax logits), matching the PyTorch module.
    emb = gcn_classifier_forward(x16, a16, params, num_classes=OUTPUT_DIM,
                                 return_embeds=True)
    emb = jax.block_until_ready(emb)
    ref_emb = reference_forward(x16, a16, params, OUTPUT_DIM,
                                return_embeds=True)
    assert emb.shape == (N, OUTPUT_DIM)
    assert jnp.allclose(emb, ref_emb, atol=2e-2, rtol=2e-2), float(
        jnp.max(jnp.abs(emb - ref_emb)))

    # 3) tiled fallback path (used for large N), forced with small tiles so the
    #    multi-step reduction / accumulator logic is exercised here as well.
    out_t = gcn_classifier_forward(x16, a16, params, num_classes=OUTPUT_DIM,
                                   force_tiled=True, tile_hint=(128, 256))
    out_t = jax.block_until_ready(out_t)
    assert out_t.shape == (N, OUTPUT_DIM)
    assert jnp.allclose(out_t, ref, atol=2e-2, rtol=2e-2), float(
        jnp.max(jnp.abs(out_t - ref)))

    print("KERNEL_OK")
</pallas_src>

<mosaic_0001>
module attributes {stable_mosaic.version = 11 : i64} {
  func.func @_gcn_fused_kernel(%arg0: i32, %arg1: memref<512x512xbf16, #tpu.memory_space<vmem>>, %arg2: memref<512x128xbf16, #tpu.memory_space<vmem>>, %arg3: memref<128x128xbf16, #tpu.memory_space<vmem>>, %arg4: memref<1x128xf32, #tpu.memory_space<vmem>>, %arg5: memref<1x128xf32, #tpu.memory_space<vmem>>, %arg6: memref<128x128xbf16, #tpu.memory_space<vmem>>, %arg7: memref<1x128xf32, #tpu.memory_space<vmem>>, %arg8: memref<1x128xf32, #tpu.memory_space<vmem>>, %arg9: memref<128x128xbf16, #tpu.memory_space<vmem>>, %arg10: memref<1x128xf32, #tpu.memory_space<vmem>>, %arg11: memref<512x128xf32, #tpu.memory_space<vmem>>) attributes {dimension_semantics = [#tpu.dimension_semantics<arbitrary>], iteration_bounds = array<i64: 1>, scalar_prefetch = 0 : i64, scratch_operands = 0 : i64, tpu.core_type = #tpu.core_type<tc>, window_params = [{pipeline_mode = #tpu.pipeline_mode<synchronous>, transform_indices = @transform_0, window_bounds = array<i64: 512, 512>}, {pipeline_mode = #tpu.pipeline_mode<synchronous>, transform_indices = @transform_1, window_bounds = array<i64: 512, 128>}, {pipeline_mode = #tpu.pipeline_mode<synchronous>, transform_indices = @transform_2, window_bounds = array<i64: 128, 128>}, {pipeline_mode = #tpu.pipeline_mode<synchronous>, transform_indices = @transform_3, window_bounds = array<i64: 1, 128>}, {pipeline_mode = #tpu.pipeline_mode<synchronous>, transform_indices = @transform_4, window_bounds = array<i64: 1, 128>}, {pipeline_mode = #tpu.pipeline_mode<synchronous>, transform_indices = @transform_5, window_bounds = array<i64: 128, 128>}, {pipeline_mode = #tpu.pipeline_mode<synchronous>, transform_indices = @transform_6, window_bounds = array<i64: 1, 128>}, {pipeline_mode = #tpu.pipeline_mode<synchronous>, transform_indices = @transform_7, window_bounds = array<i64: 1, 128>}, {pipeline_mode = #tpu.pipeline_mode<synchronous>, transform_indices = @transform_8, window_bounds = array<i64: 128, 128>}, {pipeline_mode = #tpu.pipeline_mode<synchronous>, transform_indices = @transform_9, window_bounds = array<i64: 1, 128>}, {pipeline_mode = #tpu.pipeline_mode<synchronous>, transform_indices = @transform_10, window_bounds = array<i64: 512, 128>}]} {
    %c0 = arith.constant 0 : index
    %c0_0 = arith.constant 0 : index
    %0 = vector.load %arg1[%c0, %c0_0] : memref<512x512xbf16, #tpu.memory_space<vmem>>, vector<512x512xbf16>
    %c0_1 = arith.constant 0 : index
    %c0_2 = arith.constant 0 : index
    %1 = vector.load %arg2[%c0_1, %c0_2] : memref<512x128xbf16, #tpu.memory_space<vmem>>, vector<512x128xbf16>
    %cst = arith.constant dense<0.000000e+00> : vector<512x128xf32>
    %2 = tpu.matmul %0, %1, %cst {dimension_numbers = #tpu.dot_dimension_numbers<[1], [0], [0], [1], [0, 0, 1, 1], [], []>} : vector<512x512xbf16>, vector<512x128xbf16>, vector<512x128xf32> -> vector<512x128xf32>
    %3 = arith.truncf %2 : vector<512x128xf32> to vector<512x128xbf16>
    %c0_3 = arith.constant 0 : index
    %c0_4 = arith.constant 0 : index
    %4 = vector.load %arg3[%c0_3, %c0_4] : memref<128x128xbf16, #tpu.memory_space<vmem>>, vector<128x128xbf16>
    %cst_5 = arith.constant dense<0.000000e+00> : vector<512x128xf32>
    %5 = tpu.matmul %3, %4, %cst_5 {dimension_numbers = #tpu.dot_dimension_numbers<[1], [0], [0], [1], [0, 0, 1, 1], [], []>} : vector<512x128xbf16>, vector<128x128xbf16>, vector<512x128xf32> -> vector<512x128xf32>
    %c0_6 = arith.constant 0 : index
    %c0_7 = arith.constant 0 : index
    %6 = vector.load %arg4[%c0_6, %c0_7] : memref<1x128xf32, #tpu.memory_space<vmem>>, vector<1x128xf32>
    %7 = vector.broadcast %6 : vector<1x128xf32> to vector<512x128xf32>
    %8 = arith.mulf %5, %7 : vector<512x128xf32>
    %c0_8 = arith.constant 0 : index
    %c0_9 = arith.constant 0 : index
    %9 = vector.load %arg5[%c0_8, %c0_9] : memref<1x128xf32, #tpu.memory_space<vmem>>, vector<1x128xf32>
    %10 = vector.broadcast %9 : vector<1x128xf32> to vector<512x128xf32>
    %11 = arith.addf %8, %10 : vector<512x128xf32>
    %cst_10 = arith.constant 0.000000e+00 : f32
    %12 = vector.broadcast %cst_10 : f32 to vector<512x128xf32>
    %13 = arith.maximumf %11, %12 : vector<512x128xf32>
    %14 = arith.truncf %13 : vector<512x128xf32> to vector<512x128xbf16>
    %cst_11 = arith.constant dense<0.000000e+00> : vector<512x128xf32>
    %15 = tpu.matmul %0, %14, %cst_11 {dimension_numbers = #tpu.dot_dimension_numbers<[1], [0], [0], [1], [0, 0, 1, 1], [], []>} : vector<512x512xbf16>, vector<512x128xbf16>, vector<512x128xf32> -> vector<512x128xf32>
    %16 = arith.truncf %15 : vector<512x128xf32> to vector<512x128xbf16>
    %c0_12 = arith.constant 0 : index
    %c0_13 = arith.constant 0 : index
    %17 = vector.load %arg6[%c0_12, %c0_13] : memref<128x128xbf16, #tpu.memory_space<vmem>>, vector<128x128xbf16>
    %cst_14 = arith.constant dense<0.000000e+00> : vector<512x128xf32>
    %18 = tpu.matmul %16, %17, %cst_14 {dimension_numbers = #tpu.dot_dimension_numbers<[1], [0], [0], [1], [0, 0, 1, 1], [], []>} : vector<512x128xbf16>, vector<128x128xbf16>, vector<512x128xf32> -> vector<512x128xf32>
    %c0_15 = arith.constant 0 : index
    %c0_16 = arith.constant 0 : index
    %19 = vector.load %arg7[%c0_15, %c0_16] : memref<1x128xf32, #tpu.memory_space<vmem>>, vector<1x128xf32>
    %20 = vector.broadcast %19 : vector<1x128xf32> to vector<512x128xf32>
    %21 = arith.mulf %18, %20 : vector<512x128xf32>
    %c0_17 = arith.constant 0 : index
    %c0_18 = arith.constant 0 : index
    %22 = vector.load %arg8[%c0_17, %c0_18] : memref<1x128xf32, #tpu.memory_space<vmem>>, vector<1x128xf32>
    %23 = vector.broadcast %22 : vector<1x128xf32> to vector<512x128xf32>
    %24 = arith.addf %21, %23 : vector<512x128xf32>
    %cst_19 = arith.constant 0.000000e+00 : f32
    %25 = vector.broadcast %cst_19 : f32 to vector<512x128xf32>
    %26 = arith.maximumf %24, %25 : vector<512x128xf32>
    %27 = arith.truncf %26 : vector<512x128xf32> to vector<512x128xbf16>
    %c0_20 = arith.constant 0 : index
    %c0_21 = arith.constant 0 : index
    %28 = vector.load %arg9[%c0_20, %c0_21] : memref<128x128xbf16, #tpu.memory_space<vmem>>, vector<128x128xbf16>
    %cst_22 = arith.constant dense<0.000000e+00> : vector<512x128xf32>
    %29 = tpu.matmul %27, %28, %cst_22 {dimension_numbers = #tpu.dot_dimension_numbers<[1], [0], [0], [1], [0, 0, 1, 1], [], []>} : vector<512x128xbf16>, vector<128x128xbf16>, vector<512x128xf32> -> vector<512x128xf32>
    %30 = arith.truncf %29 : vector<512x128xf32> to vector<512x128xbf16>
    %cst_23 = arith.constant dense<0.000000e+00> : vector<512x128xf32>
    %31 = tpu.matmul %0, %30, %cst_23 {dimension_numbers = #tpu.dot_dimension_numbers<[1], [0], [0], [1], [0, 0, 1, 1], [], []>} : vector<512x512xbf16>, vector<512x128xbf16>, vector<512x128xf32> -> vector<512x128xf32>
    %c0_24 = arith.constant 0 : index
    %c0_25 = arith.constant 0 : index
    %32 = vector.load %arg10[%c0_24, %c0_25] : memref<1x128xf32, #tpu.memory_space<vmem>>, vector<1x128xf32>
    %33 = vector.broadcast %32 : vector<1x128xf32> to vector<512x128xf32>
    %34 = arith.addf %31, %33 : vector<512x128xf32>
    %35 = tpu.iota {dimensions = array<i32: 1>} : vector<512x128xi32>
    %c10_i32 = arith.constant 10 : i32
    %36 = vector.broadcast %c10_i32 : i32 to vector<512x128xi32>
    %37 = arith.cmpi slt, %35, %36 : vector<512x128xi32>
    %cst_26 = arith.constant -1.000000e+30 : f32
    %38 = vector.broadcast %cst_26 : f32 to vector<512x128xf32>
    %39 = arith.select %37, %34, %38 : vector<512x128xi1>, vector<512x128xf32>
    %cst_27 = arith.constant dense<0xFF800000> : vector<512xf32>
    %40 = vector.multi_reduction <maximumf>, %39, %cst_27 [1] : vector<512x128xf32> to vector<512xf32>
    %41 = vector.shape_cast %40 : vector<512xf32> to vector<512x1xf32>
    %42 = vector.broadcast %41 : vector<512x1xf32> to vector<512x128xf32>
    %43 = arith.subf %39, %42 : vector<512x128xf32>
    %44 = math.exp %43 : vector<512x128xf32>
    %cst_28 = arith.constant 0.000000e+00 : f32
    %45 = vector.broadcast %cst_28 : f32 to vector<512x128xf32>
    %46 = arith.select %37, %44, %45 : vector<512x128xi1>, vector<512x128xf32>
    %cst_29 = arith.constant dense<0.000000e+00> : vector<512xf32>
    %47 = vector.multi_reduction <add>, %46, %cst_29 [1] : vector<512x128xf32> to vector<512xf32>
    %48 = vector.shape_cast %47 : vector<512xf32> to vector<512x1xf32>
    %49 = math.log %48 : vector<512x1xf32>
    %50 = vector.broadcast %49 : vector<512x1xf32> to vector<512x128xf32>
    %51 = arith.subf %43, %50 : vector<512x128xf32>
    %c0_30 = arith.constant 0 : index
    %c0_31 = arith.constant 0 : index
    %52 = vector.load %arg11[%c0_30, %c0_31] : memref<512x128xf32, #tpu.memory_space<vmem>>, vector<512x128xf32>
    tpu.vector_store %arg11[%c0_30, %c0_31], %51 {strides = array<i32>} : memref<512x128xf32, #tpu.memory_space<vmem>>, vector<512x128xf32>,
    return
  }
  func.func @transform_0(%arg0: i32) -> (i32, i32) {
    %c0_i32 = arith.constant 0 : i32
    %c0_i32_0 = arith.constant 0 : i32
    %c0_i32_1 = arith.constant 0 : i32
    return %c0_i32, %c0_i32_0 : i32, i32
  }
  func.func @transform_1(%arg0: i32) -> (i32, i32) {
    %c0_i32 = arith.constant 0 : i32
    %c0_i32_0 = arith.constant 0 : i32
    %c0_i32_1 = arith.constant 0 : i32
    return %c0_i32, %c0_i32_0 : i32, i32
  }
  func.func @transform_2(%arg0: i32) -> (i32, i32) {
    %c0_i32 = arith.constant 0 : i32
    %c0_i32_0 = arith.constant 0 : i32
    %c0_i32_1 = arith.constant 0 : i32
    return %c0_i32, %c0_i32_0 : i32, i32
  }
  func.func @transform_3(%arg0: i32) -> (i32, i32) {
    %c0_i32 = arith.constant 0 : i32
    %c0_i32_0 = arith.constant 0 : i32
    %c0_i32_1 = arith.constant 0 : i32
    return %c0_i32, %c0_i32_0 : i32, i32
  }
  func.func @transform_4(%arg0: i32) -> (i32, i32) {
    %c0_i32 = arith.constant 0 : i32
    %c0_i32_0 = arith.constant 0 : i32
    %c0_i32_1 = arith.constant 0 : i32
    return %c0_i32, %c0_i32_0 : i32, i32
  }
  func.func @transform_5(%arg0: i32) -> (i32, i32) {
    %c0_i32 = arith.constant 0 : i32
    %c0_i32_0 = arith.constant 0 : i32
    %c0_i32_1 = arith.constant 0 : i32
    return %c0_i32, %c0_i32_0 : i32, i32
  }
  func.func @transform_6(%arg0: i32) -> (i32, i32) {
    %c0_i32 = arith.constant 0 : i32
    %c0_i32_0 = arith.constant 0 : i32
    %c0_i32_1 = arith.constant 0 : i32
    return %c0_i32, %c0_i32_0 : i32, i32
  }
  func.func @transform_7(%arg0: i32) -> (i32, i32) {
    %c0_i32 = arith.constant 0 : i32
    %c0_i32_0 = arith.constant 0 : i32
    %c0_i32_1 = arith.constant 0 : i32
    return %c0_i32, %c0_i32_0 : i32, i32
  }
  func.func @transform_8(%arg0: i32) -> (i32, i32) {
    %c0_i32 = arith.constant 0 : i32
    %c0_i32_0 = arith.constant 0 : i32
    %c0_i32_1 = arith.constant 0 : i32
    return %c0_i32, %c0_i32_0 : i32, i32
  }
  func.func @transform_9(%arg0: i32) -> (i32, i32) {
    %c0_i32 = arith.constant 0 : i32
    %c0_i32_0 = arith.constant 0 : i32
    %c0_i32_1 = arith.constant 0 : i32
    return %c0_i32, %c0_i32_0 : i32, i32
  }
  func.func @transform_10(%arg0: i32) -> (i32, i32) {
    %c0_i32 = arith.constant 0 : i32
    %c0_i32_0 = arith.constant 0 : i32
    %c0_i32_1 = arith.constant 0 : i32
    return %c0_i32, %c0_i32_0 : i32, i32
  }
}

</mosaic_0001>

<llo_original>
// kernel: gcn_classifier_forward.1
$region0: #{gcn_classifier_forward.1}
  #allocation0 [shape = 'u32[]', space=smem, size = 0x4, offset = 0x4, fixed_abs, tag = 'smem constant byte address 0x4 - core index']
  #allocation1 [shape = 'u32[144,128]{1,0:T(1,128)}', space=vmem, size = 0x12000, scoped, tag = 'internal scratch']
  %s0 = inlined_call_operand.hbm [shape: bf16[512,512], index: 0, kind: input, shape index: {}]
  %s1 = inlined_call_operand.hbm [shape: bf16[512,128], index: 1, kind: input, shape index: {}]
  %s2 = inlined_call_operand.hbm [shape: bf16[128,128], index: 2, kind: input, shape index: {}]
  %s3 = inlined_call_operand.vmem [shape: f32[1,128], index: 3, kind: input, shape index: {}]
  %s4 = inlined_call_operand.vmem [shape: f32[1,128], index: 4, kind: input, shape index: {}]
  %s5 = inlined_call_operand.hbm [shape: bf16[128,128], index: 5, kind: input, shape index: {}]
  %s6 = inlined_call_operand.vmem [shape: f32[1,128], index: 6, kind: input, shape index: {}]
  %s7 = inlined_call_operand.vmem [shape: f32[1,128], index: 7, kind: input, shape index: {}]
  %s8 = inlined_call_operand.hbm [shape: bf16[128,128], index: 8, kind: input, shape index: {}]
  %s9 = inlined_call_operand.vmem [shape: f32[1,128], index: 9, kind: input, shape index: {}]
  %s10 = inlined_call_operand.vmem [shape: f32[512,128], index: 10, kind: output, shape index: {}]
  %s11 = sld [smem:[#allocation0]]
  $region70: #{gcn_classifier_forward.1} parent=0
    _
  %s13 = ssub.s32 1, %s11
  %s14 = scalar_select 0, %s13, %s11
  $region1: #{gcn_classifier_forward.1} parent=0
    #allocation2 [shape = 'u8[524288]{0}', space=vmem, size = 0x80000, scoped, tag = 'input window, operand 0, single buffered']
    #allocation3 [shape = 's32[1]{0}', space=sflag, size = 0x4, scoped, tag = 'scoped memory for gcn_classifier_forward.1']
    #allocation4 [shape = 'u8[131072]{0}', space=vmem, size = 0x20000, scoped, tag = 'input window, operand 1, single buffered']
    #allocation5 [shape = 's32[1]{0}', space=sflag, size = 0x4, scoped, tag = 'scoped memory for gcn_classifier_forward.1']
    #allocation6 [shape = 'u8[32768]{0}', space=vmem, size = 0x8000, scoped, tag = 'input window, operand 2, single buffered']
    #allocation7 [shape = 'u8[32768]{0}', space=vmem, size = 0x8000, scoped, tag = 'input window, operand 5, single buffered']
    #allocation8 [shape = 's32[1]{0}', space=sflag, size = 0x4, scoped, tag = 'scoped memory for gcn_classifier_forward.1']
    #allocation9 [shape = 'u8[32768]{0}', space=vmem, size = 0x8000, scoped, tag = 'input window, operand 8, single buffered']
    %15 = vsyncpa [#allocation3], 0
    %16 = vsyncpa [#allocation5], 0
    %17 = vsyncpa [#allocation8], 0
    // Predicated region
    $region2: #{gcn_classifier_forward.1} parent=1 // pred_check
      _
    $region3: #{gcn_classifier_forward.1} parent=1 // pred_check_branch
      %19 = sbr.rel (0) target = $region5
    $region4: #{gcn_classifier_forward.1} parent=1 // pred_region
      %s21 = ssub.s32 16384, 16384
      %22 = vsyncadd [#allocation3], %s21
      %s23 = sshll.u32 [#allocation2], 4
      %s24 = int_to_ptr.vmem [resolvable:$true] %s23
      %29 = dma.hbm_to_vmem [thread:$0]  %s0, 16384, %s24, [#allocation3], 256, 256, 16
    $region5: #{gcn_classifier_forward.1} parent=1 // pred_fallthru
      _
    // Predicated region
    $region6: #{gcn_classifier_forward.1} parent=1 // pred_check
      _
    $region7: #{gcn_classifier_forward.1} parent=1 // pred_check_branch
      %31 = sbr.rel (0) target = $region9
    $region8: #{gcn_classifier_forward.1} parent=1 // pred_region
      %s33 = ssub.s32 4096, 4096
      %34 = vsyncadd [#allocation5], %s33
      %s35 = sshll.u32 [#allocation4], 4
      %s36 = int_to_ptr.vmem [resolvable:$true] %s35
      %41 = dma.hbm_to_vmem [thread:$0]  %s1, 4096, %s36, [#allocation5], 64, 64, 4
    $region9: #{gcn_classifier_forward.1} parent=1 // pred_fallthru
      _
    // Predicated region
    $region10: #{gcn_classifier_forward.1} parent=1 // pred_check
      _
    $region11: #{gcn_classifier_forward.1} parent=1 // pred_check_branch
      %43 = sbr.rel (0) target = $region13
    $region12: #{gcn_classifier_forward.1} parent=1 // pred_region
      %s45 = ssub.s32 1024, 1024
      %46 = vsyncadd [#allocation5], %s45
      %s47 = sshll.u32 [#allocation6], 4
      %s48 = int_to_ptr.vmem [resolvable:$true] %s47
      %53 = dma.hbm_to_vmem [thread:$0]  %s2, 1024, %s48, [#allocation5], 64, 64, 4
    $region13: #{gcn_classifier_forward.1} parent=1 // pred_fallthru
      _
    // Predicated region
    $region14: #{gcn_classifier_forward.1} parent=1 // pred_check
      _
    $region15: #{gcn_classifier_forward.1} parent=1 // pred_check_branch
      %55 = sbr.rel (0) target = $region17
    $region16: #{gcn_classifier_forward.1} parent=1 // pred_region
      _
    $region17: #{gcn_classifier_forward.1} parent=1 // pred_fallthru
      _
    // Predicated region
    $region18: #{gcn_classifier_forward.1} parent=1 // pred_check
      _
    $region19: #{gcn_classifier_forward.1} parent=1 // pred_check_branch
      %57 = sbr.rel (0) target = $region21
    $region20: #{gcn_classifier_forward.1} parent=1 // pred_region
      _
    $region21: #{gcn_classifier_forward.1} parent=1 // pred_fallthru
      _
    // Predicated region
    $region22: #{gcn_classifier_forward.1} parent=1 // pred_check
      _
    $region23: #{gcn_classifier_forward.1} parent=1 // pred_check_branch
      %59 = sbr.rel (0) target = $region25
    $region24: #{gcn_classifier_forward.1} parent=1 // pred_region
      %s61 = ssub.s32 1024, 1024
      %62 = vsyncadd [#allocation8], %s61
      %s63 = sshll.u32 [#allocation7], 4
      %s64 = int_to_ptr.vmem [resolvable:$true] %s63
      %69 = dma.hbm_to_vmem [thread:$0]  %s5, 1024, %s64, [#allocation8], 64, 64, 4
    $region25: #{gcn_classifier_forward.1} parent=1 // pred_fallthru
      _
    // Predicated region
    $region26: #{gcn_classifier_forward.1} parent=1 // pred_check
      _
    $region27: #{gcn_classifier_forward.1} parent=1 // pred_check_branch
      %71 = sbr.rel (0) target = $region29
    $region28: #{gcn_classifier_forward.1} parent=1 // pred_region
      _
    $region29: #{gcn_classifier_forward.1} parent=1 // pred_fallthru
      _
    // Predicated region
    $region30: #{gcn_classifier_forward.1} parent=1 // pred_check
      _
    $region31: #{gcn_classifier_forward.1} parent=1 // pred_check_branch
      %73 = sbr.rel (0) target = $region33
    $region32: #{gcn_classifier_forward.1} parent=1 // pred_region
      _
    $region33: #{gcn_classifier_forward.1} parent=1 // pred_fallthru
      _
    // Predicated region
    $region34: #{gcn_classifier_forward.1} parent=1 // pred_check
      _
    $region35: #{gcn_classifier_forward.1} parent=1 // pred_check_branch
      %75 = sbr.rel (0) target = $region37
    $region36: #{gcn_classifier_forward.1} parent=1 // pred_region
      %s77 = ssub.s32 1024, 1024
      %78 = vsyncadd [#allocation8], %s77
      %s79 = sshll.u32 [#allocation9], 4
      %s80 = int_to_ptr.vmem [resolvable:$true] %s79
      %85 = dma.hbm_to_vmem [thread:$0]  %s8, 1024, %s80, [#allocation8], 64, 64, 4
    $region37: #{gcn_classifier_forward.1} parent=1 // pred_fallthru
      _
    // Predicated region
    $region38: #{gcn_classifier_forward.1} parent=1 // pred_check
      _
    $region39: #{gcn_classifier_forward.1} parent=1 // pred_check_branch
      %87 = sbr.rel (0) target = $region41
    $region40: #{gcn_classifier_forward.1} parent=1 // pred_region
      _
    $region41: #{gcn_classifier_forward.1} parent=1 // pred_fallthru
      _
    // Predicated region
    $region42: #{gcn_classifier_forward.1} parent=1 // pred_check
      _
    $region43: #{gcn_classifier_forward.1} parent=1 // pred_check_branch
      %89 = sbr.rel (0) target = $region45
    $region44: #{gcn_classifier_forward.1} parent=1 // pred_region
      %90 = dma.done [#allocation3], 16384
    $region45: #{gcn_classifier_forward.1} parent=1 // pred_fallthru
      _
    // Predicated region
    $region46: #{gcn_classifier_forward.1} parent=1 // pred_check
      _
    $region47: #{gcn_classifier_forward.1} parent=1 // pred_check_branch
      %92 = sbr.rel (0) target = $region49
    $region48: #{gcn_classifier_forward.1} parent=1 // pred_region
      %93 = dma.done [#allocation5], 4096
    $region49: #{gcn_classifier_forward.1} parent=1 // pred_fallthru
      _
    // Predicated region
    $region50: #{gcn_classifier_forward.1} parent=1 // pred_check
      _
    $region51: #{gcn_classifier_forward.1} parent=1 // pred_check_branch
      %95 = sbr.rel (0) target = $region53
    $region52: #{gcn_classifier_forward.1} parent=1 // pred_region
      %96 = dma.done [#allocation5], 1024
    $region53: #{gcn_classifier_forward.1} parent=1 // pred_fallthru
      _
    // Predicated region
    $region54: #{gcn_classifier_forward.1} parent=1 // pred_check
      _
    $region55: #{gcn_classifier_forward.1} parent=1 // pred_check_branch
      %98 = sbr.rel (0) target = $region57
    $region56: #{gcn_classifier_forward.1} parent=1 // pred_region
      %99 = dma.done [#allocation8], 1024
    $region57: #{gcn_classifier_forward.1} parent=1 // pred_fallthru
      _
    // Predicated region
    $region58: #{gcn_classifier_forward.1} parent=1 // pred_check
      _
    $region59: #{gcn_classifier_forward.1} parent=1 // pred_check_branch
      %101 = sbr.rel (0) target = $region61
    $region60: #{gcn_classifier_forward.1} parent=1 // pred_region
      %102 = dma.done [#allocation8], 1024
    $region61: #{gcn_classifier_forward.1} parent=1 // pred_fallthru
      _
    %v104 = vld [vmem:[#allocation2] sm:$0xff]
    %v105 = vld [vmem:[#allocation2 + $0x8] sm:$0xff]
    %v106 = vld [vmem:[#allocation2 + $0x10] sm:$0xff]
    %v107 = vld [vmem:[#allocation2 + $0x18] sm:$0xff]
    %v108 = vld [vmem:[#allocation2 + $0x20] sm:$0xff]
    %v109 = vld [vmem:[#allocation2 + $0x28] sm:$0xff]
    %v110 = vld [vmem:[#allocation2 + $0x30] sm:$0xff]
    %v111 = vld [vmem:[#allocation2 + $0x38] sm:$0xff]
    %v112 = vld [vmem:[#allocation2 + $0x40] sm:$0xff]
    %v113 = vld [vmem:[#allocation2 + $0x48] sm:$0xff]
    %v114 = vld [vmem:[#allocation2 + $0x50] sm:$0xff]
    %v115 = vld [vmem:[#allocation2 + $0x58] sm:$0xff]
    %v116 = vld [vmem:[#allocation2 + $0x60] sm:$0xff]
    %v117 = vld [vmem:[#allocation2 + $0x68] sm:$0xff]
    %v118 = vld [vmem:[#allocation2 + $0x70] sm:$0xff]
    %v119 = vld [vmem:[#allocation2 + $0x78] sm:$0xff]
    %v120 = vld [vmem:[#allocation2 + $0x80] sm:$0xff]
    %v121 = vld [vmem:[#allocation2 + $0x88] sm:$0xff]
    %v122 = vld [vmem:[#allocation2 + $0x90] sm:$0xff]
    %v123 = vld [vmem:[#allocation2 + $0x98] sm:$0xff]
    %v124 = vld [vmem:[#allocation2 + $0xa0] sm:$0xff]
    %v125 = vld [vmem:[#allocation2 + $0xa8] sm:$0xff]
    %v126 = vld [vmem:[#allocation2 + $0xb0] sm:$0xff]
    %v127 = vld [vmem:[#allocation2 + $0xb8] sm:$0xff]
    %v128 = vld [vmem:[#allocation2 + $0xc0] sm:$0xff]
    %v129 = vld [vmem:[#allocation2 + $0xc8] sm:$0xff]
    %v130 = vld [vmem:[#allocation2 + $0xd0] sm:$0xff]
    %v131 = vld [vmem:[#allocation2 + $0xd8] sm:$0xff]
    %v132 = vld [vmem:[#allocation2 + $0xe0] sm:$0xff]
    %v133 = vld [vmem:[#allocation2 + $0xe8] sm:$0xff]
    %v134 = vld [vmem:[#allocation2 + $0xf0] sm:$0xff]
    %v135 = vld [vmem:[#allocation2 + $0xf8] sm:$0xff]
    %v136 = vld [vmem:[#allocation2 + $0x100] sm:$0xff]
    %v137 = vld [vmem:[#allocation2 + $0x108] sm:$0xff]
    %v138 = vld [vmem:[#allocation2 + $0x110] sm:$0xff]
    %v139 = vld [vmem:[#allocation2 + $0x118] sm:$0xff]
    %v140 = vld [vmem:[#allocation2 + $0x120] sm:$0xff]
    %v141 = vld [vmem:[#allocation2 + $0x128] sm:$0xff]
    %v142 = vld [vmem:[#allocation2 + $0x130] sm:$0xff]
    %v143 = vld [vmem:[#allocation2 + $0x138] sm:$0xff]
    %v144 = vld [vmem:[#allocation2 + $0x140] sm:$0xff]
    %v145 = vld [vmem:[#allocation2 + $0x148] sm:$0xff]
    %v146 = vld [vmem:[#allocation2 + $0x150] sm:$0xff]
    %v147 = vld [vmem:[#allocation2 + $0x158] sm:$0xff]
    %v148 = vld [vmem:[#allocation2 + $0x160] sm:$0xff]
    %v149 = vld [vmem:[#allocation2 + $0x168] sm:$0xff]
    %v150 = vld [vmem:[#allocation2 + $0x170] sm:$0xff]
    %v151 = vld [vmem:[#allocation2 + $0x178] sm:$0xff]
    %v152 = vld [vmem:[#allocation2 + $0x180] sm:$0xff]
    %v153 = vld [vmem:[#allocation2 + $0x188] sm:$0xff]
    %v154 = vld [vmem:[#allocation2 + $0x190] sm:$0xff]
    %v155 = vld [vmem:[#allocation2 + $0x198] sm:$0xff]
    %v156 = vld [vmem:[#allocation2 + $0x1a0] sm:$0xff]
    %v157 = vld [vmem:[#allocation2 + $0x1a8] sm:$0xff]
    %v158 = vld [vmem:[#allocation2 + $0x1b0] sm:$0xff]
    %v159 = vld [vmem:[#allocation2 + $0x1b8] sm:$0xff]
    %v160 = vld [vmem:[#allocation2 + $0x1c0] sm:$0xff]
    %v161 = vld [vmem:[#allocation2 + $0x1c8] sm:$0xff]
    %v162 = vld [vmem:[#allocation2 + $0x1d0] sm:$0xff]
    %v163 = vld [vmem:[#allocation2 + $0x1d8] sm:$0xff]
    %v164 = vld [vmem:[#allocation2 + $0x1e0] sm:$0xff]
    %v165 = vld [vmem:[#allocation2 + $0x1e8] sm:$0xff]
    %v166 = vld [vmem:[#allocation2 + $0x1f0] sm:$0xff]
    %v167 = vld [vmem:[#allocation2 + $0x1f8] sm:$0xff]
    %v168 = vld [vmem:[#allocation2 + $0x200] sm:$0xff]
    %v169 = vld [vmem:[#allocation2 + $0x208] sm:$0xff]
    %v170 = vld [vmem:[#allocation2 + $0x210] sm:$0xff]
    %v171 = vld [vmem:[#allocation2 + $0x218] sm:$0xff]
    %v172 = vld [vmem:[#allocation2 + $0x220] sm:$0xff]
    %v173 = vld [vmem:[#allocation2 + $0x228] sm:$0xff]
    %v174 = vld [vmem:[#allocation2 + $0x230] sm:$0xff]
    %v175 = vld [vmem:[#allocation2 + $0x238] sm:$0xff]
    %v176 = vld [vmem:[#allocation2 + $0x240] sm:$0xff]
    %v177 = vld [vmem:[#allocation2 + $0x248] sm:$0xff]
    %v178 = vld [vmem:[#allocation2 + $0x250] sm:$0xff]
    %v179 = vld [vmem:[#allocation2 + $0x258] sm:$0xff]
    %v180 = vld [vmem:[#allocation2 + $0x260] sm:$0xff]
    %v181 = vld [vmem:[#allocation2 + $0x268] sm:$0xff]
    %v182 = vld [vmem:[#allocation2 + $0x270] sm:$0xff]
    %v183 = vld [vmem:[#allocation2 + $0x278] sm:$0xff]
    %v184 = vld [vmem:[#allocation2 + $0x280] sm:$0xff]
    %v185 = vld [vmem:[#allocation2 + $0x288] sm:$0xff]
    %v186 = vld [vmem:[#allocation2 + $0x290] sm:$0xff]
    %v187 = vld [vmem:[#allocation2 + $0x298] sm:$0xff]
    %v188 = vld [vmem:[#allocation2 + $0x2a0] sm:$0xff]
    %v189 = vld [vmem:[#allocation2 + $0x2a8] sm:$0xff]
    %v190 = vld [vmem:[#allocation2 + $0x2b0] sm:$0xff]
    %v191 = vld [vmem:[#allocation2 + $0x2b8] sm:$0xff]
    %v192 = vld [vmem:[#allocation2 + $0x2c0] sm:$0xff]
    %v193 = vld [vmem:[#allocation2 + $0x2c8] sm:$0xff]
    %v194 = vld [vmem:[#allocation2 + $0x2d0] sm:$0xff]
    %v195 = vld [vmem:[#allocation2 + $0x2d8] sm:$0xff]
    %v196 = vld [vmem:[#allocation2 + $0x2e0] sm:$0xff]
    %v197 = vld [vmem:[#allocation2 + $0x2e8] sm:$0xff]
    %v198 = vld [vmem:[#allocation2 + $0x2f0] sm:$0xff]
    %v199 = vld [vmem:[#allocation2 + $0x2f8] sm:$0xff]
    %v200 = vld [vmem:[#allocation2 + $0x300] sm:$0xff]
    %v201 = vld [vmem:[#allocation2 + $0x308] sm:$0xff]
    %v202 = vld [vmem:[#allocation2 + $0x310] sm:$0xff]
    %v203 = vld [vmem:[#allocation2 + $0x318] sm:$0xff]
    %v204 = vld [vmem:[#allocation2 + $0x320] sm:$0xff]
    %v205 = vld [vmem:[#allocation2 + $0x328] sm:$0xff]
    %v206 = vld [vmem:[#allocation2 + $0x330] sm:$0xff]
    %v207 = vld [vmem:[#allocation2 + $0x338] sm:$0xff]
    %v208 = vld [vmem:[#allocation2 + $0x340] sm:$0xff]
    %v209 = vld [vmem:[#allocation2 + $0x348] sm:$0xff]
    %v210 = vld [vmem:[#allocation2 + $0x350] sm:$0xff]
    %v211 = vld [vmem:[#allocation2 + $0x358] sm:$0xff]
    %v212 = vld [vmem:[#allocation2 + $0x360] sm:$0xff]
    %v213 = vld [vmem:[#allocation2 + $0x368] sm:$0xff]
    %v214 = vld [vmem:[#allocation2 + $0x370] sm:$0xff]
    %v215 = vld [vmem:[#allocation2 + $0x378] sm:$0xff]
    %v216 = vld [vmem:[#allocation2 + $0x380] sm:$0xff]
    %v217 = vld [vmem:[#allocation2 + $0x388] sm:$0xff]
    %v218 = vld [vmem:[#allocation2 + $0x390] sm:$0xff]
    %v219 = vld [vmem:[#allocation2 + $0x398] sm:$0xff]
    %v220 = vld [vmem:[#allocation2 + $0x3a0] sm:$0xff]
    %v221 = vld [vmem:[#allocation2 + $0x3a8] sm:$0xff]
    %v222 = vld [vmem:[#allocation2 + $0x3b0] sm:$0xff]
    %v223 = vld [vmem:[#allocation2 + $0x3b8] sm:$0xff]
    %v224 = vld [vmem:[#allocation2 + $0x3c0] sm:$0xff]
    %v225 = vld [vmem:[#allocation2 + $0x3c8] sm:$0xff]
    %v226 = vld [vmem:[#allocation2 + $0x3d0] sm:$0xff]
    %v227 = vld [vmem:[#allocation2 + $0x3d8] sm:$0xff]
    %v228 = vld [vmem:[#allocation2 + $0x3e0] sm:$0xff]
    %v229 = vld [vmem:[#allocation2 + $0x3e8] sm:$0xff]
    %v230 = vld [vmem:[#allocation2 + $0x3f0] sm:$0xff]
    %v231 = vld [vmem:[#allocation2 + $0x3f8] sm:$0xff]
    %v232 = vld [vmem:[#allocation4] sm:$0xf]
    %v233 = vld [vmem:[#allocation4 + $0x4] sm:$0xf]
    %v234 = vld [vmem:[#allocation4 + $0x8] sm:$0xf]
    %v235 = vld [vmem:[#allocation4 + $0xc] sm:$0xf]
    %v236 = vld [vmem:[#allocation4 + $0x10] sm:$0xf]
    %v237 = vld [vmem:[#allocation4 + $0x14] sm:$0xf]
    %v238 = vld [vmem:[#allocation4 + $0x18] sm:$0xf]
    %v239 = vld [vmem:[#allocation4 + $0x1c] sm:$0xf]
    %v240 = vld [vmem:[#allocation4 + $0x20] sm:$0xf]
    %v241 = vld [vmem:[#allocation4 + $0x24] sm:$0xf]
    %v242 = vld [vmem:[#allocation4 + $0x28] sm:$0xf]
    %v243 = vld [vmem:[#allocation4 + $0x2c] sm:$0xf]
    %v244 = vld [vmem:[#allocation4 + $0x30] sm:$0xf]
    %v245 = vld [vmem:[#allocation4 + $0x34] sm:$0xf]
    %v246 = vld [vmem:[#allocation4 + $0x38] sm:$0xf]
    %v247 = vld [vmem:[#allocation4 + $0x3c] sm:$0xf]
    %v248 = vld [vmem:[#allocation4 + $0x40] sm:$0xf]
    %v249 = vld [vmem:[#allocation4 + $0x44] sm:$0xf]
    %v250 = vld [vmem:[#allocation4 + $0x48] sm:$0xf]
    %v251 = vld [vmem:[#allocation4 + $0x4c] sm:$0xf]
    %v252 = vld [vmem:[#allocation4 + $0x50] sm:$0xf]
    %v253 = vld [vmem:[#allocation4 + $0x54] sm:$0xf]
    %v254 = vld [vmem:[#allocation4 + $0x58] sm:$0xf]
    %v255 = vld [vmem:[#allocation4 + $0x5c] sm:$0xf]
    %v256 = vld [vmem:[#allocation4 + $0x60] sm:$0xf]
    %v257 = vld [vmem:[#allocation4 + $0x64] sm:$0xf]
    %v258 = vld [vmem:[#allocation4 + $0x68] sm:$0xf]
    %v259 = vld [vmem:[#allocation4 + $0x6c] sm:$0xf]
    %v260 = vld [vmem:[#allocation4 + $0x70] sm:$0xf]
    %v261 = vld [vmem:[#allocation4 + $0x74] sm:$0xf]
    %v262 = vld [vmem:[#allocation4 + $0x78] sm:$0xf]
    %v263 = vld [vmem:[#allocation4 + $0x7c] sm:$0xf]
    %v264 = vld [vmem:[#allocation4 + $0x80] sm:$0xf]
    %v265 = vld [vmem:[#allocation4 + $0x84] sm:$0xf]
    %v266 = vld [vmem:[#allocation4 + $0x88] sm:$0xf]
    %v267 = vld [vmem:[#allocation4 + $0x8c] sm:$0xf]
    %v268 = vld [vmem:[#allocation4 + $0x90] sm:$0xf]
    %v269 = vld [vmem:[#allocation4 + $0x94] sm:$0xf]
    %v270 = vld [vmem:[#allocation4 + $0x98] sm:$0xf]
    %v271 = vld [vmem:[#allocation4 + $0x9c] sm:$0xf]
    %v272 = vld [vmem:[#allocation4 + $0xa0] sm:$0xf]
    %v273 = vld [vmem:[#allocation4 + $0xa4] sm:$0xf]
    %v274 = vld [vmem:[#allocation4 + $0xa8] sm:$0xf]
    %v275 = vld [vmem:[#allocation4 + $0xac] sm:$0xf]
    %v276 = vld [vmem:[#allocation4 + $0xb0] sm:$0xf]
    %v277 = vld [vmem:[#allocation4 + $0xb4] sm:$0xf]
    %v278 = vld [vmem:[#allocation4 + $0xb8] sm:$0xf]
    %v279 = vld [vmem:[#allocation4 + $0xbc] sm:$0xf]
    %v280 = vld [vmem:[#allocation4 + $0xc0] sm:$0xf]
    %v281 = vld [vmem:[#allocation4 + $0xc4] sm:$0xf]
    %v282 = vld [vmem:[#allocation4 + $0xc8] sm:$0xf]
    %v283 = vld [vmem:[#allocation4 + $0xcc] sm:$0xf]
    %v284 = vld [vmem:[#allocation4 + $0xd0] sm:$0xf]
    %v285 = vld [vmem:[#allocation4 + $0xd4] sm:$0xf]
    %v286 = vld [vmem:[#allocation4 + $0xd8] sm:$0xf]
    %v287 = vld [vmem:[#allocation4 + $0xdc] sm:$0xf]
    %v288 = vld [vmem:[#allocation4 + $0xe0] sm:$0xf]
    %v289 = vld [vmem:[#allocation4 + $0xe4] sm:$0xf]
    %v290 = vld [vmem:[#allocation4 + $0xe8] sm:$0xf]
    %v291 = vld [vmem:[#allocation4 + $0xec] sm:$0xf]
    %v292 = vld [vmem:[#allocation4 + $0xf0] sm:$0xf]
    %v293 = vld [vmem:[#allocation4 + $0xf4] sm:$0xf]
    %v294 = vld [vmem:[#allocation4 + $0xf8] sm:$0xf]
    %v295 = vld [vmem:[#allocation4 + $0xfc] sm:$0xf]
    %v424 = vunpack.c.l.b16 %v104
    %v425 = vunpack.c.h.b16 %v104
    %v426 = vunpack.c.l.b16 %v105
    %v427 = vunpack.c.h.b16 %v105
    %v428 = vunpack.c.l.b16 %v106
    %v429 = vunpack.c.h.b16 %v106
    %v430 = vunpack.c.l.b16 %v107
    %v431 = vunpack.c.h.b16 %v107
    %v432 = vunpack.c.l.b16 %v108
    %v433 = vunpack.c.h.b16 %v108
    %v434 = vunpack.c.l.b16 %v109
    %v435 = vunpack.c.h.b16 %v109
    %v436 = vunpack.c.l.b16 %v110
    %v437 = vunpack.c.h.b16 %v110
    %v438 = vunpack.c.l.b16 %v111
    %v439 = vunpack.c.h.b16 %v111
    %v440 = vunpack.c.l.b16 %v112
    %v441 = vunpack.c.h.b16 %v112
    %v442 = vunpack.c.l.b16 %v113
    %v443 = vunpack.c.h.b16 %v113
    %v444 = vunpack.c.l.b16 %v114
    %v445 = vunpack.c.h.b16 %v114
    %v446 = vunpack.c.l.b16 %v115
    %v447 = vunpack.c.h.b16 %v115
    %v448 = vunpack.c.l.b16 %v116
    %v449 = vunpack.c.h.b16 %v116
    %v450 = vunpack.c.l.b16 %v117
    %v451 = vunpack.c.h.b16 %v117
    %v452 = vunpack.c.l.b16 %v118
    %v453 = vunpack.c.h.b16 %v118
    %v454 = vunpack.c.l.b16 %v119
    %v455 = vunpack.c.h.b16 %v119
    %v456 = vunpack.c.l.b16 %v120
    %v457 = vunpack.c.h.b16 %v120
    %v458 = vunpack.c.l.b16 %v121
    %v459 = vunpack.c.h.b16 %v121
    %v460 = vunpack.c.l.b16 %v122
    %v461 = vunpack.c.h.b16 %v122
    %v462 = vunpack.c.l.b16 %v123
    %v463 = vunpack.c.h.b16 %v123
    %v464 = vunpack.c.l.b16 %v124
    %v465 = vunpack.c.h.b16 %v124
    %v466 = vunpack.c.l.b16 %v125
    %v467 = vunpack.c.h.b16 %v125
    %v468 = vunpack.c.l.b16 %v126
    %v469 = vunpack.c.h.b16 %v126
    %v470 = vunpack.c.l.b16 %v127
    %v471 = vunpack.c.h.b16 %v127
    %v472 = vunpack.c.l.b16 %v128
    %v473 = vunpack.c.h.b16 %v128
    %v474 = vunpack.c.l.b16 %v129
    %v475 = vunpack.c.h.b16 %v129
    %v476 = vunpack.c.l.b16 %v130
    %v477 = vunpack.c.h.b16 %v130
    %v478 = vunpack.c.l.b16 %v131
    %v479 = vunpack.c.h.b16 %v131
    %v480 = vunpack.c.l.b16 %v132
    %v481 = vunpack.c.h.b16 %v132
    %v482 = vunpack.c.l.b16 %v133
    %v483 = vunpack.c.h.b16 %v133
    %v484 = vunpack.c.l.b16 %v134
    %v485 = vunpack.c.h.b16 %v134
    %v486 = vunpack.c.l.b16 %v135
    %v487 = vunpack.c.h.b16 %v135
    %v488 = vunpack.c.l.b16 %v136
    %v489 = vunpack.c.h.b16 %v136
    %v490 = vunpack.c.l.b16 %v137
    %v491 = vunpack.c.h.b16 %v137
    %v492 = vunpack.c.l.b16 %v138
    %v493 = vunpack.c.h.b16 %v138
    %v494 = vunpack.c.l.b16 %v139
    %v495 = vunpack.c.h.b16 %v139
    %v496 = vunpack.c.l.b16 %v140
    %v497 = vunpack.c.h.b16 %v140
    %v498 = vunpack.c.l.b16 %v141
    %v499 = vunpack.c.h.b16 %v141
    %v500 = vunpack.c.l.b16 %v142
    %v501 = vunpack.c.h.b16 %v142
    %v502 = vunpack.c.l.b16 %v143
    %v503 = vunpack.c.h.b16 %v143
    %v504 = vunpack.c.l.b16 %v144
    %v505 = vunpack.c.h.b16 %v144
    %v506 = vunpack.c.l.b16 %v145
    %v507 = vunpack.c.h.b16 %v145
    %v508 = vunpack.c.l.b16 %v146
    %v509 = vunpack.c.h.b16 %v146
    %v510 = vunpack.c.l.b16 %v147
    %v511 = vunpack.c.h.b16 %v147
    %v512 = vunpack.c.l.b16 %v148
    %v513 = vunpack.c.h.b16 %v148
    %v514 = vunpack.c.l.b16 %v149
    %v515 = vunpack.c.h.b16 %v149
    %v516 = vunpack.c.l.b16 %v150
    %v517 = vunpack.c.h.b16 %v150
    %v518 = vunpack.c.l.b16 %v151
    %v519 = vunpack.c.h.b16 %v151
    %v520 = vunpack.c.l.b16 %v152
    %v521 = vunpack.c.h.b16 %v152
    %v522 = vunpack.c.l.b16 %v153
    %v523 = vunpack.c.h.b16 %v153
    %v524 = vunpack.c.l.b16 %v154
    %v525 = vunpack.c.h.b16 %v154
    %v526 = vunpack.c.l.b16 %v155
    %v527 = vunpack.c.h.b16 %v155
    %v528 = vunpack.c.l.b16 %v156
    %v529 = vunpack.c.h.b16 %v156
    %v530 = vunpack.c.l.b16 %v157
    %v531 = vunpack.c.h.b16 %v157
    %v532 = vunpack.c.l.b16 %v158
    %v533 = vunpack.c.h.b16 %v158
    %v534 = vunpack.c.l.b16 %v159
    %v535 = vunpack.c.h.b16 %v159
    %v536 = vunpack.c.l.b16 %v160
    %v537 = vunpack.c.h.b16 %v160
    %v538 = vunpack.c.l.b16 %v161
    %v539 = vunpack.c.h.b16 %v161
    %v540 = vunpack.c.l.b16 %v162
    %v541 = vunpack.c.h.b16 %v162
    %v542 = vunpack.c.l.b16 %v163
    %v543 = vunpack.c.h.b16 %v163
    %v544 = vunpack.c.l.b16 %v164
    %v545 = vunpack.c.h.b16 %v164
    %v546 = vunpack.c.l.b16 %v165
    %v547 = vunpack.c.h.b16 %v165
    %v548 = vunpack.c.l.b16 %v166
    %v549 = vunpack.c.h.b16 %v166
    %v550 = vunpack.c.l.b16 %v167
    %v551 = vunpack.c.h.b16 %v167
    %v552 = vunpack.c.l.b16 %v168
    %v553 = vunpack.c.h.b16 %v168
    %v554 = vunpack.c.l.b16 %v169
    %v555 = vunpack.c.h.b16 %v169
    %v556 = vunpack.c.l.b16 %v170
    %v557 = vunpack.c.h.b16 %v170
    %v558 = vunpack.c.l.b16 %v171
    %v559 = vunpack.c.h.b16 %v171
    %v560 = vunpack.c.l.b16 %v172
    %v561 = vunpack.c.h.b16 %v172
    %v562 = vunpack.c.l.b16 %v173
    %v563 = vunpack.c.h.b16 %v173
    %v564 = vunpack.c.l.b16 %v174
    %v565 = vunpack.c.h.b16 %v174
    %v566 = vunpack.c.l.b16 %v175
    %v567 = vunpack.c.h.b16 %v175
    %v568 = vunpack.c.l.b16 %v176
    %v569 = vunpack.c.h.b16 %v176
    %v570 = vunpack.c.l.b16 %v177
    %v571 = vunpack.c.h.b16 %v177
    %v572 = vunpack.c.l.b16 %v178
    %v573 = vunpack.c.h.b16 %v178
    %v574 = vunpack.c.l.b16 %v179
    %v575 = vunpack.c.h.b16 %v179
    %v576 = vunpack.c.l.b16 %v180
    %v577 = vunpack.c.h.b16 %v180
    %v578 = vunpack.c.l.b16 %v181
    %v579 = vunpack.c.h.b16 %v181
    %v580 = vunpack.c.l.b16 %v182
    %v581 = vunpack.c.h.b16 %v182
    %v582 = vunpack.c.l.b16 %v183
    %v583 = vunpack.c.h.b16 %v183
    %v584 = vunpack.c.l.b16 %v184
    %v585 = vunpack.c.h.b16 %v184
    %v586 = vunpack.c.l.b16 %v185
    %v587 = vunpack.c.h.b16 %v185
    %v588 = vunpack.c.l.b16 %v186
    %v589 = vunpack.c.h.b16 %v186
    %v590 = vunpack.c.l.b16 %v187
    %v591 = vunpack.c.h.b16 %v187
    %v592 = vunpack.c.l.b16 %v188
    %v593 = vunpack.c.h.b16 %v188
    %v594 = vunpack.c.l.b16 %v189
    %v595 = vunpack.c.h.b16 %v189
    %v596 = vunpack.c.l.b16 %v190
    %v597 = vunpack.c.h.b16 %v190
    %v598 = vunpack.c.l.b16 %v191
    %v599 = vunpack.c.h.b16 %v191
    %v600 = vunpack.c.l.b16 %v192
    %v601 = vunpack.c.h.b16 %v192
    %v602 = vunpack.c.l.b16 %v193
    %v603 = vunpack.c.h.b16 %v193
    %v604 = vunpack.c.l.b16 %v194
    %v605 = vunpack.c.h.b16 %v194
    %v606 = vunpack.c.l.b16 %v195
    %v607 = vunpack.c.h.b16 %v195
    %v608 = vunpack.c.l.b16 %v196
    %v609 = vunpack.c.h.b16 %v196
    %v610 = vunpack.c.l.b16 %v197
    %v611 = vunpack.c.h.b16 %v197
    %v612 = vunpack.c.l.b16 %v198
    %v613 = vunpack.c.h.b16 %v198
    %v614 = vunpack.c.l.b16 %v199
    %v615 = vunpack.c.h.b16 %v199
    %v616 = vunpack.c.l.b16 %v200
    %v617 = vunpack.c.h.b16 %v200
    %v618 = vunpack.c.l.b16 %v201
    %v619 = vunpack.c.h.b16 %v201
    %v620 = vunpack.c.l.b16 %v202
    %v621 = vunpack.c.h.b16 %v202
    %v622 = vunpack.c.l.b16 %v203
    %v623 = vunpack.c.h.b16 %v203
    %v624 = vunpack.c.l.b16 %v204
    %v625 = vunpack.c.h.b16 %v204
    %v626 = vunpack.c.l.b16 %v205
    %v627 = vunpack.c.h.b16 %v205
    %v628 = vunpack.c.l.b16 %v206
    %v629 = vunpack.c.h.b16 %v206
    %v630 = vunpack.c.l.b16 %v207
    %v631 = vunpack.c.h.b16 %v207
    %v632 = vunpack.c.l.b16 %v208
    %v633 = vunpack.c.h.b16 %v208
    %v634 = vunpack.c.l.b16 %v209
    %v635 = vunpack.c.h.b16 %v209
    %v636 = vunpack.c.l.b16 %v210
    %v637 = vunpack.c.h.b16 %v210
    %v638 = vunpack.c.l.b16 %v211
    %v639 = vunpack.c.h.b16 %v211
    %v640 = vunpack.c.l.b16 %v212
    %v641 = vunpack.c.h.b16 %v212
    %v642 = vunpack.c.l.b16 %v213
    %v643 = vunpack.c.h.b16 %v213
    %v644 = vunpack.c.l.b16 %v214
    %v645 = vunpack.c.h.b16 %v214
    %v646 = vunpack.c.l.b16 %v215
    %v647 = vunpack.c.h.b16 %v215
    %v648 = vunpack.c.l.b16 %v216
    %v649 = vunpack.c.h.b16 %v216
    %v650 = vunpack.c.l.b16 %v217
    %v651 = vunpack.c.h.b16 %v217
    %v652 = vunpack.c.l.b16 %v218
    %v653 = vunpack.c.h.b16 %v218
    %v654 = vunpack.c.l.b16 %v219
    %v655 = vunpack.c.h.b16 %v219
    %v656 = vunpack.c.l.b16 %v220
    %v657 = vunpack.c.h.b16 %v220
    %v658 = vunpack.c.l.b16 %v221
    %v659 = vunpack.c.h.b16 %v221
    %v660 = vunpack.c.l.b16 %v222
    %v661 = vunpack.c.h.b16 %v222
    %v662 = vunpack.c.l.b16 %v223
    %v663 = vunpack.c.h.b16 %v223
    %v664 = vunpack.c.l.b16 %v224
    %v665 = vunpack.c.h.b16 %v224
    %v666 = vunpack.c.l.b16 %v225
    %v667 = vunpack.c.h.b16 %v225
    %v668 = vunpack.c.l.b16 %v226
    %v669 = vunpack.c.h.b16 %v226
    %v670 = vunpack.c.l.b16 %v227
    %v671 = vunpack.c.h.b16 %v227
    %v672 = vunpack.c.l.b16 %v228
    %v673 = vunpack.c.h.b16 %v228
    %v674 = vunpack.c.l.b16 %v229
    %v675 = vunpack.c.h.b16 %v229
    %v676 = vunpack.c.l.b16 %v230
    %v677 = vunpack.c.h.b16 %v230
    %v678 = vunpack.c.l.b16 %v231
    %v679 = vunpack.c.h.b16 %v231
    %v680 = vpack.c.b16 %v428, %v424
    %v681 = vpack.c.b16 %v429, %v425
    %v682 = vpack.c.b16 %v430, %v426
    %v683 = vpack.c.b16 %v431, %v427
    %v684 = vpack.c.b16 %v436, %v432
    %v685 = vpack.c.b16 %v437, %v433
    %v686 = vpack.c.b16 %v438, %v434
    %v687 = vpack.c.b16 %v439, %v435
    %v688 = vpack.c.b16 %v444, %v440
    %v689 = vpack.c.b16 %v445, %v441
    %v690 = vpack.c.b16 %v446, %v442
    %v691 = vpack.c.b16 %v447, %v443
    %v692 = vpack.c.b16 %v452, %v448
    %v693 = vpack.c.b16 %v453, %v449
    %v694 = vpack.c.b16 %v454, %v450
    %v695 = vpack.c.b16 %v455, %v451
    %v696 = vpack.c.b16 %v460, %v456
    %v697 = vpack.c.b16 %v461, %v457
    %v698 = vpack.c.b16 %v462, %v458
    %v699 = vpack.c.b16 %v463, %v459
    %v700 = vpack.c.b16 %v468, %v464
    %v701 = vpack.c.b16 %v469, %v465
    %v702 = vpack.c.b16 %v470, %v466
    %v703 = vpack.c.b16 %v471, %v467
    %v704 = vpack.c.b16 %v476, %v472
    %v705 = vpack.c.b16 %v477, %v473
    %v706 = vpack.c.b16 %v478, %v474
    %v707 = vpack.c.b16 %v479, %v475
    %v708 = vpack.c.b16 %v484, %v480
    %v709 = vpack.c.b16 %v485, %v481
    %v710 = vpack.c.b16 %v486, %v482
    %v711 = vpack.c.b16 %v487, %v483
    %v712 = vpack.c.b16 %v492, %v488
    %v713 = vpack.c.b16 %v493, %v489
    %v714 = vpack.c.b16 %v494, %v490
    %v715 = vpack.c.b16 %v495, %v491
    %v716 = vpack.c.b16 %v500, %v496
    %v717 = vpack.c.b16 %v501, %v497
    %v718 = vpack.c.b16 %v502, %v498
    %v719 = vpack.c.b16 %v503, %v499
    %v720 = vpack.c.b16 %v508, %v504
    %v721 = vpack.c.b16 %v509, %v505
    %v722 = vpack.c.b16 %v510, %v506
    %v723 = vpack.c.b16 %v511, %v507
    %v724 = vpack.c.b16 %v516, %v512
    %v725 = vpack.c.b16 %v517, %v513
    %v726 = vpack.c.b16 %v518, %v514
    %v727 = vpack.c.b16 %v519, %v515
    %v728 = vpack.c.b16 %v524, %v520
    %v729 = vpack.c.b16 %v525, %v521
    %v730 = vpack.c.b16 %v526, %v522
    %v731 = vpack.c.b16 %v527, %v523
    %v732 = vpack.c.b16 %v532, %v528
    %v733 = vpack.c.b16 %v533, %v529
    %v734 = vpack.c.b16 %v534, %v530
    %v735 = vpack.c.b16 %v535, %v531
    %v736 = vpack.c.b16 %v540, %v536
    %v737 = vpack.c.b16 %v541, %v537
    %v738 = vpack.c.b16 %v542, %v538
    %v739 = vpack.c.b16 %v543, %v539
    %v740 = vpack.c.b16 %v548, %v544
    %v741 = vpack.c.b16 %v549, %v545
    %v742 = vpack.c.b16 %v550, %v546
    %v743 = vpack.c.b16 %v551, %v547
    %v744 = vpack.c.b16 %v556, %v552
    %v745 = vpack.c.b16 %v557, %v553
    %v746 = vpack.c.b16 %v558, %v554
    %v747 = vpack.c.b16 %v559, %v555
    %v748 = vpack.c.b16 %v564, %v560
    %v749 = vpack.c.b16 %v565, %v561
    %v750 = vpack.c.b16 %v566, %v562
    %v751 = vpack.c.b16 %v567, %v563
    %v752 = vpack.c.b16 %v572, %v568
    %v753 = vpack.c.b16 %v573, %v569
    %v754 = vpack.c.b16 %v574, %v570
    %v755 = vpack.c.b16 %v575, %v571
    %v756 = vpack.c.b16 %v580, %v576
    %v757 = vpack.c.b16 %v581, %v577
    %v758 = vpack.c.b16 %v582, %v578
    %v759 = vpack.c.b16 %v583, %v579
    %v760 = vpack.c.b16 %v588, %v584
    %v761 = vpack.c.b16 %v589, %v585
    %v762 = vpack.c.b16 %v590, %v586
    %v763 = vpack.c.b16 %v591, %v587
    %v764 = vpack.c.b16 %v596, %v592
    %v765 = vpack.c.b16 %v597, %v593
    %v766 = vpack.c.b16 %v598, %v594
    %v767 = vpack.c.b16 %v599, %v595
    %v768 = vpack.c.b16 %v604, %v600
    %v769 = vpack.c.b16 %v605, %v601
    %v770 = vpack.c.b16 %v606, %v602
    %v771 = vpack.c.b16 %v607, %v603
    %v772 = vpack.c.b16 %v612, %v608
    %v773 = vpack.c.b16 %v613, %v609
    %v774 = vpack.c.b16 %v614, %v610
    %v775 = vpack.c.b16 %v615, %v611
    %v776 = vpack.c.b16 %v620, %v616
    %v777 = vpack.c.b16 %v621, %v617
    %v778 = vpack.c.b16 %v622, %v618
    %v779 = vpack.c.b16 %v623, %v619
    %v780 = vpack.c.b16 %v628, %v624
    %v781 = vpack.c.b16 %v629, %v625
    %v782 = vpack.c.b16 %v630, %v626
    %v783 = vpack.c.b16 %v631, %v627
    %v784 = vpack.c.b16 %v636, %v632
    %v785 = vpack.c.b16 %v637, %v633
    %v786 = vpack.c.b16 %v638, %v634
    %v787 = vpack.c.b16 %v639, %v635
    %v788 = vpack.c.b16 %v644, %v640
    %v789 = vpack.c.b16 %v645, %v641
    %v790 = vpack.c.b16 %v646, %v642
    %v791 = vpack.c.b16 %v647, %v643
    %v792 = vpack.c.b16 %v652, %v648
    %v793 = vpack.c.b16 %v653, %v649
    %v794 = vpack.c.b16 %v654, %v650
    %v795 = vpack.c.b16 %v655, %v651
    %v796 = vpack.c.b16 %v660, %v656
    %v797 = vpack.c.b16 %v661, %v657
    %v798 = vpack.c.b16 %v662, %v658
    %v799 = vpack.c.b16 %v663, %v659
    %v800 = vpack.c.b16 %v668, %v664
    %v801 = vpack.c.b16 %v669, %v665
    %v802 = vpack.c.b16 %v670, %v666
    %v803 = vpack.c.b16 %v671, %v667
    %v804 = vpack.c.b16 %v676, %v672
    %v805 = vpack.c.b16 %v677, %v673
    %v806 = vpack.c.b16 %v678, %v674
    %v807 = vpack.c.b16 %v679, %v675
    %v1000 = vunpack.c.l.b16 %v232
    %v1001 = vunpack.c.l.b16 %v233
    %v1002 = vunpack.c.l.b16 %v234
    %v1003 = vunpack.c.l.b16 %v235
    %v1004 = vunpack.c.l.b16 %v236
    %v1005 = vunpack.c.l.b16 %v237
    %v1006 = vunpack.c.l.b16 %v238
    %v1007 = vunpack.c.l.b16 %v239
    %v1008 = vunpack.c.l.b16 %v240
    %v1009 = vunpack.c.l.b16 %v241
    %v1010 = vunpack.c.l.b16 %v242
    %v1011 = vunpack.c.l.b16 %v243
    %v1012 = vunpack.c.l.b16 %v244
    %v1013 = vunpack.c.l.b16 %v245
    %v1014 = vunpack.c.l.b16 %v246
    %v1015 = vunpack.c.l.b16 %v247
    %v1016 = vunpack.c.l.b16 %v248
    %v1017 = vunpack.c.l.b16 %v249
    %v1018 = vunpack.c.l.b16 %v250
    %v1019 = vunpack.c.l.b16 %v251
    %v1020 = vunpack.c.l.b16 %v252
    %v1021 = vunpack.c.l.b16 %v253
    %v1022 = vunpack.c.l.b16 %v254
    %v1023 = vunpack.c.l.b16 %v255
    %v1024 = vunpack.c.l.b16 %v256
    %v1025 = vunpack.c.l.b16 %v257
    %v1026 = vunpack.c.l.b16 %v258
    %v1027 = vunpack.c.l.b16 %v259
    %v1028 = vunpack.c.l.b16 %v260
    %v1029 = vunpack.c.l.b16 %v261
    %v1030 = vunpack.c.l.b16 %v262
    %v1031 = vunpack.c.l.b16 %v263
    %v1032 = vunpack.c.l.b16 %v264
    %v1033 = vunpack.c.l.b16 %v265
    %v1034 = vunpack.c.l.b16 %v266
    %v1035 = vunpack.c.l.b16 %v267
    %v1036 = vunpack.c.l.b16 %v268
    %v1037 = vunpack.c.l.b16 %v269
    %v1038 = vunpack.c.l.b16 %v270
    %v1039 = vunpack.c.l.b16 %v271
    %v1040 = vunpack.c.l.b16 %v272
    %v1041 = vunpack.c.l.b16 %v273
    %v1042 = vunpack.c.l.b16 %v274
    %v1043 = vunpack.c.l.b16 %v275
    %v1044 = vunpack.c.l.b16 %v276
    %v1045 = vunpack.c.l.b16 %v277
    %v1046 = vunpack.c.l.b16 %v278
    %v1047 = vunpack.c.l.b16 %v279
    %v1048 = vunpack.c.l.b16 %v280
    %v1049 = vunpack.c.l.b16 %v281
    %v1050 = vunpack.c.l.b16 %v282
    %v1051 = vunpack.c.l.b16 %v283
    %v1052 = vunpack.c.l.b16 %v284
    %v1053 = vunpack.c.l.b16 %v285
    %v1054 = vunpack.c.l.b16 %v286
    %v1055 = vunpack.c.l.b16 %v287
    %v1056 = vunpack.c.l.b16 %v288
    %v1057 = vunpack.c.l.b16 %v289
    %v1058 = vunpack.c.l.b16 %v290
    %v1059 = vunpack.c.l.b16 %v291
    %v1060 = vunpack.c.l.b16 %v292
    %v1061 = vunpack.c.l.b16 %v293
    %v1062 = vunpack.c.l.b16 %v294
    %v1063 = vunpack.c.l.b16 %v295
    %v1064 = vpack.c.b16 %v1001, %v1000
    %v1065 = vpack.c.b16 %v1003, %v1002
    %v1066 = vpack.c.b16 %v1005, %v1004
    %v1067 = vpack.c.b16 %v1007, %v1006
    %v1068 = vpack.c.b16 %v1009, %v1008
    %v1069 = vpack.c.b16 %v1011, %v1010
    %v1070 = vpack.c.b16 %v1013, %v1012
    %v1071 = vpack.c.b16 %v1015, %v1014
    %v1072 = vpack.c.b16 %v1017, %v1016
    %v1073 = vpack.c.b16 %v1019, %v1018
    %v1074 = vpack.c.b16 %v1021, %v1020
    %v1075 = vpack.c.b16 %v1023, %v1022
    %v1076 = vpack.c.b16 %v1025, %v1024
    %v1077 = vpack.c.b16 %v1027, %v1026
    %v1078 = vpack.c.b16 %v1029, %v1028
    %v1079 = vpack.c.b16 %v1031, %v1030
    %v1080 = vpack.c.b16 %v1033, %v1032
    %v1081 = vpack.c.b16 %v1035, %v1034
    %v1082 = vpack.c.b16 %v1037, %v1036
    %v1083 = vpack.c.b16 %v1039, %v1038
    %v1084 = vpack.c.b16 %v1041, %v1040
    %v1085 = vpack.c.b16 %v1043, %v1042
    %v1086 = vpack.c.b16 %v1045, %v1044
    %v1087 = vpack.c.b16 %v1047, %v1046
    %v1088 = vpack.c.b16 %v1049, %v1048
    %v1089 = vpack.c.b16 %v1051, %v1050
    %v1090 = vpack.c.b16 %v1053, %v1052
    %v1091 = vpack.c.b16 %v1055, %v1054
    %v1092 = vpack.c.b16 %v1057, %v1056
    %v1093 = vpack.c.b16 %v1059, %v1058
    %v1094 = vpack.c.b16 %v1061, %v1060
    %v1095 = vpack.c.b16 %v1063, %v1062
    %1128 = vmatprep.subr.bf16.mxu0 0
    %1129 = vmatpush1.bf16.msra.mxu0 %v1064
    %1130 = vmatprep.subr.bf16.mxu0 0
    %1131 = vmatpush1.bf16.msra.mxu0 %v1065
    %1132 = vmatprep.subr.bf16.mxu0 0
    %1133 = vmatpush1.bf16.msra.mxu0 %v1066
    %1134 = vmatprep.subr.bf16.mxu0 0
    %1135 = vmatpush1.bf16.msra.mxu0 %v1067
    %1136 = vmatprep.subr.bf16.mxu0 0
    %1137 = vmatpush1.bf16.msra.mxu0 %v1068
    %1138 = vmatprep.subr.bf16.mxu0 0
    %1139 = vmatpush1.bf16.msra.mxu0 %v1069
    %1140 = vmatprep.subr.bf16.mxu0 0
    %1141 = vmatpush1.bf16.msra.mxu0 %v1070
    %1142 = vmatprep.subr.bf16.mxu0 0
    %1143 = vmatpush1.bf16.msra.mxu0 %v1071
    %1144 = vmatprep.subr.bf16.mxu0 0
    %1145 = vmatpush1.bf16.msra.mxu0 %v1072
    %1146 = vmatprep.subr.bf16.mxu0 0
    %1147 = vmatpush1.bf16.msra.mxu0 %v1073
    %1148 = vmatprep.subr.bf16.mxu0 0
    %1149 = vmatpush1.bf16.msra.mxu0 %v1074
    %1150 = vmatprep.subr.bf16.mxu0 0
    %1151 = vmatpush1.bf16.msra.mxu0 %v1075
    %1152 = vmatprep.subr.bf16.mxu0 0
    %1153 = vmatpush1.bf16.msra.mxu0 %v1076
    %1154 = vmatprep.subr.bf16.mxu0 0
    %1155 = vmatpush1.bf16.msra.mxu0 %v1077
    %1156 = vmatprep.subr.bf16.mxu0 0
    %1157 = vmatpush1.bf16.msra.mxu0 %v1078
    %1158 = vmatprep.subr.bf16.mxu0 0
    %1159 = vmatpush1.bf16.msra.mxu0 %v1079
    %1160 = vmatprep.mubr.bf16.mxu0 %v681
    %1161 = vmatmul.mubr.bf16.gmra.mrb[0].mxu0 %v680
    %v1162 = vpop.f32.mrb[0].mxu0
    %v1163 = vadd.f32 0.0, %v1162
    %v1164 = vpop.f32.mrb[0].mxu0
    %v1165 = vpop.f32.mrb[0].mxu0
    %v1166 = vadd.f32 0.0, %v1165
    %v1167 = vpop.f32.mrb[0].mxu0
    %1168 = vmatprep.mubr.bf16.mxu0 %v685
    %1169 = vmatmul.mubr.bf16.gmra.mrb[0].mxu0 %v684
    %v1170 = vpop.f32.mrb[0].mxu0
    %v1171 = vadd.f32 0.0, %v1170
    %v1172 = vpop.f32.mrb[0].mxu0
    %v1173 = vpop.f32.mrb[0].mxu0
    %v1174 = vadd.f32 0.0, %v1173
    %v1175 = vpop.f32.mrb[0].mxu0
    %1176 = vmatprep.mubr.bf16.mxu0 %v689
    %1177 = vmatmul.mubr.bf16.gmra.mrb[0].mxu0 %v688
    %v1178 = vpop.f32.mrb[0].mxu0
    %v1179 = vadd.f32 0.0, %v1178
    %v1180 = vpop.f32.mrb[0].mxu0
    %v1181 = vpop.f32.mrb[0].mxu0
    %v1182 = vadd.f32 0.0, %v1181
    %v1183 = vpop.f32.mrb[0].mxu0
    %1184 = vmatprep.mubr.bf16.mxu0 %v693
    %1185 = vmatmul.mubr.bf16.gmra.mrb[0].mxu0 %v692
    %v1186 = vpop.f32.mrb[0].mxu0
    %v1187 = vadd.f32 0.0, %v1186
    %v1188 = vpop.f32.mrb[0].mxu0
    %v1189 = vpop.f32.mrb[0].mxu0
    %v1190 = vadd.f32 0.0, %v1189
    %v1191 = vpop.f32.mrb[0].mxu0
    %1192 = vmatprep.mubr.bf16.mxu0 %v697
    %1193 = vmatmul.mubr.bf16.gmra.mrb[0].mxu0 %v696
    %v1194 = vpop.f32.mrb[0].mxu0
    %v1195 = vadd.f32 0.0, %v1194
    %v1196 = vpop.f32.mrb[0].mxu0
    %v1197 = vpop.f32.mrb[0].mxu0
    %v1198 = vadd.f32 0.0, %v1197
    %v1199 = vpop.f32.mrb[0].mxu0
    %1200 = vmatprep.mubr.bf16.mxu0 %v701
    %1201 = vmatmul.mubr.bf16.gmra.mrb[0].mxu0 %v700
    %v1202 = vpop.f32.mrb[0].mxu0
    %v1203 = vadd.f32 0.0, %v1202
    %v1204 = vpop.f32.mrb[0].mxu0
    %v1205 = vpop.f32.mrb[0].mxu0
    %v1206 = vadd.f32 0.0, %v1205
    %v1207 = vpop.f32.mrb[0].mxu0
    %1208 = vmatprep.mubr.bf16.mxu0 %v705
    %1209 = vmatmul.mubr.bf16.gmra.mrb[0].mxu0 %v704
    %v1210 = vpop.f32.mrb[0].mxu0
    %v1211 = vadd.f32 0.0, %v1210
    %v1212 = vpop.f32.mrb[0].mxu0
    %v1213 = vpop.f32.mrb[0].mxu0
    %v1214 = vadd.f32 0.0, %v1213
    %v1215 = vpop.f32.mrb[0].mxu0
    %1216 = vmatprep.mubr.bf16.mxu0 %v709
    %1217 = vmatmul.mubr.bf16.gmra.mrb[0].mxu0 %v708
    %v1218 = vpop.f32.mrb[0].mxu0
    %v1219 = vadd.f32 0.0, %v1218
    %v1220 = vpop.f32.mrb[0].mxu0
    %v1221 = vpop.f32.mrb[0].mxu0
    %v1222 = vadd.f32 0.0, %v1221
    %v1223 = vpop.f32.mrb[0].mxu0
    %1224 = vmatprep.mubr.bf16.mxu0 %v713
    %1225 = vmatmul.mubr.bf16.gmra.mrb[0].mxu0 %v712
    %v1226 = vpop.f32.mrb[0].mxu0
    %v1227 = vadd.f32 0.0, %v1226
    %v1228 = vpop.f32.mrb[0].mxu0
    %v1229 = vpop.f32.mrb[0].mxu0
    %v1230 = vadd.f32 0.0, %v1229
    %v1231 = vpop.f32.mrb[0].mxu0
    %1232 = vmatprep.mubr.bf16.mxu0 %v717
    %1233 = vmatmul.mubr.bf16.gmra.mrb[0].mxu0 %v716
    %v1234 = vpop.f32.mrb[0].mxu0
    %v1235 = vadd.f32 0.0, %v1234
    %v1236 = vpop.f32.mrb[0].mxu0
    %v1237 = vpop.f32.mrb[0].mxu0
    %v1238 = vadd.f32 0.0, %v1237
    %v1239 = vpop.f32.mrb[0].mxu0
    %1240 = vmatprep.mubr.bf16.mxu0 %v721
    %1241 = vmatmul.mubr.bf16.gmra.mrb[0].mxu0 %v720
    %v1242 = vpop.f32.mrb[0].mxu0
    %v1243 = vadd.f32 0.0, %v1242
    %v1244 = vpop.f32.mrb[0].mxu0
    %v1245 = vpop.f32.mrb[0].mxu0
    %v1246 = vadd.f32 0.0, %v1245
    %v1247 = vpop.f32.mrb[0].mxu0
    %1248 = vmatprep.mubr.bf16.mxu0 %v725
    %1249 = vmatmul.mubr.bf16.gmra.mrb[0].mxu0 %v724
    %v1250 = vpop.f32.mrb[0].mxu0
    %v1251 = vadd.f32 0.0, %v1250
    %v1252 = vpop.f32.mrb[0].mxu0
    %v1253 = vpop.f32.mrb[0].mxu0
    %v1254 = vadd.f32 0.0, %v1253
    %v1255 = vpop.f32.mrb[0].mxu0
    %1256 = vmatprep.mubr.bf16.mxu0 %v729
    %1257 = vmatmul.mubr.bf16.gmra.mrb[0].mxu0 %v728
    %v1258 = vpop.f32.mrb[0].mxu0
    %v1259 = vadd.f32 0.0, %v1258
    %v1260 = vpop.f32.mrb[0].mxu0
    %v1261 = vpop.f32.mrb[0].mxu0
    %v1262 = vadd.f32 0.0, %v1261
    %v1263 = vpop.f32.mrb[0].mxu0
    %1264 = vmatprep.mubr.bf16.mxu0 %v733
    %1265 = vmatmul.mubr.bf16.gmra.mrb[0].mxu0 %v732
    %v1266 = vpop.f32.mrb[0].mxu0
    %v1267 = vadd.f32 0.0, %v1266
    %v1268 = vpop.f32.mrb[0].mxu0
    %v1269 = vpop.f32.mrb[0].mxu0
    %v1270 = vadd.f32 0.0, %v1269
    %v1271 = vpop.f32.mrb[0].mxu0
    %1272 = vmatprep.mubr.bf16.mxu0 %v737
    %1273 = vmatmul.mubr.bf16.gmra.mrb[0].mxu0 %v736
    %v1274 = vpop.f32.mrb[0].mxu0
    %v1275 = vadd.f32 0.0, %v1274
    %v1276 = vpop.f32.mrb[0].mxu0
    %v1277 = vpop.f32.mrb[0].mxu0
    %v1278 = vadd.f32 0.0, %v1277
    %v1279 = vpop.f32.mrb[0].mxu0
    %1280 = vmatprep.mubr.bf16.mxu0 %v741
    %1281 = vmatmul.mubr.bf16.gmra.mrb[0].mxu0 %v740
    %v1282 = vpop.f32.mrb[0].mxu0
    %v1283 = vadd.f32 0.0, %v1282
    %v1284 = vpop.f32.mrb[0].mxu0
    %v1285 = vpop.f32.mrb[0].mxu0
    %v1286 = vadd.f32 0.0, %v1285
    %v1287 = vpop.f32.mrb[0].mxu0
    %1288 = vmatprep.mubr.bf16.mxu0 %v745
    %1289 = vmatmul.mubr.bf16.gmra.mrb[0].mxu0 %v744
    %v1290 = vpop.f32.mrb[0].mxu0
    %v1291 = vadd.f32 0.0, %v1290
    %v1292 = vpop.f32.mrb[0].mxu0
    %v1293 = vpop.f32.mrb[0].mxu0
    %v1294 = vadd.f32 0.0, %v1293
    %v1295 = vpop.f32.mrb[0].mxu0
    %1296 = vmatprep.mubr.bf16.mxu0 %v749
    %1297 = vmatmul.mubr.bf16.gmra.mrb[0].mxu0 %v748
    %v1298 = vpop.f32.mrb[0].mxu0
    %v1299 = vadd.f32 0.0, %v1298
    %v1300 = vpop.f32.mrb[0].mxu0
    %v1301 = vpop.f32.mrb[0].mxu0
    %v1302 = vadd.f32 0.0, %v1301
    %v1303 = vpop.f32.mrb[0].mxu0
    %1304 = vmatprep.mubr.bf16.mxu0 %v753
    %1305 = vmatmul.mubr.bf16.gmra.mrb[0].mxu0 %v752
    %v1306 = vpop.f32.mrb[0].mxu0
    %v1307 = vadd.f32 0.0, %v1306
    %v1308 = vpop.f32.mrb[0].mxu0
    %v1309 = vpop.f32.mrb[0].mxu0
    %v1310 = vadd.f32 0.0, %v1309
    %v1311 = vpop.f32.mrb[0].mxu0
    %1312 = vmatprep.mubr.bf16.mxu0 %v757
    %1313 = vmatmul.mubr.bf16.gmra.mrb[0].mxu0 %v756
    %v1314 = vpop.f32.mrb[0].mxu0
    %v1315 = vadd.f32 0.0, %v1314
    %v1316 = vpop.f32.mrb[0].mxu0
    %v1317 = vpop.f32.mrb[0].mxu0
    %v1318 = vadd.f32 0.0, %v1317
    %v1319 = vpop.f32.mrb[0].mxu0
    %1320 = vmatprep.mubr.bf16.mxu0 %v761
    %1321 = vmatmul.mubr.bf16.gmra.mrb[0].mxu0 %v760
    %v1322 = vpop.f32.mrb[0].mxu0
    %v1323 = vadd.f32 0.0, %v1322
    %v1324 = vpop.f32.mrb[0].mxu0
    %v1325 = vpop.f32.mrb[0].mxu0
    %v1326 = vadd.f32 0.0, %v1325
    %v1327 = vpop.f32.mrb[0].mxu0
    %1328 = vmatprep.mubr.bf16.mxu0 %v765
    %1329 = vmatmul.mubr.bf16.gmra.mrb[0].mxu0 %v764
    %v1330 = vpop.f32.mrb[0].mxu0
    %v1331 = vadd.f32 0.0, %v1330
    %v1332 = vpop.f32.mrb[0].mxu0
    %v1333 = vpop.f32.mrb[0].mxu0
    %v1334 = vadd.f32 0.0, %v1333
    %v1335 = vpop.f32.mrb[0].mxu0
    %1336 = vmatprep.mubr.bf16.mxu0 %v769
    %1337 = vmatmul.mubr.bf16.gmra.mrb[0].mxu0 %v768
    %v1338 = vpop.f32.mrb[0].mxu0
    %v1339 = vadd.f32 0.0, %v1338
    %v1340 = vpop.f32.mrb[0].mxu0
    %v1341 = vpop.f32.mrb[0].mxu0
    %v1342 = vadd.f32 0.0, %v1341
    %v1343 = vpop.f32.mrb[0].mxu0
    %1344 = vmatprep.mubr.bf16.mxu0 %v773
    %1345 = vmatmul.mubr.bf16.gmra.mrb[0].mxu0 %v772
    %v1346 = vpop.f32.mrb[0].mxu0
    %v1347 = vadd.f32 0.0, %v1346
    %v1348 = vpop.f32.mrb[0].mxu0
    %v1349 = vpop.f32.mrb[0].mxu0
    %v1350 = vadd.f32 0.0, %v1349
    %v1351 = vpop.f32.mrb[0].mxu0
    %1352 = vmatprep.mubr.bf16.mxu0 %v777
    %1353 = vmatmul.mubr.bf16.gmra.mrb[0].mxu0 %v776
    %v1354 = vpop.f32.mrb[0].mxu0
    %v1355 = vadd.f32 0.0, %v1354
    %v1356 = vpop.f32.mrb[0].mxu0
    %v1357 = vpop.f32.mrb[0].mxu0
    %v1358 = vadd.f32 0.0, %v1357
    %v1359 = vpop.f32.mrb[0].mxu0
    %1360 = vmatprep.mubr.bf16.mxu0 %v781
    %1361 = vmatmul.mubr.bf16.gmra.mrb[0].mxu0 %v780
    %v1362 = vpop.f32.mrb[0].mxu0
    %v1363 = vadd.f32 0.0, %v1362
    %v1364 = vpop.f32.mrb[0].mxu0
    %v1365 = vpop.f32.mrb[0].mxu0
    %v1366 = vadd.f32 0.0, %v1365
    %v1367 = vpop.f32.mrb[0].mxu0
    %1368 = vmatprep.mubr.bf16.mxu0 %v785
    %1369 = vmatmul.mubr.bf16.gmra.mrb[0].mxu0 %v784
    %v1370 = vpop.f32.mrb[0].mxu0
    %v1371 = vadd.f32 0.0, %v1370
    %v1372 = vpop.f32.mrb[0].mxu0
    %v1373 = vpop.f32.mrb[0].mxu0
    %v1374 = vadd.f32 0.0, %v1373
    %v1375 = vpop.f32.mrb[0].mxu0
    %1376 = vmatprep.mubr.bf16.mxu0 %v789
    %1377 = vmatmul.mubr.bf16.gmra.mrb[0].mxu0 %v788
    %v1378 = vpop.f32.mrb[0].mxu0
    %v1379 = vadd.f32 0.0, %v1378
    %v1380 = vpop.f32.mrb[0].mxu0
    %v1381 = vpop.f32.mrb[0].mxu0
    %v1382 = vadd.f32 0.0, %v1381
    %v1383 = vpop.f32.mrb[0].mxu0
    %1384 = vmatprep.mubr.bf16.mxu0 %v793
    %1385 = vmatmul.mubr.bf16.gmra.mrb[0].mxu0 %v792
    %v1386 = vpop.f32.mrb[0].mxu0
    %v1387 = vadd.f32 0.0, %v1386
    %v1388 = vpop.f32.mrb[0].mxu0
    %v1389 = vpop.f32.mrb[0].mxu0
    %v1390 = vadd.f32 0.0, %v1389
    %v1391 = vpop.f32.mrb[0].mxu0
    %1392 = vmatprep.mubr.bf16.mxu0 %v797
    %1393 = vmatmul.mubr.bf16.gmra.mrb[0].mxu0 %v796
    %v1394 = vpop.f32.mrb[0].mxu0
    %v1395 = vadd.f32 0.0, %v1394
    %v1396 = vpop.f32.mrb[0].mxu0
    %v1397 = vpop.f32.mrb[0].mxu0
    %v1398 = vadd.f32 0.0, %v1397
    %v1399 = vpop.f32.mrb[0].mxu0
    %1400 = vmatprep.mubr.bf16.mxu0 %v801
    %1401 = vmatmul.mubr.bf16.gmra.mrb[0].mxu0 %v800
    %v1402 = vpop.f32.mrb[0].mxu0
    %v1403 = vadd.f32 0.0, %v1402
    %v1404 = vpop.f32.mrb[0].mxu0
    %v1405 = vpop.f32.mrb[0].mxu0
    %v1406 = vadd.f32 0.0, %v1405
    %v1407 = vpop.f32.mrb[0].mxu0
    %1408 = vmatprep.mubr.bf16.mxu0 %v805
    %1409 = vmatmul.mubr.bf16.gmra.mrb[0].mxu0 %v804
    %v1410 = vpop.f32.mrb[0].mxu0
    %v1411 = vadd.f32 0.0, %v1410
    %v1412 = vpop.f32.mrb[0].mxu0
    %v1413 = vpop.f32.mrb[0].mxu0
    %v1414 = vadd.f32 0.0, %v1413
    %v1415 = vpop.f32.mrb[0].mxu0
    %1416 = vdwg.mxu0
    %1417 = vmatprep.subr.bf16.mxu0 0
    %1418 = vmatpush1.bf16.msra.mxu0 %v1080
    %1419 = vmatprep.subr.bf16.mxu0 0
    %1420 = vmatpush1.bf16.msra.mxu0 %v1081
    %1421 = vmatprep.subr.bf16.mxu0 0
    %1422 = vmatpush1.bf16.msra.mxu0 %v1082
    %1423 = vmatprep.subr.bf16.mxu0 0
    %1424 = vmatpush1.bf16.msra.mxu0 %v1083
    %1425 = vmatprep.subr.bf16.mxu0 0
    %1426 = vmatpush1.bf16.msra.mxu0 %v1084
    %1427 = vmatprep.subr.bf16.mxu0 0
    %1428 = vmatpush1.bf16.msra.mxu0 %v1085
    %1429 = vmatprep.subr.bf16.mxu0 0
    %1430 = vmatpush1.bf16.msra.mxu0 %v1086
    %1431 = vmatprep.subr.bf16.mxu0 0
    %1432 = vmatpush1.bf16.msra.mxu0 %v1087
    %1433 = vmatprep.subr.bf16.mxu0 0
    %1434 = vmatpush1.bf16.msra.mxu0 %v1088
    %1435 = vmatprep.subr.bf16.mxu0 0
    %1436 = vmatpush1.bf16.msra.mxu0 %v1089
    %1437 = vmatprep.subr.bf16.mxu0 0
    %1438 = vmatpush1.bf16.msra.mxu0 %v1090
    %1439 = vmatprep.subr.bf16.mxu0 0
    %1440 = vmatpush1.bf16.msra.mxu0 %v1091
    %1441 = vmatprep.subr.bf16.mxu0 0
    %1442 = vmatpush1.bf16.msra.mxu0 %v1092
    %1443 = vmatprep.subr.bf16.mxu0 0
    %1444 = vmatpush1.bf16.msra.mxu0 %v1093
    %1445 = vmatprep.subr.bf16.mxu0 0
    %1446 = vmatpush1.bf16.msra.mxu0 %v1094
    %1447 = vmatprep.subr.bf16.mxu0 0
    %1448 = vmatpush1.bf16.msra.mxu0 %v1095
    %1449 = vmatprep.mubr.bf16.mxu0 %v683
    %1450 = vmatmul.mubr.bf16.gmra.mrb[0].mxu0 %v682
    %v1451 = vpop.f32.mrb[0].mxu0
    %v1452 = vadd.f32 %v1163, %v1451
    %v1453 = vpop.f32.mrb[0].mxu0
    %v1454 = vpop.f32.mrb[0].mxu0
    %v1455 = vadd.f32 %v1166, %v1454
    %v1456 = vpop.f32.mrb[0].mxu0
    %1457 = vmatprep.mubr.bf16.mxu0 %v687
    %1458 = vmatmul.mubr.bf16.gmra.mrb[0].mxu0 %v686
    %v1459 = vpop.f32.mrb[0].mxu0
    %v1460 = vadd.f32 %v1171, %v1459
    %v1461 = vpop.f32.mrb[0].mxu0
    %v1462 = vpop.f32.mrb[0].mxu0
    %v1463 = vadd.f32 %v1174, %v1462
    %v1464 = vpop.f32.mrb[0].mxu0
    %1465 = vmatprep.mubr.bf16.mxu0 %v691
    %1466 = vmatmul.mubr.bf16.gmra.mrb[0].mxu0 %v690
    %v1467 = vpop.f32.mrb[0].mxu0
    %v1468 = vadd.f32 %v1179, %v1467
    %v1469 = vpop.f32.mrb[0].mxu0
    %v1470 = vpop.f32.mrb[0].mxu0
    %v1471 = vadd.f32 %v1182, %v1470
    %v1472 = vpop.f32.mrb[0].mxu0
    %1473 = vmatprep.mubr.bf16.mxu0 %v695
    %1474 = vmatmul.mubr.bf16.gmra.mrb[0].mxu0 %v694
    %v1475 = vpop.f32.mrb[0].mxu0
    %v1476 = vadd.f32 %v1187, %v1475
    %v1477 = vpop.f32.mrb[0].mxu0
    %v1478 = vpop.f32.mrb[0].mxu0
    %v1479 = vadd.f32 %v1190, %v1478
    %v1480 = vpop.f32.mrb[0].mxu0
    %1481 = vmatprep.mubr.bf16.mxu0 %v699
    %1482 = vmatmul.mubr.bf16.gmra.mrb[0].mxu0 %v698
    %v1483 = vpop.f32.mrb[0].mxu0
    %v1484 = vadd.f32 %v1195, %v1483
    %v1485 = vpop.f32.mrb[0].mxu0
    %v1486 = vpop.f32.mrb[0].mxu0
    %v1487 = vadd.f32 %v1198, %v1486
    %v1488 = vpop.f32.mrb[0].mxu0
    %1489 = vmatprep.mubr.bf16.mxu0 %v703
    %1490 = vmatmul.mubr.bf16.gmra.mrb[0].mxu0 %v702
    %v1491 = vpop.f32.mrb[0].mxu0
    %v1492 = vadd.f32 %v1203, %v1491
    %v1493 = vpop.f32.mrb[0].mxu0
    %v1494 = vpop.f32.mrb[0].mxu0
    %v1495 = vadd.f32 %v1206, %v1494
    %v1496 = vpop.f32.mrb[0].mxu0
    %1497 = vmatprep.mubr.bf16.mxu0 %v707
    %1498 = vmatmul.mubr.bf16.gmra.mrb[0].mxu0 %v706
    %v1499 = vpop.f32.mrb[0].mxu0
    %v1500 = vadd.f32 %v1211, %v1499
    %v1501 = vpop.f32.mrb[0].mxu0
    %v1502 = vpop.f32.mrb[0].mxu0
    %v1503 = vadd.f32 %v1214, %v1502
    %v1504 = vpop.f32.mrb[0].mxu0
    %1505 = vmatprep.mubr.bf16.mxu0 %v711
    %1506 = vmatmul.mubr.bf16.gmra.mrb[0].mxu0 %v710
    %v1507 = vpop.f32.mrb[0].mxu0
    %v1508 = vadd.f32 %v1219, %v1507
    %v1509 = vpop.f32.mrb[0].mxu0
    %v1510 = vpop.f32.mrb[0].mxu0
    %v1511 = vadd.f32 %v1222, %v1510
    %v1512 = vpop.f32.mrb[0].mxu0
    %1513 = vmatprep.mubr.bf16.mxu0 %v715
    %1514 = vmatmul.mubr.bf16.gmra.mrb[0].mxu0 %v714
    %v1515 = vpop.f32.mrb[0].mxu0
    %v1516 = vadd.f32 %v1227, %v1515
    %v1517 = vpop.f32.mrb[0].mxu0
    %v1518 = vpop.f32.mrb[0].mxu0
    %v1519 = vadd.f32 %v1230, %v1518
    %v1520 = vpop.f32.mrb[0].mxu0
    %1521 = vmatprep.mubr.bf16.mxu0 %v719
    %1522 = vmatmul.mubr.bf16.gmra.mrb[0].mxu0 %v718
    %v1523 = vpop.f32.mrb[0].mxu0
    %v1524 = vadd.f32 %v1235, %v1523
    %v1525 = vpop.f32.mrb[0].mxu0
    %v1526 = vpop.f32.mrb[0].mxu0
    %v1527 = vadd.f32 %v1238, %v1526
    %v1528 = vpop.f32.mrb[0].mxu0
    %1529 = vmatprep.mubr.bf16.mxu0 %v723
    %1530 = vmatmul.mubr.bf16.gmra.mrb[0].mxu0 %v722
    %v1531 = vpop.f32.mrb[0].mxu0
    %v1532 = vadd.f32 %v1243, %v1531
    %v1533 = vpop.f32.mrb[0].mxu0
    %v1534 = vpop.f32.mrb[0].mxu0
    %v1535 = vadd.f32 %v1246, %v1534
    %v1536 = vpop.f32.mrb[0].mxu0
    %1537 = vmatprep.mubr.bf16.mxu0 %v727
    %1538 = vmatmul.mubr.bf16.gmra.mrb[0].mxu0 %v726
    %v1539 = vpop.f32.mrb[0].mxu0
    %v1540 = vadd.f32 %v1251, %v1539
    %v1541 = vpop.f32.mrb[0].mxu0
    %v1542 = vpop.f32.mrb[0].mxu0
    %v1543 = vadd.f32 %v1254, %v1542
    %v1544 = vpop.f32.mrb[0].mxu0
    %1545 = vmatprep.mubr.bf16.mxu0 %v731
    %1546 = vmatmul.mubr.bf16.gmra.mrb[0].mxu0 %v730
    %v1547 = vpop.f32.mrb[0].mxu0
    %v1548 = vadd.f32 %v1259, %v1547
    %v1549 = vpop.f32.mrb[0].mxu0
    %v1550 = vpop.f32.mrb[0].mxu0
    %v1551 = vadd.f32 %v1262, %v1550
    %v1552 = vpop.f32.mrb[0].mxu0
    %1553 = vmatprep.mubr.bf16.mxu0 %v735
    %1554 = vmatmul.mubr.bf16.gmra.mrb[0].mxu0 %v734
    %v1555 = vpop.f32.mrb[0].mxu0
    %v1556 = vadd.f32 %v1267, %v1555
    %v1557 = vpop.f32.mrb[0].mxu0
    %v1558 = vpop.f32.mrb[0].mxu0
    %v1559 = vadd.f32 %v1270, %v1558
    %v1560 = vpop.f32.mrb[0].mxu0
    %1561 = vmatprep.mubr.bf16.mxu0 %v739
    %1562 = vmatmul.mubr.bf16.gmra.mrb[0].mxu0 %v738
    %v1563 = vpop.f32.mrb[0].mxu0
    %v1564 = vadd.f32 %v1275, %v1563
    %v1565 = vpop.f32.mrb[0].mxu0
    %v1566 = vpop.f32.mrb[0].mxu0
    %v1567 = vadd.f32 %v1278, %v1566
    %v1568 = vpop.f32.mrb[0].mxu0
    %1569 = vmatprep.mubr.bf16.mxu0 %v743
    %1570 = vmatmul.mubr.bf16.gmra.mrb[0].mxu0 %v742
    %v1571 = vpop.f32.mrb[0].mxu0
    %v1572 = vadd.f32 %v1283, %v1571
    %v1573 = vpop.f32.mrb[0].mxu0
    %v1574 = vpop.f32.mrb[0].mxu0
    %v1575 = vadd.f32 %v1286, %v1574
    %v1576 = vpop.f32.mrb[0].mxu0
    %1577 = vmatprep.mubr.bf16.mxu0 %v747
    %1578 = vmatmul.mubr.bf16.gmra.mrb[0].mxu0 %v746
    %v1579 = vpop.f32.mrb[0].mxu0
    %v1580 = vadd.f32 %v1291, %v1579
    %v1581 = vpop.f32.mrb[0].mxu0
    %v1582 = vpop.f32.mrb[0].mxu0
    %v1583 = vadd.f32 %v1294, %v1582
    %v1584 = vpop.f32.mrb[0].mxu0
    %1585 = vmatprep.mubr.bf16.mxu0 %v751
    %1586 = vmatmul.mubr.bf16.gmra.mrb[0].mxu0 %v750
    %v1587 = vpop.f32.mrb[0].mxu0
    %v1588 = vadd.f32 %v1299, %v1587
    %v1589 = vpop.f32.mrb[0].mxu0
    %v1590 = vpop.f32.mrb[0].mxu0
    %v1591 = vadd.f32 %v1302, %v1590
    %v1592 = vpop.f32.mrb[0].mxu0
    %1593 = vmatprep.mubr.bf16.mxu0 %v755
    %1594 = vmatmul.mubr.bf16.gmra.mrb[0].mxu0 %v754
    %v1595 = vpop.f32.mrb[0].mxu0
    %v1596 = vadd.f32 %v1307, %v1595
    %v1597 = vpop.f32.mrb[0].mxu0
    %v1598 = vpop.f32.mrb[0].mxu0
    %v1599 = vadd.f32 %v1310, %v1598
    %v1600 = vpop.f32.mrb[0].mxu0
    %1601 = vmatprep.mubr.bf16.mxu0 %v759
    %1602 = vmatmul.mubr.bf16.gmra.mrb[0].mxu0 %v758
    %v1603 = vpop.f32.mrb[0].mxu0
    %v1604 = vadd.f32 %v1315, %v1603
    %v1605 = vpop.f32.mrb[0].mxu0
    %v1606 = vpop.f32.mrb[0].mxu0
    %v1607 = vadd.f32 %v1318, %v1606
    %v1608 = vpop.f32.mrb[0].mxu0
    %1609 = vmatprep.mubr.bf16.mxu0 %v763
    %1610 = vmatmul.mubr.bf16.gmra.mrb[0].mxu0 %v762
    %v1611 = vpop.f32.mrb[0].mxu0
    %v1612 = vadd.f32 %v1323, %v1611
    %v1613 = vpop.f32.mrb[0].mxu0
    %v1614 = vpop.f32.mrb[0].mxu0
    %v1615 = vadd.f32 %v1326, %v1614
    %v1616 = vpop.f32.mrb[0].mxu0
    %1617 = vmatprep.mubr.bf16.mxu0 %v767
    %1618 = vmatmul.mubr.bf16.gmra.mrb[0].mxu0 %v766
    %v1619 = vpop.f32.mrb[0].mxu0
    %v1620 = vadd.f32 %v1331, %v1619
    %v1621 = vpop.f32.mrb[0].mxu0
    %v1622 = vpop.f32.mrb[0].mxu0
    %v1623 = vadd.f32 %v1334, %v1622
    %v1624 = vpop.f32.mrb[0].mxu0
    %1625 = vmatprep.mubr.bf16.mxu0 %v771
    %1626 = vmatmul.mubr.bf16.gmra.mrb[0].mxu0 %v770
    %v1627 = vpop.f32.mrb[0].mxu0
    %v1628 = vadd.f32 %v1339, %v1627
    %v1629 = vpop.f32.mrb[0].mxu0
    %v1630 = vpop.f32.mrb[0].mxu0
    %v1631 = vadd.f32 %v1342, %v1630
    %v1632 = vpop.f32.mrb[0].mxu0
    %1633 = vmatprep.mubr.bf16.mxu0 %v775
    %1634 = vmatmul.mubr.bf16.gmra.mrb[0].mxu0 %v774
    %v1635 = vpop.f32.mrb[0].mxu0
    %v1636 = vadd.f32 %v1347, %v1635
    %v1637 = vpop.f32.mrb[0].mxu0
    %v1638 = vpop.f32.mrb[0].mxu0
    %v1639 = vadd.f32 %v1350, %v1638
    %v1640 = vpop.f32.mrb[0].mxu0
    %1641 = vmatprep.mubr.bf16.mxu0 %v779
    %1642 = vmatmul.mubr.bf16.gmra.mrb[0].mxu0 %v778
    %v1643 = vpop.f32.mrb[0].mxu0
    %v1644 = vadd.f32 %v1355, %v1643
    %v1645 = vpop.f32.mrb[0].mxu0
    %v1646 = vpop.f32.mrb[0].mxu0
    %v1647 = vadd.f32 %v1358, %v1646
    %v1648 = vpop.f32.mrb[0].mxu0
    %1649 = vmatprep.mubr.bf16.mxu0 %v783
    %1650 = vmatmul.mubr.bf16.gmra.mrb[0].mxu0 %v782
    %v1651 = vpop.f32.mrb[0].mxu0
    %v1652 = vadd.f32 %v1363, %v1651
    %v1653 = vpop.f32.mrb[0].mxu0
    %v1654 = vpop.f32.mrb[0].mxu0
    %v1655 = vadd.f32 %v1366, %v1654
    %v1656 = vpop.f32.mrb[0].mxu0
    %1657 = vmatprep.mubr.bf16.mxu0 %v787
    %1658 = vmatmul.mubr.bf16.gmra.mrb[0].mxu0 %v786
    %v1659 = vpop.f32.mrb[0].mxu0
    %v1660 = vadd.f32 %v1371, %v1659
    %v1661 = vpop.f32.mrb[0].mxu0
    %v1662 = vpop.f32.mrb[0].mxu0
    %v1663 = vadd.f32 %v1374, %v1662
    %v1664 = vpop.f32.mrb[0].mxu0
    %1665 = vmatprep.mubr.bf16.mxu0 %v791
    %1666 = vmatmul.mubr.bf16.gmra.mrb[0].mxu0 %v790
    %v1667 = vpop.f32.mrb[0].mxu0
    %v1668 = vadd.f32 %v1379, %v1667
    %v1669 = vpop.f32.mrb[0].mxu0
    %v1670 = vpop.f32.mrb[0].mxu0
    %v1671 = vadd.f32 %v1382, %v1670
    %v1672 = vpop.f32.mrb[0].mxu0
    %1673 = vmatprep.mubr.bf16.mxu0 %v795
    %1674 = vmatmul.mubr.bf16.gmra.mrb[0].mxu0 %v794
    %v1675 = vpop.f32.mrb[0].mxu0
    %v1676 = vadd.f32 %v1387, %v1675
    %v1677 = vpop.f32.mrb[0].mxu0
    %v1678 = vpop.f32.mrb[0].mxu0
    %v1679 = vadd.f32 %v1390, %v1678
    %v1680 = vpop.f32.mrb[0].mxu0
    %1681 = vmatprep.mubr.bf16.mxu0 %v799
    %1682 = vmatmul.mubr.bf16.gmra.mrb[0].mxu0 %v798
    %v1683 = vpop.f32.mrb[0].mxu0
    %v1684 = vadd.f32 %v1395, %v1683
    %v1685 = vpop.f32.mrb[0].mxu0
    %v1686 = vpop.f32.mrb[0].mxu0
    %v1687 = vadd.f32 %v1398, %v1686
    %v1688 = vpop.f32.mrb[0].mxu0
    %1689 = vmatprep.mubr.bf16.mxu0 %v803
    %1690 = vmatmul.mubr.bf16.gmra.mrb[0].mxu0 %v802
    %v1691 = vpop.f32.mrb[0].mxu0
    %v1692 = vadd.f32 %v1403, %v1691
    %v1693 = vpop.f32.mrb[0].mxu0
    %v1694 = vpop.f32.mrb[0].mxu0
    %v1695 = vadd.f32 %v1406, %v1694
    %v1696 = vpop.f32.mrb[0].mxu0
    %1697 = vmatprep.mubr.bf16.mxu0 %v807
    %1698 = vmatmul.mubr.bf16.gmra.mrb[0].mxu0 %v806
    %v1699 = vpop.f32.mrb[0].mxu0
    %v1700 = vadd.f32 %v1411, %v1699
    %v1701 = vpop.f32.mrb[0].mxu0
    %v1702 = vpop.f32.mrb[0].mxu0
    %v1703 = vadd.f32 %v1414, %v1702
    %v1704 = vpop.f32.mrb[0].mxu0
    %1705 = vdwg.mxu0
    %v1706 = vpack.c.bf16 %v1455, %v1452
    %v1707 = vpack.c.bf16 %v1463, %v1460
    %v1708 = vpack.c.bf16 %v1471, %v1468
    %v1709 = vpack.c.bf16 %v1479, %v1476
    %v1710 = vpack.c.bf16 %v1487, %v1484
    %v1711 = vpack.c.bf16 %v1495, %v1492
    %v1712 = vpack.c.bf16 %v1503, %v1500
    %v1713 = vpack.c.bf16 %v1511, %v1508
    %v1714 = vpack.c.bf16 %v1519, %v1516
    %v1715 = vpack.c.bf16 %v1527, %v1524
    %v1716 = vpack.c.bf16 %v1535, %v1532
    %v1717 = vpack.c.bf16 %v1543, %v1540
    %v1718 = vpack.c.bf16 %v1551, %v1548
    %v1719 = vpack.c.bf16 %v1559, %v1556
    %v1720 = vpack.c.bf16 %v1567, %v1564
    %v1721 = vpack.c.bf16 %v1575, %v1572
    %v1722 = vpack.c.bf16 %v1583, %v1580
    %v1723 = vpack.c.bf16 %v1591, %v1588
    %v1724 = vpack.c.bf16 %v1599, %v1596
    %v1725 = vpack.c.bf16 %v1607, %v1604
    %v1726 = vpack.c.bf16 %v1615, %v1612
    %v1727 = vpack.c.bf16 %v1623, %v1620
    %v1728 = vpack.c.bf16 %v1631, %v1628
    %v1729 = vpack.c.bf16 %v1639, %v1636
    %v1730 = vpack.c.bf16 %v1647, %v1644
    %v1731 = vpack.c.bf16 %v1655, %v1652
    %v1732 = vpack.c.bf16 %v1663, %v1660
    %v1733 = vpack.c.bf16 %v1671, %v1668
    %v1734 = vpack.c.bf16 %v1679, %v1676
    %v1735 = vpack.c.bf16 %v1687, %v1684
    %v1736 = vpack.c.bf16 %v1695, %v1692
    %v1737 = vpack.c.bf16 %v1703, %v1700
    %v1738 = vld [vmem:[#allocation6] sm:$0xf]
    %v1739 = vld [vmem:[#allocation6 + $0x4] sm:$0xf]
    %v1740 = vld [vmem:[#allocation6 + $0x8] sm:$0xf]
    %v1741 = vld [vmem:[#allocation6 + $0xc] sm:$0xf]
    %v1742 = vld [vmem:[#allocation6 + $0x10] sm:$0xf]
    %v1743 = vld [vmem:[#allocation6 + $0x14] sm:$0xf]
    %v1744 = vld [vmem:[#allocation6 + $0x18] sm:$0xf]
    %v1745 = vld [vmem:[#allocation6 + $0x1c] sm:$0xf]
    %v1746 = vld [vmem:[#allocation6 + $0x20] sm:$0xf]
    %v1747 = vld [vmem:[#allocation6 + $0x24] sm:$0xf]
    %v1748 = vld [vmem:[#allocation6 + $0x28] sm:$0xf]
    %v1749 = vld [vmem:[#allocation6 + $0x2c] sm:$0xf]
    %v1750 = vld [vmem:[#allocation6 + $0x30] sm:$0xf]
    %v1751 = vld [vmem:[#allocation6 + $0x34] sm:$0xf]
    %v1752 = vld [vmem:[#allocation6 + $0x38] sm:$0xf]
    %v1753 = vld [vmem:[#allocation6 + $0x3c] sm:$0xf]
    %v1770 = vunpack.c.l.b16 %v1738
    %v1771 = vunpack.c.l.b16 %v1739
    %v1772 = vunpack.c.l.b16 %v1740
    %v1773 = vunpack.c.l.b16 %v1741
    %v1774 = vunpack.c.l.b16 %v1742
    %v1775 = vunpack.c.l.b16 %v1743
    %v1776 = vunpack.c.l.b16 %v1744
    %v1777 = vunpack.c.l.b16 %v1745
    %v1778 = vunpack.c.l.b16 %v1746
    %v1779 = vunpack.c.l.b16 %v1747
    %v1780 = vunpack.c.l.b16 %v1748
    %v1781 = vunpack.c.l.b16 %v1749
    %v1782 = vunpack.c.l.b16 %v1750
    %v1783 = vunpack.c.l.b16 %v1751
    %v1784 = vunpack.c.l.b16 %v1752
    %v1785 = vunpack.c.l.b16 %v1753
    %v1786 = vpack.c.b16 %v1771, %v1770
    %v1787 = vpack.c.b16 %v1773, %v1772
    %v1788 = vpack.c.b16 %v1775, %v1774
    %v1789 = vpack.c.b16 %v1777, %v1776
    %v1790 = vpack.c.b16 %v1779, %v1778
    %v1791 = vpack.c.b16 %v1781, %v1780
    %v1792 = vpack.c.b16 %v1783, %v1782
    %v1793 = vpack.c.b16 %v1785, %v1784
    %1802 = vmatprep.subr.bf16.mxu0 0
    %1803 = vmatpush1.bf16.msra.mxu0 %v1786
    %1804 = vmatprep.subr.bf16.mxu0 0
    %1805 = vmatpush1.bf16.msra.mxu0 %v1787
    %1806 = vmatprep.subr.bf16.mxu0 0
    %1807 = vmatpush1.bf16.msra.mxu0 %v1788
    %1808 = vmatprep.subr.bf16.mxu0 0
    %1809 = vmatpush1.bf16.msra.mxu0 %v1789
    %1810 = vmatprep.subr.bf16.mxu0 0
    %1811 = vmatpush1.bf16.msra.mxu0 %v1790
    %1812 = vmatprep.subr.bf16.mxu0 0
    %1813 = vmatpush1.bf16.msra.mxu0 %v1791
    %1814 = vmatprep.subr.bf16.mxu0 0
    %1815 = vmatpush1.bf16.msra.mxu0 %v1792
    %1816 = vmatprep.subr.bf16.mxu0 0
    %1817 = vmatpush1.bf16.msra.mxu0 %v1793
    %1818 = vmatprep.subr.bf16.mxu0 0
    %1819 = vmatpush1.bf16.msra.mxu0 0
    %1820 = vmatprep.subr.bf16.mxu0 0
    %1821 = vmatpush1.bf16.msra.mxu0 0
    %1822 = vmatprep.subr.bf16.mxu0 0
    %1823 = vmatpush1.bf16.msra.mxu0 0
    %1824 = vmatprep.subr.bf16.mxu0 0
    %1825 = vmatpush1.bf16.msra.mxu0 0
    %1826 = vmatprep.subr.bf16.mxu0 0
    %1827 = vmatpush1.bf16.msra.mxu0 0
    %1828 = vmatprep.subr.bf16.mxu0 0
    %1829 = vmatpush1.bf16.msra.mxu0 0
    %1830 = vmatprep.subr.bf16.mxu0 0
    %1831 = vmatpush1.bf16.msra.mxu0 0
    %1832 = vmatprep.subr.bf16.mxu0 0
    %1833 = vmatpush1.bf16.msra.mxu0 0
    %1834 = vmatprep.mubr.bf16.mxu0 0
    %1835 = vmatmul.mubr.bf16.gmra.mrb[0].mxu0 %v1706
    %v1836 = vpop.f32.mrb[0].mxu0
    %v1837 = vadd.f32 0.0, %v1836
    %v1838 = vpop.f32.mrb[0].mxu0
    %v1839 = vpop.f32.mrb[0].mxu0
    %v1840 = vadd.f32 0.0, %v1839
    %v1841 = vpop.f32.mrb[0].mxu0
    %1842 = vmatprep.mubr.bf16.mxu0 0
    %1843 = vmatmul.mubr.bf16.gmra.mrb[0].mxu0 %v1707
    %v1844 = vpop.f32.mrb[0].mxu0
    %v1845 = vadd.f32 0.0, %v1844
    %v1846 = vpop.f32.mrb[0].mxu0
    %v1847 = vpop.f32.mrb[0].mxu0
    %v1848 = vadd.f32 0.0, %v1847
    %v1849 = vpop.f32.mrb[0].mxu0
    %1850 = vmatprep.mubr.bf16.mxu0 0
    %1851 = vmatmul.mubr.bf16.gmra.mrb[0].mxu0 %v1708
    %v1852 = vpop.f32.mrb[0].mxu0
    %v1853 = vadd.f32 0.0, %v1852
    %v1854 = vpop.f32.mrb[0].mxu0
    %v1855 = vpop.f32.mrb[0].mxu0
    %v1856 = vadd.f32 0.0, %v1855
    %v1857 = vpop.f32.mrb[0].mxu0
    %1858 = vmatprep.mubr.bf16.mxu0 0
    %1859 = vmatmul.mubr.bf16.gmra.mrb[0].mxu0 %v1709
    %v1860 = vpop.f32.mrb[0].mxu0
    %v1861 = vadd.f32 0.0, %v1860
    %v1862 = vpop.f32.mrb[0].mxu0
    %v1863 = vpop.f32.mrb[0].mxu0
    %v1864 = vadd.f32 0.0, %v1863
    %v1865 = vpop.f32.mrb[0].mxu0
    %1866 = vmatprep.mubr.bf16.mxu0 0
    %1867 = vmatmul.mubr.bf16.gmra.mrb[0].mxu0 %v1710
    %v1868 = vpop.f32.mrb[0].mxu0
    %v1869 = vadd.f32 0.0, %v1868
    %v1870 = vpop.f32.mrb[0].mxu0
    %v1871 = vpop.f32.mrb[0].mxu0
    %v1872 = vadd.f32 0.0, %v1871
    %v1873 = vpop.f32.mrb[0].mxu0
    %1874 = vmatprep.mubr.bf16.mxu0 0
    %1875 = vmatmul.mubr.bf16.gmra.mrb[0].mxu0 %v1711
    %v1876 = vpop.f32.mrb[0].mxu0
    %v1877 = vadd.f32 0.0, %v1876
    %v1878 = vpop.f32.mrb[0].mxu0
    %v1879 = vpop.f32.mrb[0].mxu0
    %v1880 = vadd.f32 0.0, %v1879
    %v1881 = vpop.f32.mrb[0].mxu0
    %1882 = vmatprep.mubr.bf16.mxu0 0
    %1883 = vmatmul.mubr.bf16.gmra.mrb[0].mxu0 %v1712
    %v1884 = vpop.f32.mrb[0].mxu0
    %v1885 = vadd.f32 0.0, %v1884
    %v1886 = vpop.f32.mrb[0].mxu0
    %v1887 = vpop.f32.mrb[0].mxu0
    %v1888 = vadd.f32 0.0, %v1887
    %v1889 = vpop.f32.mrb[0].mxu0
    %1890 = vmatprep.mubr.bf16.mxu0 0
    %1891 = vmatmul.mubr.bf16.gmra.mrb[0].mxu0 %v1713
    %v1892 = vpop.f32.mrb[0].mxu0
    %v1893 = vadd.f32 0.0, %v1892
    %v1894 = vpop.f32.mrb[0].mxu0
    %v1895 = vpop.f32.mrb[0].mxu0
    %v1896 = vadd.f32 0.0, %v1895
    %v1897 = vpop.f32.mrb[0].mxu0
    %1898 = vmatprep.mubr.bf16.mxu0 0
    %1899 = vmatmul.mubr.bf16.gmra.mrb[0].mxu0 %v1714
    %v1900 = vpop.f32.mrb[0].mxu0
    %v1901 = vadd.f32 0.0, %v1900
    %v1902 = vpop.f32.mrb[0].mxu0
    %v1903 = vpop.f32.mrb[0].mxu0
    %v1904 = vadd.f32 0.0, %v1903
    %v1905 = vpop.f32.mrb[0].mxu0
    %1906 = vmatprep.mubr.bf16.mxu0 0
    %1907 = vmatmul.mubr.bf16.gmra.mrb[0].mxu0 %v1715
    %v1908 = vpop.f32.mrb[0].mxu0
    %v1909 = vadd.f32 0.0, %v1908
    %v1910 = vpop.f32.mrb[0].mxu0
    %v1911 = vpop.f32.mrb[0].mxu0
    %v1912 = vadd.f32 0.0, %v1911
    %v1913 = vpop.f32.mrb[0].mxu0
    %1914 = vmatprep.mubr.bf16.mxu0 0
    %1915 = vmatmul.mubr.bf16.gmra.mrb[0].mxu0 %v1716
    %v1916 = vpop.f32.mrb[0].mxu0
    %v1917 = vadd.f32 0.0, %v1916
    %v1918 = vpop.f32.mrb[0].mxu0
    %v1919 = vpop.f32.mrb[0].mxu0
    %v1920 = vadd.f32 0.0, %v1919
    %v1921 = vpop.f32.mrb[0].mxu0
    %1922 = vmatprep.mubr.bf16.mxu0 0
    %1923 = vmatmul.mubr.bf16.gmra.mrb[0].mxu0 %v1717
    %v1924 = vpop.f32.mrb[0].mxu0
    %v1925 = vadd.f32 0.0, %v1924
    %v1926 = vpop.f32.mrb[0].mxu0
    %v1927 = vpop.f32.mrb[0].mxu0
    %v1928 = vadd.f32 0.0, %v1927
    %v1929 = vpop.f32.mrb[0].mxu0
    %1930 = vmatprep.mubr.bf16.mxu0 0
    %1931 = vmatmul.mubr.bf16.gmra.mrb[0].mxu0 %v1718
    %v1932 = vpop.f32.mrb[0].mxu0
    %v1933 = vadd.f32 0.0, %v1932
    %v1934 = vpop.f32.mrb[0].mxu0
    %v1935 = vpop.f32.mrb[0].mxu0
    %v1936 = vadd.f32 0.0, %v1935
    %v1937 = vpop.f32.mrb[0].mxu0
    %1938 = vmatprep.mubr.bf16.mxu0 0
    %1939 = vmatmul.mubr.bf16.gmra.mrb[0].mxu0 %v1719
    %v1940 = vpop.f32.mrb[0].mxu0
    %v1941 = vadd.f32 0.0, %v1940
    %v1942 = vpop.f32.mrb[0].mxu0
    %v1943 = vpop.f32.mrb[0].mxu0
    %v1944 = vadd.f32 0.0, %v1943
    %v1945 = vpop.f32.mrb[0].mxu0
    %1946 = vmatprep.mubr.bf16.mxu0 0
    %1947 = vmatmul.mubr.bf16.gmra.mrb[0].mxu0 %v1720
    %v1948 = vpop.f32.mrb[0].mxu0
    %v1949 = vadd.f32 0.0, %v1948
    %v1950 = vpop.f32.mrb[0].mxu0
    %v1951 = vpop.f32.mrb[0].mxu0
    %v1952 = vadd.f32 0.0, %v1951
    %v1953 = vpop.f32.mrb[0].mxu0
    %1954 = vmatprep.mubr.bf16.mxu0 0
    %1955 = vmatmul.mubr.bf16.gmra.mrb[0].mxu0 %v1721
    %v1956 = vpop.f32.mrb[0].mxu0
    %v1957 = vadd.f32 0.0, %v1956
    %v1958 = vpop.f32.mrb[0].mxu0
    %v1959 = vpop.f32.mrb[0].mxu0
    %v1960 = vadd.f32 0.0, %v1959
    %v1961 = vpop.f32.mrb[0].mxu0
    %1962 = vmatprep.mubr.bf16.mxu0 0
    %1963 = vmatmul.mubr.bf16.gmra.mrb[0].mxu0 %v1722
    %v1964 = vpop.f32.mrb[0].mxu0
    %v1965 = vadd.f32 0.0, %v1964
    %v1966 = vpop.f32.mrb[0].mxu0
    %v1967 = vpop.f32.mrb[0].mxu0
    %v1968 = vadd.f32 0.0, %v1967
    %v1969 = vpop.f32.mrb[0].mxu0
    %1970 = vmatprep.mubr.bf16.mxu0 0
    %1971 = vmatmul.mubr.bf16.gmra.mrb[0].mxu0 %v1723
    %v1972 = vpop.f32.mrb[0].mxu0
    %v1973 = vadd.f32 0.0, %v1972
    %v1974 = vpop.f32.mrb[0].mxu0
    %v1975 = vpop.f32.mrb[0].mxu0
    %v1976 = vadd.f32 0.0, %v1975
    %v1977 = vpop.f32.mrb[0].mxu0
    %1978 = vmatprep.mubr.bf16.mxu0 0
    %1979 = vmatmul.mubr.bf16.gmra.mrb[0].mxu0 %v1724
    %v1980 = vpop.f32.mrb[0].mxu0
    %v1981 = vadd.f32 0.0, %v1980
    %v1982 = vpop.f32.mrb[0].mxu0
    %v1983 = vpop.f32.mrb[0].mxu0
    %v1984 = vadd.f32 0.0, %v1983
    %v1985 = vpop.f32.mrb[0].mxu0
    %1986 = vmatprep.mubr.bf16.mxu0 0
    %1987 = vmatmul.mubr.bf16.gmra.mrb[0].mxu0 %v1725
    %v1988 = vpop.f32.mrb[0].mxu0
    %v1989 = vadd.f32 0.0, %v1988
    %v1990 = vpop.f32.mrb[0].mxu0
    %v1991 = vpop.f32.mrb[0].mxu0
    %v1992 = vadd.f32 0.0, %v1991
    %v1993 = vpop.f32.mrb[0].mxu0
    %1994 = vmatprep.mubr.bf16.mxu0 0
    %1995 = vmatmul.mubr.bf16.gmra.mrb[0].mxu0 %v1726
    %v1996 = vpop.f32.mrb[0].mxu0
    %v1997 = vadd.f32 0.0, %v1996
    %v1998 = vpop.f32.mrb[0].mxu0
    %v1999 = vpop.f32.mrb[0].mxu0
    %v2000 = vadd.f32 0.0, %v1999
    %v2001 = vpop.f32.mrb[0].mxu0
    %2002 = vmatprep.mubr.bf16.mxu0 0
    %2003 = vmatmul.mubr.bf16.gmra.mrb[0].mxu0 %v1727
    %v2004 = vpop.f32.mrb[0].mxu0
    %v2005 = vadd.f32 0.0, %v2004
    %v2006 = vpop.f32.mrb[0].mxu0
    %v2007 = vpop.f32.mrb[0].mxu0
    %v2008 = vadd.f32 0.0, %v2007
    %v2009 = vpop.f32.mrb[0].mxu0
    %2010 = vmatprep.mubr.bf16.mxu0 0
    %2011 = vmatmul.mubr.bf16.gmra.mrb[0].mxu0 %v1728
    %v2012 = vpop.f32.mrb[0].mxu0
    %v2013 = vadd.f32 0.0, %v2012
    %v2014 = vpop.f32.mrb[0].mxu0
    %v2015 = vpop.f32.mrb[0].mxu0
    %v2016 = vadd.f32 0.0, %v2015
    %v2017 = vpop.f32.mrb[0].mxu0
    %2018 = vmatprep.mubr.bf16.mxu0 0
    %2019 = vmatmul.mubr.bf16.gmra.mrb[0].mxu0 %v1729
    %v2020 = vpop.f32.mrb[0].mxu0
    %v2021 = vadd.f32 0.0, %v2020
    %v2022 = vpop.f32.mrb[0].mxu0
    %v2023 = vpop.f32.mrb[0].mxu0
    %v2024 = vadd.f32 0.0, %v2023
    %v2025 = vpop.f32.mrb[0].mxu0
    %2026 = vmatprep.mubr.bf16.mxu0 0
    %2027 = vmatmul.mubr.bf16.gmra.mrb[0].mxu0 %v1730
    %v2028 = vpop.f32.mrb[0].mxu0
    %v2029 = vadd.f32 0.0, %v2028
    %v2030 = vpop.f32.mrb[0].mxu0
    %v2031 = vpop.f32.mrb[0].mxu0
    %v2032 = vadd.f32 0.0, %v2031
    %v2033 = vpop.f32.mrb[0].mxu0
    %2034 = vmatprep.mubr.bf16.mxu0 0
    %2035 = vmatmul.mubr.bf16.gmra.mrb[0].mxu0 %v1731
    %v2036 = vpop.f32.mrb[0].mxu0
    %v2037 = vadd.f32 0.0, %v2036
    %v2038 = vpop.f32.mrb[0].mxu0
    %v2039 = vpop.f32.mrb[0].mxu0
    %v2040 = vadd.f32 0.0, %v2039
    %v2041 = vpop.f32.mrb[0].mxu0
    %2042 = vmatprep.mubr.bf16.mxu0 0
    %2043 = vmatmul.mubr.bf16.gmra.mrb[0].mxu0 %v1732
    %v2044 = vpop.f32.mrb[0].mxu0
    %v2045 = vadd.f32 0.0, %v2044
    %v2046 = vpop.f32.mrb[0].mxu0
    %v2047 = vpop.f32.mrb[0].mxu0
    %v2048 = vadd.f32 0.0, %v2047
    %v2049 = vpop.f32.mrb[0].mxu0
    %2050 = vmatprep.mubr.bf16.mxu0 0
    %2051 = vmatmul.mubr.bf16.gmra.mrb[0].mxu0 %v1733
    %v2052 = vpop.f32.mrb[0].mxu0
    %v2053 = vadd.f32 0.0, %v2052
    %v2054 = vpop.f32.mrb[0].mxu0
    %v2055 = vpop.f32.mrb[0].mxu0
    %v2056 = vadd.f32 0.0, %v2055
    %v2057 = vpop.f32.mrb[0].mxu0
    %2058 = vmatprep.mubr.bf16.mxu0 0
    %2059 = vmatmul.mubr.bf16.gmra.mrb[0].mxu0 %v1734
    %v2060 = vpop.f32.mrb[0].mxu0
    %v2061 = vadd.f32 0.0, %v2060
    %v2062 = vpop.f32.mrb[0].mxu0
    %v2063 = vpop.f32.mrb[0].mxu0
    %v2064 = vadd.f32 0.0, %v2063
    %v2065 = vpop.f32.mrb[0].mxu0
    %2066 = vmatprep.mubr.bf16.mxu0 0
    %2067 = vmatmul.mubr.bf16.gmra.mrb[0].mxu0 %v1735
    %v2068 = vpop.f32.mrb[0].mxu0
    %v2069 = vadd.f32 0.0, %v2068
    %v2070 = vpop.f32.mrb[0].mxu0
    %v2071 = vpop.f32.mrb[0].mxu0
    %v2072 = vadd.f32 0.0, %v2071
    %v2073 = vpop.f32.mrb[0].mxu0
    %2074 = vmatprep.mubr.bf16.mxu0 0
    %2075 = vmatmul.mubr.bf16.gmra.mrb[0].mxu0 %v1736
    %v2076 = vpop.f32.mrb[0].mxu0
    %v2077 = vadd.f32 0.0, %v2076
    %v2078 = vpop.f32.mrb[0].mxu0
    %v2079 = vpop.f32.mrb[0].mxu0
    %v2080 = vadd.f32 0.0, %v2079
    %v2081 = vpop.f32.mrb[0].mxu0
    %2082 = vmatprep.mubr.bf16.mxu0 0
    %2083 = vmatmul.mubr.bf16.gmra.mrb[0].mxu0 %v1737
    %v2084 = vpop.f32.mrb[0].mxu0
    %v2085 = vadd.f32 0.0, %v2084
    %v2086 = vpop.f32.mrb[0].mxu0
    %v2087 = vpop.f32.mrb[0].mxu0
    %v2088 = vadd.f32 0.0, %v2087
    %v2089 = vpop.f32.mrb[0].mxu0
    %2090 = vdwg.mxu0
    %v2091 = vld [vmem:[%s3] sm:$0x1]
    %v2093 = vlaneseq
    %v2094 = vshrl.u32 %v2093, 7
    %v2095 = vsub.s32 0, %v2094
    %v2096 = vrot.slane %v2091, %v2095
    %v2098 = vmul.f32 %v1837, %v2096
    %v2099 = vmul.f32 %v1840, %v2096
    %v2100 = vmul.f32 %v1845, %v2096
    %v2101 = vmul.f32 %v1848, %v2096
    %v2102 = vmul.f32 %v1853, %v2096
    %v2103 = vmul.f32 %v1856, %v2096
    %v2104 = vmul.f32 %v1861, %v2096
    %v2105 = vmul.f32 %v1864, %v2096
    %v2106 = vmul.f32 %v1869, %v2096
    %v2107 = vmul.f32 %v1872, %v2096
    %v2108 = vmul.f32 %v1877, %v2096
    %v2109 = vmul.f32 %v1880, %v2096
    %v2110 = vmul.f32 %v1885, %v2096
    %v2111 = vmul.f32 %v1888, %v2096
    %v2112 = vmul.f32 %v1893, %v2096
    %v2113 = vmul.f32 %v1896, %v2096
    %v2114 = vmul.f32 %v1901, %v2096
    %v2115 = vmul.f32 %v1904, %v2096
    %v2116 = vmul.f32 %v1909, %v2096
    %v2117 = vmul.f32 %v1912, %v2096
    %v2118 = vmul.f32 %v1917, %v2096
    %v2119 = vmul.f32 %v1920, %v2096
    %v2120 = vmul.f32 %v1925, %v2096
    %v2121 = vmul.f32 %v1928, %v2096
    %v2122 = vmul.f32 %v1933, %v2096
    %v2123 = vmul.f32 %v1936, %v2096
    %v2124 = vmul.f32 %v1941, %v2096
    %v2125 = vmul.f32 %v1944, %v2096
    %v2126 = vmul.f32 %v1949, %v2096
    %v2127 = vmul.f32 %v1952, %v2096
    %v2128 = vmul.f32 %v1957, %v2096
    %v2129 = vmul.f32 %v1960, %v2096
    %v2130 = vmul.f32 %v1965, %v2096
    %v2131 = vmul.f32 %v1968, %v2096
    %v2132 = vmul.f32 %v1973, %v2096
    %v2133 = vmul.f32 %v1976, %v2096
    %v2134 = vmul.f32 %v1981, %v2096
    %v2135 = vmul.f32 %v1984, %v2096
    %v2136 = vmul.f32 %v1989, %v2096
    %v2137 = vmul.f32 %v1992, %v2096
    %v2138 = vmul.f32 %v1997, %v2096
    %v2139 = vmul.f32 %v2000, %v2096
    %v2140 = vmul.f32 %v2005, %v2096
    %v2141 = vmul.f32 %v2008, %v2096
    %v2142 = vmul.f32 %v2013, %v2096
    %v2143 = vmul.f32 %v2016, %v2096
    %v2144 = vmul.f32 %v2021, %v2096
    %v2145 = vmul.f32 %v2024, %v2096
    %v2146 = vmul.f32 %v2029, %v2096
    %v2147 = vmul.f32 %v2032, %v2096
    %v2148 = vmul.f32 %v2037, %v2096
    %v2149 = vmul.f32 %v2040, %v2096
    %v2150 = vmul.f32 %v2045, %v2096
    %v2151 = vmul.f32 %v2048, %v2096
    %v2152 = vmul.f32 %v2053, %v2096
    %v2153 = vmul.f32 %v2056, %v2096
    %v2154 = vmul.f32 %v2061, %v2096
    %v2155 = vmul.f32 %v2064, %v2096
    %v2156 = vmul.f32 %v2069, %v2096
    %v2157 = vmul.f32 %v2072, %v2096
    %v2158 = vmul.f32 %v2077, %v2096
    %v2159 = vmul.f32 %v2080, %v2096
    %v2160 = vmul.f32 %v2085, %v2096
    %v2161 = vmul.f32 %v2088, %v2096
    %v2162 = vld [vmem:[%s4] sm:$0x1]
    %v2164 = vlaneseq
    %v2165 = vshrl.u32 %v2164, 7
    %v2166 = vsub.s32 0, %v2165
    %v2167 = vrot.slane %v2162, %v2166
    %v2169 = vadd.f32 %v2098, %v2167
    %v2170 = vadd.f32 %v2099, %v2167
    %v2171 = vadd.f32 %v2100, %v2167
    %v2172 = vadd.f32 %v2101, %v2167
    %v2173 = vadd.f32 %v2102, %v2167
    %v2174 = vadd.f32 %v2103, %v2167
    %v2175 = vadd.f32 %v2104, %v2167
    %v2176 = vadd.f32 %v2105, %v2167
    %v2177 = vadd.f32 %v2106, %v2167
    %v2178 = vadd.f32 %v2107, %v2167
    %v2179 = vadd.f32 %v2108, %v2167
    %v2180 = vadd.f32 %v2109, %v2167
    %v2181 = vadd.f32 %v2110, %v2167
    %v2182 = vadd.f32 %v2111, %v2167
    %v2183 = vadd.f32 %v2112, %v2167
    %v2184 = vadd.f32 %v2113, %v2167
    %v2185 = vadd.f32 %v2114, %v2167
    %v2186 = vadd.f32 %v2115, %v2167
    %v2187 = vadd.f32 %v2116, %v2167
    %v2188 = vadd.f32 %v2117, %v2167
    %v2189 = vadd.f32 %v2118, %v2167
    %v2190 = vadd.f32 %v2119, %v2167
    %v2191 = vadd.f32 %v2120, %v2167
    %v2192 = vadd.f32 %v2121, %v2167
    %v2193 = vadd.f32 %v2122, %v2167
    %v2194 = vadd.f32 %v2123, %v2167
    %v2195 = vadd.f32 %v2124, %v2167
    %v2196 = vadd.f32 %v2125, %v2167
    %v2197 = vadd.f32 %v2126, %v2167
    %v2198 = vadd.f32 %v2127, %v2167
    %v2199 = vadd.f32 %v2128, %v2167
    %v2200 = vadd.f32 %v2129, %v2167
    %v2201 = vadd.f32 %v2130, %v2167
    %v2202 = vadd.f32 %v2131, %v2167
    %v2203 = vadd.f32 %v2132, %v2167
    %v2204 = vadd.f32 %v2133, %v2167
    %v2205 = vadd.f32 %v2134, %v2167
    %v2206 = vadd.f32 %v2135, %v2167
    %v2207 = vadd.f32 %v2136, %v2167
    %v2208 = vadd.f32 %v2137, %v2167
    %v2209 = vadd.f32 %v2138, %v2167
    %v2210 = vadd.f32 %v2139, %v2167
    %v2211 = vadd.f32 %v2140, %v2167
    %v2212 = vadd.f32 %v2141, %v2167
    %v2213 = vadd.f32 %v2142, %v2167
    %v2214 = vadd.f32 %v2143, %v2167
    %v2215 = vadd.f32 %v2144, %v2167
    %v2216 = vadd.f32 %v2145, %v2167
    %v2217 = vadd.f32 %v2146, %v2167
    %v2218 = vadd.f32 %v2147, %v2167
    %v2219 = vadd.f32 %v2148, %v2167
    %v2220 = vadd.f32 %v2149, %v2167
    %v2221 = vadd.f32 %v2150, %v2167
    %v2222 = vadd.f32 %v2151, %v2167
    %v2223 = vadd.f32 %v2152, %v2167
    %v2224 = vadd.f32 %v2153, %v2167
    %v2225 = vadd.f32 %v2154, %v2167
    %v2226 = vadd.f32 %v2155, %v2167
    %v2227 = vadd.f32 %v2156, %v2167
    %v2228 = vadd.f32 %v2157, %v2167
    %v2229 = vadd.f32 %v2158, %v2167
    %v2230 = vadd.f32 %v2159, %v2167
    %v2231 = vadd.f32 %v2160, %v2167
    %v2232 = vadd.f32 %v2161, %v2167
    %v2233 = vmax.f32 %v2169, 0.0
    %v2234 = vmax.f32 %v2170, 0.0
    %v2235 = vmax.f32 %v2171, 0.0
    %v2236 = vmax.f32 %v2172, 0.0
    %v2237 = vmax.f32 %v2173, 0.0
    %v2238 = vmax.f32 %v2174, 0.0
    %v2239 = vmax.f32 %v2175, 0.0
    %v2240 = vmax.f32 %v2176, 0.0
    %v2241 = vmax.f32 %v2177, 0.0
    %v2242 = vmax.f32 %v2178, 0.0
    %v2243 = vmax.f32 %v2179, 0.0
    %v2244 = vmax.f32 %v2180, 0.0
    %v2245 = vmax.f32 %v2181, 0.0
    %v2246 = vmax.f32 %v2182, 0.0
    %v2247 = vmax.f32 %v2183, 0.0
    %v2248 = vmax.f32 %v2184, 0.0
    %v2249 = vmax.f32 %v2185, 0.0
    %v2250 = vmax.f32 %v2186, 0.0
    %v2251 = vmax.f32 %v2187, 0.0
    %v2252 = vmax.f32 %v2188, 0.0
    %v2253 = vmax.f32 %v2189, 0.0
    %v2254 = vmax.f32 %v2190, 0.0
    %v2255 = vmax.f32 %v2191, 0.0
    %v2256 = vmax.f32 %v2192, 0.0
    %v2257 = vmax.f32 %v2193, 0.0
    %v2258 = vmax.f32 %v2194, 0.0
    %v2259 = vmax.f32 %v2195, 0.0
    %v2260 = vmax.f32 %v2196, 0.0
    %v2261 = vmax.f32 %v2197, 0.0
    %v2262 = vmax.f32 %v2198, 0.0
    %v2263 = vmax.f32 %v2199, 0.0
    %v2264 = vmax.f32 %v2200, 0.0
    %v2265 = vmax.f32 %v2201, 0.0
    %v2266 = vmax.f32 %v2202, 0.0
    %v2267 = vmax.f32 %v2203, 0.0
    %v2268 = vmax.f32 %v2204, 0.0
    %v2269 = vmax.f32 %v2205, 0.0
    %v2270 = vmax.f32 %v2206, 0.0
    %v2271 = vmax.f32 %v2207, 0.0
    %v2272 = vmax.f32 %v2208, 0.0
    %v2273 = vmax.f32 %v2209, 0.0
    %v2274 = vmax.f32 %v2210, 0.0
    %v2275 = vmax.f32 %v2211, 0.0
    %v2276 = vmax.f32 %v2212, 0.0
    %v2277 = vmax.f32 %v2213, 0.0
    %v2278 = vmax.f32 %v2214, 0.0
    %v2279 = vmax.f32 %v2215, 0.0
    %v2280 = vmax.f32 %v2216, 0.0
    %v2281 = vmax.f32 %v2217, 0.0
    %v2282 = vmax.f32 %v2218, 0.0
    %v2283 = vmax.f32 %v2219, 0.0
    %v2284 = vmax.f32 %v2220, 0.0
    %v2285 = vmax.f32 %v2221, 0.0
    %v2286 = vmax.f32 %v2222, 0.0
    %v2287 = vmax.f32 %v2223, 0.0
    %v2288 = vmax.f32 %v2224, 0.0
    %v2289 = vmax.f32 %v2225, 0.0
    %v2290 = vmax.f32 %v2226, 0.0
    %v2291 = vmax.f32 %v2227, 0.0
    %v2292 = vmax.f32 %v2228, 0.0
    %v2293 = vmax.f32 %v2229, 0.0
    %v2294 = vmax.f32 %v2230, 0.0
    %v2295 = vmax.f32 %v2231, 0.0
    %v2296 = vmax.f32 %v2232, 0.0
    %v2297 = vpack.c.bf16 %v2234, %v2233
    %v2298 = vpack.c.bf16 %v2236, %v2235
    %v2299 = vpack.c.bf16 %v2238, %v2237
    %v2300 = vpack.c.bf16 %v2240, %v2239
    %v2301 = vpack.c.bf16 %v2242, %v2241
    %v2302 = vpack.c.bf16 %v2244, %v2243
    %v2303 = vpack.c.bf16 %v2246, %v2245
    %v2304 = vpack.c.bf16 %v2248, %v2247
    %v2305 = vpack.c.bf16 %v2250, %v2249
    %v2306 = vpack.c.bf16 %v2252, %v2251
    %v2307 = vpack.c.bf16 %v2254, %v2253
    %v2308 = vpack.c.bf16 %v2256, %v2255
    %v2309 = vpack.c.bf16 %v2258, %v2257
    %v2310 = vpack.c.bf16 %v2260, %v2259
    %v2311 = vpack.c.bf16 %v2262, %v2261
    %v2312 = vpack.c.bf16 %v2264, %v2263
    %v2313 = vpack.c.bf16 %v2266, %v2265
    %v2314 = vpack.c.bf16 %v2268, %v2267
    %v2315 = vpack.c.bf16 %v2270, %v2269
    %v2316 = vpack.c.bf16 %v2272, %v2271
    %v2317 = vpack.c.bf16 %v2274, %v2273
    %v2318 = vpack.c.bf16 %v2276, %v2275
    %v2319 = vpack.c.bf16 %v2278, %v2277
    %v2320 = vpack.c.bf16 %v2280, %v2279
    %v2321 = vpack.c.bf16 %v2282, %v2281
    %v2322 = vpack.c.bf16 %v2284, %v2283
    %v2323 = vpack.c.bf16 %v2286, %v2285
    %v2324 = vpack.c.bf16 %v2288, %v2287
    %v2325 = vpack.c.bf16 %v2290, %v2289
    %v2326 = vpack.c.bf16 %v2292, %v2291
    %v2327 = vpack.c.bf16 %v2294, %v2293
    %v2328 = vpack.c.bf16 %v2296, %v2295
    %2329 = vmatprep.subr.bf16.mxu0 0
    %2330 = vmatpush1.bf16.msra.mxu0 %v2297
    %2331 = vmatprep.subr.bf16.mxu0 0
    %2332 = vmatpush1.bf16.msra.mxu0 %v2298
    %2333 = vmatprep.subr.bf16.mxu0 0
    %2334 = vmatpush1.bf16.msra.mxu0 %v2299
    %2335 = vmatprep.subr.bf16.mxu0 0
    %2336 = vmatpush1.bf16.msra.mxu0 %v2300
    %2337 = vmatprep.subr.bf16.mxu0 0
    %2338 = vmatpush1.bf16.msra.mxu0 %v2301
    %2339 = vmatprep.subr.bf16.mxu0 0
    %2340 = vmatpush1.bf16.msra.mxu0 %v2302
    %2341 = vmatprep.subr.bf16.mxu0 0
    %2342 = vmatpush1.bf16.msra.mxu0 %v2303
    %2343 = vmatprep.subr.bf16.mxu0 0
    %2344 = vmatpush1.bf16.msra.mxu0 %v2304
    %2345 = vmatprep.subr.bf16.mxu0 0
    %2346 = vmatpush1.bf16.msra.mxu0 %v2305
    %2347 = vmatprep.subr.bf16.mxu0 0
    %2348 = vmatpush1.bf16.msra.mxu0 %v2306
    %2349 = vmatprep.subr.bf16.mxu0 0
    %2350 = vmatpush1.bf16.msra.mxu0 %v2307
    %2351 = vmatprep.subr.bf16.mxu0 0
    %2352 = vmatpush1.bf16.msra.mxu0 %v2308
    %2353 = vmatprep.subr.bf16.mxu0 0
    %2354 = vmatpush1.bf16.msra.mxu0 %v2309
    %2355 = vmatprep.subr.bf16.mxu0 0
    %2356 = vmatpush1.bf16.msra.mxu0 %v2310
    %2357 = vmatprep.subr.bf16.mxu0 0
    %2358 = vmatpush1.bf16.msra.mxu0 %v2311
    %2359 = vmatprep.subr.bf16.mxu0 0
    %2360 = vmatpush1.bf16.msra.mxu0 %v2312
    %2361 = vmatprep.mubr.bf16.mxu0 %v681
    %2362 = vmatmul.mubr.bf16.gmra.mrb[0].mxu0 %v680
    %v2363 = vpop.f32.mrb[0].mxu0
    %v2364 = vadd.f32 0.0, %v2363
    %v2365 = vpop.f32.mrb[0].mxu0
    %v2366 = vpop.f32.mrb[0].mxu0
    %v2367 = vadd.f32 0.0, %v2366
    %v2368 = vpop.f32.mrb[0].mxu0
    %2369 = vmatprep.mubr.bf16.mxu0 %v685
    %2370 = vmatmul.mubr.bf16.gmra.mrb[0].mxu0 %v684
    %v2371 = vpop.f32.mrb[0].mxu0
    %v2372 = vadd.f32 0.0, %v2371
    %v2373 = vpop.f32.mrb[0].mxu0
    %v2374 = vpop.f32.mrb[0].mxu0
    %v2375 = vadd.f32 0.0, %v2374
    %v2376 = vpop.f32.mrb[0].mxu0
    %2377 = vmatprep.mubr.bf16.mxu0 %v689
    %2378 = vmatmul.mubr.bf16.gmra.mrb[0].mxu0 %v688
    %v2379 = vpop.f32.mrb[0].mxu0
    %v2380 = vadd.f32 0.0, %v2379
    %v2381 = vpop.f32.mrb[0].mxu0
    %v2382 = vpop.f32.mrb[0].mxu0
    %v2383 = vadd.f32 0.0, %v2382
    %v2384 = vpop.f32.mrb[0].mxu0
    %2385 = vmatprep.mubr.bf16.mxu0 %v693
    %2386 = vmatmul.mubr.bf16.gmra.mrb[0].mxu0 %v692
    %v2387 = vpop.f32.mrb[0].mxu0
    %v2388 = vadd.f32 0.0, %v2387
    %v2389 = vpop.f32.mrb[0].mxu0
    %v2390 = vpop.f32.mrb[0].mxu0
    %v2391 = vadd.f32 0.0, %v2390
    %v2392 = vpop.f32.mrb[0].mxu0
    %2393 = vmatprep.mubr.bf16.mxu0 %v697
    %2394 = vmatmul.mubr.bf16.gmra.mrb[0].mxu0 %v696
    %v2395 = vpop.f32.mrb[0].mxu0
    %v2396 = vadd.f32 0.0, %v2395
    %v2397 = vpop.f32.mrb[0].mxu0
    %v2398 = vpop.f32.mrb[0].mxu0
    %v2399 = vadd.f32 0.0, %v2398
    %v2400 = vpop.f32.mrb[0].mxu0
    %2401 = vmatprep.mubr.bf16.mxu0 %v701
    %2402 = vmatmul.mubr.bf16.gmra.mrb[0].mxu0 %v700
    %v2403 = vpop.f32.mrb[0].mxu0
    %v2404 = vadd.f32 0.0, %v2403
    %v2405 = vpop.f32.mrb[0].mxu0
    %v2406 = vpop.f32.mrb[0].mxu0
    %v2407 = vadd.f32 0.0, %v2406
    %v2408 = vpop.f32.mrb[0].mxu0
    %2409 = vmatprep.mubr.bf16.mxu0 %v705
    %2410 = vmatmul.mubr.bf16.gmra.mrb[0].mxu0 %v704
    %v2411 = vpop.f32.mrb[0].mxu0
    %v2412 = vadd.f32 0.0, %v2411
    %v2413 = vpop.f32.mrb[0].mxu0
    %v2414 = vpop.f32.mrb[0].mxu0
    %v2415 = vadd.f32 0.0, %v2414
    %v2416 = vpop.f32.mrb[0].mxu0
    %2417 = vmatprep.mubr.bf16.mxu0 %v709
    %2418 = vmatmul.mubr.bf16.gmra.mrb[0].mxu0 %v708
    %v2419 = vpop.f32.mrb[0].mxu0
    %v2420 = vadd.f32 0.0, %v2419
    %v2421 = vpop.f32.mrb[0].mxu0
    %v2422 = vpop.f32.mrb[0].mxu0
    %v2423 = vadd.f32 0.0, %v2422
    %v2424 = vpop.f32.mrb[0].mxu0
    %2425 = vmatprep.mubr.bf16.mxu0 %v713
    %2426 = vmatmul.mubr.bf16.gmra.mrb[0].mxu0 %v712
    %v2427 = vpop.f32.mrb[0].mxu0
    %v2428 = vadd.f32 0.0, %v2427
    %v2429 = vpop.f32.mrb[0].mxu0
    %v2430 = vpop.f32.mrb[0].mxu0
    %v2431 = vadd.f32 0.0, %v2430
    %v2432 = vpop.f32.mrb[0].mxu0
    %2433 = vmatprep.mubr.bf16.mxu0 %v717
    %2434 = vmatmul.mubr.bf16.gmra.mrb[0].mxu0 %v716
    %v2435 = vpop.f32.mrb[0].mxu0
    %v2436 = vadd.f32 0.0, %v2435
    %v2437 = vpop.f32.mrb[0].mxu0
    %v2438 = vpop.f32.mrb[0].mxu0
    %v2439 = vadd.f32 0.0, %v2438
    %v2440 = vpop.f32.mrb[0].mxu0
    %2441 = vmatprep.mubr.bf16.mxu0 %v721
    %2442 = vmatmul.mubr.bf16.gmra.mrb[0].mxu0 %v720
    %v2443 = vpop.f32.mrb[0].mxu0
    %v2444 = vadd.f32 0.0, %v2443
    %v2445 = vpop.f32.mrb[0].mxu0
    %v2446 = vpop.f32.mrb[0].mxu0
    %v2447 = vadd.f32 0.0, %v2446
    %v2448 = vpop.f32.mrb[0].mxu0
    %2449 = vmatprep.mubr.bf16.mxu0 %v725
    %2450 = vmatmul.mubr.bf16.gmra.mrb[0].mxu0 %v724
    %v2451 = vpop.f32.mrb[0].mxu0
    %v2452 = vadd.f32 0.0, %v2451
    %v2453 = vpop.f32.mrb[0].mxu0
    %v2454 = vpop.f32.mrb[0].mxu0
    %v2455 = vadd.f32 0.0, %v2454
    %v2456 = vpop.f32.mrb[0].mxu0
    %2457 = vmatprep.mubr.bf16.mxu0 %v729
    %2458 = vmatmul.mubr.bf16.gmra.mrb[0].mxu0 %v728
    %v2459 = vpop.f32.mrb[0].mxu0
    %v2460 = vadd.f32 0.0, %v2459
    %v2461 = vpop.f32.mrb[0].mxu0
    %v2462 = vpop.f32.mrb[0].mxu0
    %v2463 = vadd.f32 0.0, %v2462
    %v2464 = vpop.f32.mrb[0].mxu0
    %2465 = vmatprep.mubr.bf16.mxu0 %v733
    %2466 = vmatmul.mubr.bf16.gmra.mrb[0].mxu0 %v732
    %v2467 = vpop.f32.mrb[0].mxu0
    %v2468 = vadd.f32 0.0, %v2467
    %v2469 = vpop.f32.mrb[0].mxu0
    %v2470 = vpop.f32.mrb[0].mxu0
    %v2471 = vadd.f32 0.0, %v2470
    %v2472 = vpop.f32.mrb[0].mxu0
    %2473 = vmatprep.mubr.bf16.mxu0 %v737
    %2474 = vmatmul.mubr.bf16.gmra.mrb[0].mxu0 %v736
    %v2475 = vpop.f32.mrb[0].mxu0
    %v2476 = vadd.f32 0.0, %v2475
    %v2477 = vpop.f32.mrb[0].mxu0
    %v2478 = vpop.f32.mrb[0].mxu0
    %v2479 = vadd.f32 0.0, %v2478
    %v2480 = vpop.f32.mrb[0].mxu0
    %2481 = vmatprep.mubr.bf16.mxu0 %v741
    %2482 = vmatmul.mubr.bf16.gmra.mrb[0].mxu0 %v740
    %v2483 = vpop.f32.mrb[0].mxu0
    %v2484 = vadd.f32 0.0, %v2483
    %v2485 = vpop.f32.mrb[0].mxu0
    %v2486 = vpop.f32.mrb[0].mxu0
    %v2487 = vadd.f32 0.0, %v2486
    %v2488 = vpop.f32.mrb[0].mxu0
    %2489 = vmatprep.mubr.bf16.mxu0 %v745
    %2490 = vmatmul.mubr.bf16.gmra.mrb[0].mxu0 %v744
    %v2491 = vpop.f32.mrb[0].mxu0
    %v2492 = vadd.f32 0.0, %v2491
    %v2493 = vpop.f32.mrb[0].mxu0
    %v2494 = vpop.f32.mrb[0].mxu0
    %v2495 = vadd.f32 0.0, %v2494
    %v2496 = vpop.f32.mrb[0].mxu0
    %2497 = vmatprep.mubr.bf16.mxu0 %v749
    %2498 = vmatmul.mubr.bf16.gmra.mrb[0].mxu0 %v748
    %v2499 = vpop.f32.mrb[0].mxu0
    %v2500 = vadd.f32 0.0, %v2499
    %v2501 = vpop.f32.mrb[0].mxu0
    %v2502 = vpop.f32.mrb[0].mxu0
    %v2503 = vadd.f32 0.0, %v2502
    %v2504 = vpop.f32.mrb[0].mxu0
    %2505 = vmatprep.mubr.bf16.mxu0 %v753
    %2506 = vmatmul.mubr.bf16.gmra.mrb[0].mxu0 %v752
    %v2507 = vpop.f32.mrb[0].mxu0
    %v2508 = vadd.f32 0.0, %v2507
    %v2509 = vpop.f32.mrb[0].mxu0
    %v2510 = vpop.f32.mrb[0].mxu0
    %v2511 = vadd.f32 0.0, %v2510
    %v2512 = vpop.f32.mrb[0].mxu0
    %2513 = vmatprep.mubr.bf16.mxu0 %v757
    %2514 = vmatmul.mubr.bf16.gmra.mrb[0].mxu0 %v756
    %v2515 = vpop.f32.mrb[0].mxu0
    %v2516 = vadd.f32 0.0, %v2515
    %v2517 = vpop.f32.mrb[0].mxu0
    %v2518 = vpop.f32.mrb[0].mxu0
    %v2519 = vadd.f32 0.0, %v2518
    %v2520 = vpop.f32.mrb[0].mxu0
    %2521 = vmatprep.mubr.bf16.mxu0 %v761
    %2522 = vmatmul.mubr.bf16.gmra.mrb[0].mxu0 %v760
    %v2523 = vpop.f32.mrb[0].mxu0
    %v2524 = vadd.f32 0.0, %v2523
    %v2525 = vpop.f32.mrb[0].mxu0
    %v2526 = vpop.f32.mrb[0].mxu0
    %v2527 = vadd.f32 0.0, %v2526
    %v2528 = vpop.f32.mrb[0].mxu0
    %2529 = vmatprep.mubr.bf16.mxu0 %v765
    %2530 = vmatmul.mubr.bf16.gmra.mrb[0].mxu0 %v764
    %v2531 = vpop.f32.mrb[0].mxu0
    %v2532 = vadd.f32 0.0, %v2531
    %v2533 = vpop.f32.mrb[0].mxu0
    %v2534 = vpop.f32.mrb[0].mxu0
    %v2535 = vadd.f32 0.0, %v2534
    %v2536 = vpop.f32.mrb[0].mxu0
    %2537 = vmatprep.mubr.bf16.mxu0 %v769
    %2538 = vmatmul.mubr.bf16.gmra.mrb[0].mxu0 %v768
    %v2539 = vpop.f32.mrb[0].mxu0
    %v2540 = vadd.f32 0.0, %v2539
    %v2541 = vpop.f32.mrb[0].mxu0
    %v2542 = vpop.f32.mrb[0].mxu0
    %v2543 = vadd.f32 0.0, %v2542
    %v2544 = vpop.f32.mrb[0].mxu0
    %2545 = vmatprep.mubr.bf16.mxu0 %v773
    %2546 = vmatmul.mubr.bf16.gmra.mrb[0].mxu0 %v772
    %v2547 = vpop.f32.mrb[0].mxu0
    %v2548 = vadd.f32 0.0, %v2547
    %v2549 = vpop.f32.mrb[0].mxu0
    %v2550 = vpop.f32.mrb[0].mxu0
    %v2551 = vadd.f32 0.0, %v2550
    %v2552 = vpop.f32.mrb[0].mxu0
    %2553 = vmatprep.mubr.bf16.mxu0 %v777
    %2554 = vmatmul.mubr.bf16.gmra.mrb[0].mxu0 %v776
    %v2555 = vpop.f32.mrb[0].mxu0
    %v2556 = vadd.f32 0.0, %v2555
    %v2557 = vpop.f32.mrb[0].mxu0
    %v2558 = vpop.f32.mrb[0].mxu0
    %v2559 = vadd.f32 0.0, %v2558
    %v2560 = vpop.f32.mrb[0].mxu0
    %2561 = vmatprep.mubr.bf16.mxu0 %v781
    %2562 = vmatmul.mubr.bf16.gmra.mrb[0].mxu0 %v780
    %v2563 = vpop.f32.mrb[0].mxu0
    %v2564 = vadd.f32 0.0, %v2563
    %v2565 = vpop.f32.mrb[0].mxu0
    %v2566 = vpop.f32.mrb[0].mxu0
    %v2567 = vadd.f32 0.0, %v2566
    %v2568 = vpop.f32.mrb[0].mxu0
    %2569 = vmatprep.mubr.bf16.mxu0 %v785
    %2570 = vmatmul.mubr.bf16.gmra.mrb[0].mxu0 %v784
    %v2571 = vpop.f32.mrb[0].mxu0
    %v2572 = vadd.f32 0.0, %v2571
    %v2573 = vpop.f32.mrb[0].mxu0
    %v2574 = vpop.f32.mrb[0].mxu0
    %v2575 = vadd.f32 0.0, %v2574
    %v2576 = vpop.f32.mrb[0].mxu0
    %2577 = vmatprep.mubr.bf16.mxu0 %v789
    %2578 = vmatmul.mubr.bf16.gmra.mrb[0].mxu0 %v788
    %v2579 = vpop.f32.mrb[0].mxu0
    %v2580 = vadd.f32 0.0, %v2579
    %v2581 = vpop.f32.mrb[0].mxu0
    %v2582 = vpop.f32.mrb[0].mxu0
    %v2583 = vadd.f32 0.0, %v2582
    %v2584 = vpop.f32.mrb[0].mxu0
    %2585 = vmatprep.mubr.bf16.mxu0 %v793
    %2586 = vmatmul.mubr.bf16.gmra.mrb[0].mxu0 %v792
    %v2587 = vpop.f32.mrb[0].mxu0
    %v2588 = vadd.f32 0.0, %v2587
    %v2589 = vpop.f32.mrb[0].mxu0
    %v2590 = vpop.f32.mrb[0].mxu0
    %v2591 = vadd.f32 0.0, %v2590
    %v2592 = vpop.f32.mrb[0].mxu0
    %2593 = vmatprep.mubr.bf16.mxu0 %v797
    %2594 = vmatmul.mubr.bf16.gmra.mrb[0].mxu0 %v796
    %v2595 = vpop.f32.mrb[0].mxu0
    %v2596 = vadd.f32 0.0, %v2595
    %v2597 = vpop.f32.mrb[0].mxu0
    %v2598 = vpop.f32.mrb[0].mxu0
    %v2599 = vadd.f32 0.0, %v2598
    %v2600 = vpop.f32.mrb[0].mxu0
    %2601 = vmatprep.mubr.bf16.mxu0 %v801
    %2602 = vmatmul.mubr.bf16.gmra.mrb[0].mxu0 %v800
    %v2603 = vpop.f32.mrb[0].mxu0
    %v2604 = vadd.f32 0.0, %v2603
    %v2605 = vpop.f32.mrb[0].mxu0
    %v2606 = vpop.f32.mrb[0].mxu0
    %v2607 = vadd.f32 0.0, %v2606
    %v2608 = vpop.f32.mrb[0].mxu0
    %2609 = vmatprep.mubr.bf16.mxu0 %v805
    %2610 = vmatmul.mubr.bf16.gmra.mrb[0].mxu0 %v804
    %v2611 = vpop.f32.mrb[0].mxu0
    %v2612 = vadd.f32 0.0, %v2611
    %v2613 = vpop.f32.mrb[0].mxu0
    %v2614 = vpop.f32.mrb[0].mxu0
    %v2615 = vadd.f32 0.0, %v2614
    %v2616 = vpop.f32.mrb[0].mxu0
    %2617 = vdwg.mxu0
    %2618 = vmatprep.subr.bf16.mxu0 0
    %2619 = vmatpush1.bf16.msra.mxu0 %v2313
    %2620 = vmatprep.subr.bf16.mxu0 0
    %2621 = vmatpush1.bf16.msra.mxu0 %v2314
    %2622 = vmatprep.subr.bf16.mxu0 0
    %2623 = vmatpush1.bf16.msra.mxu0 %v2315
    %2624 = vmatprep.subr.bf16.mxu0 0
    %2625 = vmatpush1.bf16.msra.mxu0 %v2316
    %2626 = vmatprep.subr.bf16.mxu0 0
    %2627 = vmatpush1.bf16.msra.mxu0 %v2317
    %2628 = vmatprep.subr.bf16.mxu0 0
    %2629 = vmatpush1.bf16.msra.mxu0 %v2318
    %2630 = vmatprep.subr.bf16.mxu0 0
    %2631 = vmatpush1.bf16.msra.mxu0 %v2319
    %2632 = vmatprep.subr.bf16.mxu0 0
    %2633 = vmatpush1.bf16.msra.mxu0 %v2320
    %2634 = vmatprep.subr.bf16.mxu0 0
    %2635 = vmatpush1.bf16.msra.mxu0 %v2321
    %2636 = vmatprep.subr.bf16.mxu0 0
    %2637 = vmatpush1.bf16.msra.mxu0 %v2322
    %2638 = vmatprep.subr.bf16.mxu0 0
    %2639 = vmatpush1.bf16.msra.mxu0 %v2323
    %2640 = vmatprep.subr.bf16.mxu0 0
    %2641 = vmatpush1.bf16.msra.mxu0 %v2324
    %2642 = vmatprep.subr.bf16.mxu0 0
    %2643 = vmatpush1.bf16.msra.mxu0 %v2325
    %2644 = vmatprep.subr.bf16.mxu0 0
    %2645 = vmatpush1.bf16.msra.mxu0 %v2326
    %2646 = vmatprep.subr.bf16.mxu0 0
    %2647 = vmatpush1.bf16.msra.mxu0 %v2327
    %2648 = vmatprep.subr.bf16.mxu0 0
    %2649 = vmatpush1.bf16.msra.mxu0 %v2328
    %2650 = vmatprep.mubr.bf16.mxu0 %v683
    %2651 = vmatmul.mubr.bf16.gmra.mrb[0].mxu0 %v682
    %v2652 = vpop.f32.mrb[0].mxu0
    %v2653 = vadd.f32 %v2364, %v2652
    %v2654 = vpop.f32.mrb[0].mxu0
    %v2655 = vpop.f32.mrb[0].mxu0
    %v2656 = vadd.f32 %v2367, %v2655
    %v2657 = vpop.f32.mrb[0].mxu0
    %2658 = vmatprep.mubr.bf16.mxu0 %v687
    %2659 = vmatmul.mubr.bf16.gmra.mrb[0].mxu0 %v686
    %v2660 = vpop.f32.mrb[0].mxu0
    %v2661 = vadd.f32 %v2372, %v2660
    %v2662 = vpop.f32.mrb[0].mxu0
    %v2663 = vpop.f32.mrb[0].mxu0
    %v2664 = vadd.f32 %v2375, %v2663
    %v2665 = vpop.f32.mrb[0].mxu0
    %2666 = vmatprep.mubr.bf16.mxu0 %v691
    %2667 = vmatmul.mubr.bf16.gmra.mrb[0].mxu0 %v690
    %v2668 = vpop.f32.mrb[0].mxu0
    %v2669 = vadd.f32 %v2380, %v2668
    %v2670 = vpop.f32.mrb[0].mxu0
    %v2671 = vpop.f32.mrb[0].mxu0
    %v2672 = vadd.f32 %v2383, %v2671
    %v2673 = vpop.f32.mrb[0].mxu0
    %2674 = vmatprep.mubr.bf16.mxu0 %v695
    %2675 = vmatmul.mubr.bf16.gmra.mrb[0].mxu0 %v694
    %v2676 = vpop.f32.mrb[0].mxu0
    %v2677 = vadd.f32 %v2388, %v2676
    %v2678 = vpop.f32.mrb[0].mxu0
    %v2679 = vpop.f32.mrb[0].mxu0
    %v2680 = vadd.f32 %v2391, %v2679
    %v2681 = vpop.f32.mrb[0].mxu0
    %2682 = vmatprep.mubr.bf16.mxu0 %v699
    %2683 = vmatmul.mubr.bf16.gmra.mrb[0].mxu0 %v698
    %v2684 = vpop.f32.mrb[0].mxu0
    %v2685 = vadd.f32 %v2396, %v2684
    %v2686 = vpop.f32.mrb[0].mxu0
    %v2687 = vpop.f32.mrb[0].mxu0
    %v2688 = vadd.f32 %v2399, %v2687
    %v2689 = vpop.f32.mrb[0].mxu0
    %2690 = vmatprep.mubr.bf16.mxu0 %v703
    %2691 = vmatmul.mubr.bf16.gmra.mrb[0].mxu0 %v702
    %v2692 = vpop.f32.mrb[0].mxu0
    %v2693 = vadd.f32 %v2404, %v2692
    %v2694 = vpop.f32.mrb[0].mxu0
    %v2695 = vpop.f32.mrb[0].mxu0
    %v2696 = vadd.f32 %v2407, %v2695
    %v2697 = vpop.f32.mrb[0].mxu0
    %2698 = vmatprep.mubr.bf16.mxu0 %v707
    %2699 = vmatmul.mubr.bf16.gmra.mrb[0].mxu0 %v706
    %v2700 = vpop.f32.mrb[0].mxu0
    %v2701 = vadd.f32 %v2412, %v2700
    %v2702 = vpop.f32.mrb[0].mxu0
    %v2703 = vpop.f32.mrb[0].mxu0
    %v2704 = vadd.f32 %v2415, %v2703
    %v2705 = vpop.f32.mrb[0].mxu0
    %2706 = vmatprep.mubr.bf16.mxu0 %v711
    %2707 = vmatmul.mubr.bf16.gmra.mrb[0].mxu0 %v710
    %v2708 = vpop.f32.mrb[0].mxu0
    %v2709 = vadd.f32 %v2420, %v2708
    %v2710 = vpop.f32.mrb[0].mxu0
    %v2711 = vpop.f32.mrb[0].mxu0
    %v2712 = vadd.f32 %v2423, %v2711
    %v2713 = vpop.f32.mrb[0].mxu0
    %2714 = vmatprep.mubr.bf16.mxu0 %v715
    %2715 = vmatmul.mubr.bf16.gmra.mrb[0].mxu0 %v714
    %v2716 = vpop.f32.mrb[0].mxu0
    %v2717 = vadd.f32 %v2428, %v2716
    %v2718 = vpop.f32.mrb[0].mxu0
    %v2719 = vpop.f32.mrb[0].mxu0
    %v2720 = vadd.f32 %v2431, %v2719
    %v2721 = vpop.f32.mrb[0].mxu0
    %2722 = vmatprep.mubr.bf16.mxu0 %v719
    %2723 = vmatmul.mubr.bf16.gmra.mrb[0].mxu0 %v718
    %v2724 = vpop.f32.mrb[0].mxu0
    %v2725 = vadd.f32 %v2436, %v2724
    %v2726 = vpop.f32.mrb[0].mxu0
    %v2727 = vpop.f32.mrb[0].mxu0
    %v2728 = vadd.f32 %v2439, %v2727
    %v2729 = vpop.f32.mrb[0].mxu0
    %2730 = vmatprep.mubr.bf16.mxu0 %v723
    %2731 = vmatmul.mubr.bf16.gmra.mrb[0].mxu0 %v722
    %v2732 = vpop.f32.mrb[0].mxu0
    %v2733 = vadd.f32 %v2444, %v2732
    %v2734 = vpop.f32.mrb[0].mxu0
    %v2735 = vpop.f32.mrb[0].mxu0
    %v2736 = vadd.f32 %v2447, %v2735
    %v2737 = vpop.f32.mrb[0].mxu0
    %2738 = vmatprep.mubr.bf16.mxu0 %v727
    %2739 = vmatmul.mubr.bf16.gmra.mrb[0].mxu0 %v726
    %v2740 = vpop.f32.mrb[0].mxu0
    %v2741 = vadd.f32 %v2452, %v2740
    %v2742 = vpop.f32.mrb[0].mxu0
    %v2743 = vpop.f32.mrb[0].mxu0
    %v2744 = vadd.f32 %v2455, %v2743
    %v2745 = vpop.f32.mrb[0].mxu0
    %2746 = vmatprep.mubr.bf16.mxu0 %v731
    %2747 = vmatmul.mubr.bf16.gmra.mrb[0].mxu0 %v730
    %v2748 = vpop.f32.mrb[0].mxu0
    %v2749 = vadd.f32 %v2460, %v2748
    %v2750 = vpop.f32.mrb[0].mxu0
    %v2751 = vpop.f32.mrb[0].mxu0
    %v2752 = vadd.f32 %v2463, %v2751
    %v2753 = vpop.f32.mrb[0].mxu0
    %2754 = vmatprep.mubr.bf16.mxu0 %v735
    %2755 = vmatmul.mubr.bf16.gmra.mrb[0].mxu0 %v734
    %v2756 = vpop.f32.mrb[0].mxu0
    %v2757 = vadd.f32 %v2468, %v2756
    %v2758 = vpop.f32.mrb[0].mxu0
    %v2759 = vpop.f32.mrb[0].mxu0
    %v2760 = vadd.f32 %v2471, %v2759
    %v2761 = vpop.f32.mrb[0].mxu0
    %2762 = vmatprep.mubr.bf16.mxu0 %v739
    %2763 = vmatmul.mubr.bf16.gmra.mrb[0].mxu0 %v738
    %v2764 = vpop.f32.mrb[0].mxu0
    %v2765 = vadd.f32 %v2476, %v2764
    %v2766 = vpop.f32.mrb[0].mxu0
    %v2767 = vpop.f32.mrb[0].mxu0
    %v2768 = vadd.f32 %v2479, %v2767
    %v2769 = vpop.f32.mrb[0].mxu0
    %2770 = vmatprep.mubr.bf16.mxu0 %v743
    %2771 = vmatmul.mubr.bf16.gmra.mrb[0].mxu0 %v742
    %v2772 = vpop.f32.mrb[0].mxu0
    %v2773 = vadd.f32 %v2484, %v2772
    %v2774 = vpop.f32.mrb[0].mxu0
    %v2775 = vpop.f32.mrb[0].mxu0
    %v2776 = vadd.f32 %v2487, %v2775
    %v2777 = vpop.f32.mrb[0].mxu0
    %2778 = vmatprep.mubr.bf16.mxu0 %v747
    %2779 = vmatmul.mubr.bf16.gmra.mrb[0].mxu0 %v746
    %v2780 = vpop.f32.mrb[0].mxu0
    %v2781 = vadd.f32 %v2492, %v2780
    %v2782 = vpop.f32.mrb[0].mxu0
    %v2783 = vpop.f32.mrb[0].mxu0
    %v2784 = vadd.f32 %v2495, %v2783
    %v2785 = vpop.f32.mrb[0].mxu0
    %2786 = vmatprep.mubr.bf16.mxu0 %v751
    %2787 = vmatmul.mubr.bf16.gmra.mrb[0].mxu0 %v750
    %v2788 = vpop.f32.mrb[0].mxu0
    %v2789 = vadd.f32 %v2500, %v2788
    %v2790 = vpop.f32.mrb[0].mxu0
    %v2791 = vpop.f32.mrb[0].mxu0
    %v2792 = vadd.f32 %v2503, %v2791
    %v2793 = vpop.f32.mrb[0].mxu0
    %2794 = vmatprep.mubr.bf16.mxu0 %v755
    %2795 = vmatmul.mubr.bf16.gmra.mrb[0].mxu0 %v754
    %v2796 = vpop.f32.mrb[0].mxu0
    %v2797 = vadd.f32 %v2508, %v2796
    %v2798 = vpop.f32.mrb[0].mxu0
    %v2799 = vpop.f32.mrb[0].mxu0
    %v2800 = vadd.f32 %v2511, %v2799
    %v2801 = vpop.f32.mrb[0].mxu0
    %2802 = vmatprep.mubr.bf16.mxu0 %v759
    %2803 = vmatmul.mubr.bf16.gmra.mrb[0].mxu0 %v758
    %v2804 = vpop.f32.mrb[0].mxu0
    %v2805 = vadd.f32 %v2516, %v2804
    %v2806 = vpop.f32.mrb[0].mxu0
    %v2807 = vpop.f32.mrb[0].mxu0
    %v2808 = vadd.f32 %v2519, %v2807
    %v2809 = vpop.f32.mrb[0].mxu0
    %2810 = vmatprep.mubr.bf16.mxu0 %v763
    %2811 = vmatmul.mubr.bf16.gmra.mrb[0].mxu0 %v762
    %v2812 = vpop.f32.mrb[0].mxu0
    %v2813 = vadd.f32 %v2524, %v2812
    %v2814 = vpop.f32.mrb[0].mxu0
    %v2815 = vpop.f32.mrb[0].mxu0
    %v2816 = vadd.f32 %v2527, %v2815
    %v2817 = vpop.f32.mrb[0].mxu0
    %2818 = vmatprep.mubr.bf16.mxu0 %v767
    %2819 = vmatmul.mubr.bf16.gmra.mrb[0].mxu0 %v766
    %v2820 = vpop.f32.mrb[0].mxu0
    %v2821 = vadd.f32 %v2532, %v2820
    %v2822 = vpop.f32.mrb[0].mxu0
    %v2823 = vpop.f32.mrb[0].mxu0
    %v2824 = vadd.f32 %v2535, %v2823
    %v2825 = vpop.f32.mrb[0].mxu0
    %2826 = vmatprep.mubr.bf16.mxu0 %v771
    %2827 = vmatmul.mubr.bf16.gmra.mrb[0].mxu0 %v770
    %v2828 = vpop.f32.mrb[0].mxu0
    %v2829 = vadd.f32 %v2540, %v2828
    %v2830 = vpop.f32.mrb[0].mxu0
    %v2831 = vpop.f32.mrb[0].mxu0
    %v2832 = vadd.f32 %v2543, %v2831
    %v2833 = vpop.f32.mrb[0].mxu0
    %2834 = vmatprep.mubr.bf16.mxu0 %v775
    %2835 = vmatmul.mubr.bf16.gmra.mrb[0].mxu0 %v774
    %v2836 = vpop.f32.mrb[0].mxu0
    %v2837 = vadd.f32 %v2548, %v2836
    %v2838 = vpop.f32.mrb[0].mxu0
    %v2839 = vpop.f32.mrb[0].mxu0
    %v2840 = vadd.f32 %v2551, %v2839
    %v2841 = vpop.f32.mrb[0].mxu0
    %2842 = vmatprep.mubr.bf16.mxu0 %v779
    %2843 = vmatmul.mubr.bf16.gmra.mrb[0].mxu0 %v778
    %v2844 = vpop.f32.mrb[0].mxu0
    %v2845 = vadd.f32 %v2556, %v2844
    %v2846 = vpop.f32.mrb[0].mxu0
    %v2847 = vpop.f32.mrb[0].mxu0
    %v2848 = vadd.f32 %v2559, %v2847
    %v2849 = vpop.f32.mrb[0].mxu0
    %2850 = vmatprep.mubr.bf16.mxu0 %v783
    %2851 = vmatmul.mubr.bf16.gmra.mrb[0].mxu0 %v782
    %v2852 = vpop.f32.mrb[0].mxu0
    %v2853 = vadd.f32 %v2564, %v2852
    %v2854 = vpop.f32.mrb[0].mxu0
    %v2855 = vpop.f32.mrb[0].mxu0
    %v2856 = vadd.f32 %v2567, %v2855
    %v2857 = vpop.f32.mrb[0].mxu0
    %2858 = vmatprep.mubr.bf16.mxu0 %v787
    %2859 = vmatmul.mubr.bf16.gmra.mrb[0].mxu0 %v786
    %v2860 = vpop.f32.mrb[0].mxu0
    %v2861 = vadd.f32 %v2572, %v2860
    %v2862 = vpop.f32.mrb[0].mxu0
    %v2863 = vpop.f32.mrb[0].mxu0
    %v2864 = vadd.f32 %v2575, %v2863
    %v2865 = vpop.f32.mrb[0].mxu0
    %2866 = vmatprep.mubr.bf16.mxu0 %v791
    %2867 = vmatmul.mubr.bf16.gmra.mrb[0].mxu0 %v790
    %v2868 = vpop.f32.mrb[0].mxu0
    %v2869 = vadd.f32 %v2580, %v2868
    %v2870 = vpop.f32.mrb[0].mxu0
    %v2871 = vpop.f32.mrb[0].mxu0
    %v2872 = vadd.f32 %v2583, %v2871
    %v2873 = vpop.f32.mrb[0].mxu0
    %2874 = vmatprep.mubr.bf16.mxu0 %v795
    %2875 = vmatmul.mubr.bf16.gmra.mrb[0].mxu0 %v794
    %v2876 = vpop.f32.mrb[0].mxu0
    %v2877 = vadd.f32 %v2588, %v2876
    %v2878 = vpop.f32.mrb[0].mxu0
    %v2879 = vpop.f32.mrb[0].mxu0
    %v2880 = vadd.f32 %v2591, %v2879
    %v2881 = vpop.f32.mrb[0].mxu0
    %2882 = vmatprep.mubr.bf16.mxu0 %v799
    %2883 = vmatmul.mubr.bf16.gmra.mrb[0].mxu0 %v798
    %v2884 = vpop.f32.mrb[0].mxu0
    %v2885 = vadd.f32 %v2596, %v2884
    %v2886 = vpop.f32.mrb[0].mxu0
    %v2887 = vpop.f32.mrb[0].mxu0
    %v2888 = vadd.f32 %v2599, %v2887
    %v2889 = vpop.f32.mrb[0].mxu0
    %2890 = vmatprep.mubr.bf16.mxu0 %v803
    %2891 = vmatmul.mubr.bf16.gmra.mrb[0].mxu0 %v802
    %v2892 = vpop.f32.mrb[0].mxu0
    %v2893 = vadd.f32 %v2604, %v2892
    %v2894 = vpop.f32.mrb[0].mxu0
    %v2895 = vpop.f32.mrb[0].mxu0
    %v2896 = vadd.f32 %v2607, %v2895
    %v2897 = vpop.f32.mrb[0].mxu0
    %2898 = vmatprep.mubr.bf16.mxu0 %v807
    %2899 = vmatmul.mubr.bf16.gmra.mrb[0].mxu0 %v806
    %v2900 = vpop.f32.mrb[0].mxu0
    %v2901 = vadd.f32 %v2612, %v2900
    %v2902 = vpop.f32.mrb[0].mxu0
    %v2903 = vpop.f32.mrb[0].mxu0
    %v2904 = vadd.f32 %v2615, %v2903
    %v2905 = vpop.f32.mrb[0].mxu0
    %2906 = vdwg.mxu0
    %v2907 = vpack.c.bf16 %v2656, %v2653
    %v2908 = vpack.c.bf16 %v2664, %v2661
    %v2909 = vpack.c.bf16 %v2672, %v2669
    %v2910 = vpack.c.bf16 %v2680, %v2677
    %v2911 = vpack.c.bf16 %v2688, %v2685
    %v2912 = vpack.c.bf16 %v2696, %v2693
    %v2913 = vpack.c.bf16 %v2704, %v2701
    %v2914 = vpack.c.bf16 %v2712, %v2709
    %v2915 = vpack.c.bf16 %v2720, %v2717
    %v2916 = vpack.c.bf16 %v2728, %v2725
    %v2917 = vpack.c.bf16 %v2736, %v2733
    %v2918 = vpack.c.bf16 %v2744, %v2741
    %v2919 = vpack.c.bf16 %v2752, %v2749
    %v2920 = vpack.c.bf16 %v2760, %v2757
    %v2921 = vpack.c.bf16 %v2768, %v2765
    %v2922 = vpack.c.bf16 %v2776, %v2773
    %v2923 = vpack.c.bf16 %v2784, %v2781
    %v2924 = vpack.c.bf16 %v2792, %v2789
    %v2925 = vpack.c.bf16 %v2800, %v2797
    %v2926 = vpack.c.bf16 %v2808, %v2805
    %v2927 = vpack.c.bf16 %v2816, %v2813
    %v2928 = vpack.c.bf16 %v2824, %v2821
    %v2929 = vpack.c.bf16 %v2832, %v2829
    %v2930 = vpack.c.bf16 %v2840, %v2837
    %v2931 = vpack.c.bf16 %v2848, %v2845
    %v2932 = vpack.c.bf16 %v2856, %v2853
    %v2933 = vpack.c.bf16 %v2864, %v2861
    %v2934 = vpack.c.bf16 %v2872, %v2869
    %v2935 = vpack.c.bf16 %v2880, %v2877
    %v2936 = vpack.c.bf16 %v2888, %v2885
    %v2937 = vpack.c.bf16 %v2896, %v2893
    %v2938 = vpack.c.bf16 %v2904, %v2901
    %v2939 = vld [vmem:[#allocation7] sm:$0xf]
    %v2940 = vld [vmem:[#allocation7 + $0x4] sm:$0xf]
    %v2941 = vld [vmem:[#allocation7 + $0x8] sm:$0xf]
    %v2942 = vld [vmem:[#allocation7 + $0xc] sm:$0xf]
    %v2943 = vld [vmem:[#allocation7 + $0x10] sm:$0xf]
    %v2944 = vld [vmem:[#allocation7 + $0x14] sm:$0xf]
    %v2945 = vld [vmem:[#allocation7 + $0x18] sm:$0xf]
    %v2946 = vld [vmem:[#allocation7 + $0x1c] sm:$0xf]
    %v2947 = vld [vmem:[#allocation7 + $0x20] sm:$0xf]
    %v2948 = vld [vmem:[#allocation7 + $0x24] sm:$0xf]
    %v2949 = vld [vmem:[#allocation7 + $0x28] sm:$0xf]
    %v2950 = vld [vmem:[#allocation7 + $0x2c] sm:$0xf]
    %v2951 = vld [vmem:[#allocation7 + $0x30] sm:$0xf]
    %v2952 = vld [vmem:[#allocation7 + $0x34] sm:$0xf]
    %v2953 = vld [vmem:[#allocation7 + $0x38] sm:$0xf]
    %v2954 = vld [vmem:[#allocation7 + $0x3c] sm:$0xf]
    %v2971 = vunpack.c.l.b16 %v2939
    %v2972 = vunpack.c.l.b16 %v2940
    %v2973 = vunpack.c.l.b16 %v2941
    %v2974 = vunpack.c.l.b16 %v2942
    %v2975 = vunpack.c.l.b16 %v2943
    %v2976 = vunpack.c.l.b16 %v2944
    %v2977 = vunpack.c.l.b16 %v2945
    %v2978 = vunpack.c.l.b16 %v2946
    %v2979 = vunpack.c.l.b16 %v2947
    %v2980 = vunpack.c.l.b16 %v2948
    %v2981 = vunpack.c.l.b16 %v2949
    %v2982 = vunpack.c.l.b16 %v2950
    %v2983 = vunpack.c.l.b16 %v2951
    %v2984 = vunpack.c.l.b16 %v2952
    %v2985 = vunpack.c.l.b16 %v2953
    %v2986 = vunpack.c.l.b16 %v2954
    %v2987 = vpack.c.b16 %v2972, %v2971
    %v2988 = vpack.c.b16 %v2974, %v2973
    %v2989 = vpack.c.b16 %v2976, %v2975
    %v2990 = vpack.c.b16 %v2978, %v2977
    %v2991 = vpack.c.b16 %v2980, %v2979
    %v2992 = vpack.c.b16 %v2982, %v2981
    %v2993 = vpack.c.b16 %v2984, %v2983
    %v2994 = vpack.c.b16 %v2986, %v2985
    %3003 = vmatprep.subr.bf16.mxu0 0
    %3004 = vmatpush1.bf16.msra.mxu0 %v2987
    %3005 = vmatprep.subr.bf16.mxu0 0
    %3006 = vmatpush1.bf16.msra.mxu0 %v2988
    %3007 = vmatprep.subr.bf16.mxu0 0
    %3008 = vmatpush1.bf16.msra.mxu0 %v2989
    %3009 = vmatprep.subr.bf16.mxu0 0
    %3010 = vmatpush1.bf16.msra.mxu0 %v2990
    %3011 = vmatprep.subr.bf16.mxu0 0
    %3012 = vmatpush1.bf16.msra.mxu0 %v2991
    %3013 = vmatprep.subr.bf16.mxu0 0
    %3014 = vmatpush1.bf16.msra.mxu0 %v2992
    %3015 = vmatprep.subr.bf16.mxu0 0
    %3016 = vmatpush1.bf16.msra.mxu0 %v2993
    %3017 = vmatprep.subr.bf16.mxu0 0
    %3018 = vmatpush1.bf16.msra.mxu0 %v2994
    %3019 = vmatprep.subr.bf16.mxu0 0
    %3020 = vmatpush1.bf16.msra.mxu0 0
    %3021 = vmatprep.subr.bf16.mxu0 0
    %3022 = vmatpush1.bf16.msra.mxu0 0
    %3023 = vmatprep.subr.bf16.mxu0 0
    %3024 = vmatpush1.bf16.msra.mxu0 0
    %3025 = vmatprep.subr.bf16.mxu0 0
    %3026 = vmatpush1.bf16.msra.mxu0 0
    %3027 = vmatprep.subr.bf16.mxu0 0
    %3028 = vmatpush1.bf16.msra.mxu0 0
    %3029 = vmatprep.subr.bf16.mxu0 0
    %3030 = vmatpush1.bf16.msra.mxu0 0
    %3031 = vmatprep.subr.bf16.mxu0 0
    %3032 = vmatpush1.bf16.msra.mxu0 0
    %3033 = vmatprep.subr.bf16.mxu0 0
    %3034 = vmatpush1.bf16.msra.mxu0 0
    %3035 = vmatprep.mubr.bf16.mxu0 0
    %3036 = vmatmul.mubr.bf16.gmra.mrb[0].mxu0 %v2907
    %v3037 = vpop.f32.mrb[0].mxu0
    %v3038 = vadd.f32 0.0, %v3037
    %v3039 = vpop.f32.mrb[0].mxu0
    %v3040 = vpop.f32.mrb[0].mxu0
    %v3041 = vadd.f32 0.0, %v3040
    %v3042 = vpop.f32.mrb[0].mxu0
    %3043 = vmatprep.mubr.bf16.mxu0 0
    %3044 = vmatmul.mubr.bf16.gmra.mrb[0].mxu0 %v2908
    %v3045 = vpop.f32.mrb[0].mxu0
    %v3046 = vadd.f32 0.0, %v3045
    %v3047 = vpop.f32.mrb[0].mxu0
    %v3048 = vpop.f32.mrb[0].mxu0
    %v3049 = vadd.f32 0.0, %v3048
    %v3050 = vpop.f32.mrb[0].mxu0
    %3051 = vmatprep.mubr.bf16.mxu0 0
    %3052 = vmatmul.mubr.bf16.gmra.mrb[0].mxu0 %v2909
    %v3053 = vpop.f32.mrb[0].mxu0
    %v3054 = vadd.f32 0.0, %v3053
    %v3055 = vpop.f32.mrb[0].mxu0
    %v3056 = vpop.f32.mrb[0].mxu0
    %v3057 = vadd.f32 0.0, %v3056
    %v3058 = vpop.f32.mrb[0].mxu0
    %3059 = vmatprep.mubr.bf16.mxu0 0
    %3060 = vmatmul.mubr.bf16.gmra.mrb[0].mxu0 %v2910
    %v3061 = vpop.f32.mrb[0].mxu0
    %v3062 = vadd.f32 0.0, %v3061
    %v3063 = vpop.f32.mrb[0].mxu0
    %v3064 = vpop.f32.mrb[0].mxu0
    %v3065 = vadd.f32 0.0, %v3064
    %v3066 = vpop.f32.mrb[0].mxu0
    %3067 = vmatprep.mubr.bf16.mxu0 0
    %3068 = vmatmul.mubr.bf16.gmra.mrb[0].mxu0 %v2911
    %v3069 = vpop.f32.mrb[0].mxu0
    %v3070 = vadd.f32 0.0, %v3069
    %v3071 = vpop.f32.mrb[0].mxu0
    %v3072 = vpop.f32.mrb[0].mxu0
    %v3073 = vadd.f32 0.0, %v3072
    %v3074 = vpop.f32.mrb[0].mxu0
    %3075 = vmatprep.mubr.bf16.mxu0 0
    %3076 = vmatmul.mubr.bf16.gmra.mrb[0].mxu0 %v2912
    %v3077 = vpop.f32.mrb[0].mxu0
    %v3078 = vadd.f32 0.0, %v3077
    %v3079 = vpop.f32.mrb[0].mxu0
    %v3080 = vpop.f32.mrb[0].mxu0
    %v3081 = vadd.f32 0.0, %v3080
    %v3082 = vpop.f32.mrb[0].mxu0
    %3083 = vmatprep.mubr.bf16.mxu0 0
    %3084 = vmatmul.mubr.bf16.gmra.mrb[0].mxu0 %v2913
    %v3085 = vpop.f32.mrb[0].mxu0
    %v3086 = vadd.f32 0.0, %v3085
    %v3087 = vpop.f32.mrb[0].mxu0
    %v3088 = vpop.f32.mrb[0].mxu0
    %v3089 = vadd.f32 0.0, %v3088
    %v3090 = vpop.f32.mrb[0].mxu0
    %3091 = vmatprep.mubr.bf16.mxu0 0
    %3092 = vmatmul.mubr.bf16.gmra.mrb[0].mxu0 %v2914
    %v3093 = vpop.f32.mrb[0].mxu0
    %v3094 = vadd.f32 0.0, %v3093
    %v3095 = vpop.f32.mrb[0].mxu0
    %v3096 = vpop.f32.mrb[0].mxu0
    %v3097 = vadd.f32 0.0, %v3096
    %v3098 = vpop.f32.mrb[0].mxu0
    %3099 = vmatprep.mubr.bf16.mxu0 0
    %3100 = vmatmul.mubr.bf16.gmra.mrb[0].mxu0 %v2915
    %v3101 = vpop.f32.mrb[0].mxu0
    %v3102 = vadd.f32 0.0, %v3101
    %v3103 = vpop.f32.mrb[0].mxu0
    %v3104 = vpop.f32.mrb[0].mxu0
    %v3105 = vadd.f32 0.0, %v3104
    %v3106 = vpop.f32.mrb[0].mxu0
    %3107 = vmatprep.mubr.bf16.mxu0 0
    %3108 = vmatmul.mubr.bf16.gmra.mrb[0].mxu0 %v2916
    %v3109 = vpop.f32.mrb[0].mxu0
    %v3110 = vadd.f32 0.0, %v3109
    %v3111 = vpop.f32.mrb[0].mxu0
    %v3112 = vpop.f32.mrb[0].mxu0
    %v3113 = vadd.f32 0.0, %v3112
    %v3114 = vpop.f32.mrb[0].mxu0
    %3115 = vmatprep.mubr.bf16.mxu0 0
    %3116 = vmatmul.mubr.bf16.gmra.mrb[0].mxu0 %v2917
    %v3117 = vpop.f32.mrb[0].mxu0
    %v3118 = vadd.f32 0.0, %v3117
    %v3119 = vpop.f32.mrb[0].mxu0
    %v3120 = vpop.f32.mrb[0].mxu0
    %v3121 = vadd.f32 0.0, %v3120
    %v3122 = vpop.f32.mrb[0].mxu0
    %3123 = vmatprep.mubr.bf16.mxu0 0
    %3124 = vmatmul.mubr.bf16.gmra.mrb[0].mxu0 %v2918
    %v3125 = vpop.f32.mrb[0].mxu0
    %v3126 = vadd.f32 0.0, %v3125
    %v3127 = vpop.f32.mrb[0].mxu0
    %v3128 = vpop.f32.mrb[0].mxu0
    %v3129 = vadd.f32 0.0, %v3128
    %v3130 = vpop.f32.mrb[0].mxu0
    %3131 = vmatprep.mubr.bf16.mxu0 0
    %3132 = vmatmul.mubr.bf16.gmra.mrb[0].mxu0 %v2919
    %v3133 = vpop.f32.mrb[0].mxu0
    %v3134 = vadd.f32 0.0, %v3133
    %v3135 = vpop.f32.mrb[0].mxu0
    %v3136 = vpop.f32.mrb[0].mxu0
    %v3137 = vadd.f32 0.0, %v3136
    %v3138 = vpop.f32.mrb[0].mxu0
    %3139 = vmatprep.mubr.bf16.mxu0 0
    %3140 = vmatmul.mubr.bf16.gmra.mrb[0].mxu0 %v2920
    %v3141 = vpop.f32.mrb[0].mxu0
    %v3142 = vadd.f32 0.0, %v3141
    %v3143 = vpop.f32.mrb[0].mxu0
    %v3144 = vpop.f32.mrb[0].mxu0
    %v3145 = vadd.f32 0.0, %v3144
    %v3146 = vpop.f32.mrb[0].mxu0
    %3147 = vmatprep.mubr.bf16.mxu0 0
    %3148 = vmatmul.mubr.bf16.gmra.mrb[0].mxu0 %v2921
    %v3149 = vpop.f32.mrb[0].mxu0
    %v3150 = vadd.f32 0.0, %v3149
    %v3151 = vpop.f32.mrb[0].mxu0
    %v3152 = vpop.f32.mrb[0].mxu0
    %v3153 = vadd.f32 0.0, %v3152
    %v3154 = vpop.f32.mrb[0].mxu0
    %3155 = vmatprep.mubr.bf16.mxu0 0
    %3156 = vmatmul.mubr.bf16.gmra.mrb[0].mxu0 %v2922
    %v3157 = vpop.f32.mrb[0].mxu0
    %v3158 = vadd.f32 0.0, %v3157
    %v3159 = vpop.f32.mrb[0].mxu0
    %v3160 = vpop.f32.mrb[0].mxu0
    %v3161 = vadd.f32 0.0, %v3160
    %v3162 = vpop.f32.mrb[0].mxu0
    %3163 = vmatprep.mubr.bf16.mxu0 0
    %3164 = vmatmul.mubr.bf16.gmra.mrb[0].mxu0 %v2923
    %v3165 = vpop.f32.mrb[0].mxu0
    %v3166 = vadd.f32 0.0, %v3165
    %v3167 = vpop.f32.mrb[0].mxu0
    %v3168 = vpop.f32.mrb[0].mxu0
    %v3169 = vadd.f32 0.0, %v3168
    %v3170 = vpop.f32.mrb[0].mxu0
    %3171 = vmatprep.mubr.bf16.mxu0 0
    %3172 = vmatmul.mubr.bf16.gmra.mrb[0].mxu0 %v2924
    %v3173 = vpop.f32.mrb[0].mxu0
    %v3174 = vadd.f32 0.0, %v3173
    %v3175 = vpop.f32.mrb[0].mxu0
    %v3176 = vpop.f32.mrb[0].mxu0
    %v3177 = vadd.f32 0.0, %v3176
    %v3178 = vpop.f32.mrb[0].mxu0
    %3179 = vmatprep.mubr.bf16.mxu0 0
    %3180 = vmatmul.mubr.bf16.gmra.mrb[0].mxu0 %v2925
    %v3181 = vpop.f32.mrb[0].mxu0
    %v3182 = vadd.f32 0.0, %v3181
    %v3183 = vpop.f32.mrb[0].mxu0
    %v3184 = vpop.f32.mrb[0].mxu0
    %v3185 = vadd.f32 0.0, %v3184
    %v3186 = vpop.f32.mrb[0].mxu0
    %3187 = vmatprep.mubr.bf16.mxu0 0
    %3188 = vmatmul.mubr.bf16.gmra.mrb[0].mxu0 %v2926
    %v3189 = vpop.f32.mrb[0].mxu0
    %v3190 = vadd.f32 0.0, %v3189
    %v3191 = vpop.f32.mrb[0].mxu0
    %v3192 = vpop.f32.mrb[0].mxu0
    %v3193 = vadd.f32 0.0, %v3192
    %v3194 = vpop.f32.mrb[0].mxu0
    %3195 = vmatprep.mubr.bf16.mxu0 0
    %3196 = vmatmul.mubr.bf16.gmra.mrb[0].mxu0 %v2927
    %v3197 = vpop.f32.mrb[0].mxu0
    %v3198 = vadd.f32 0.0, %v3197
    %v3199 = vpop.f32.mrb[0].mxu0
    %v3200 = vpop.f32.mrb[0].mxu0
    %v3201 = vadd.f32 0.0, %v3200
    %v3202 = vpop.f32.mrb[0].mxu0
    %3203 = vmatprep.mubr.bf16.mxu0 0
    %3204 = vmatmul.mubr.bf16.gmra.mrb[0].mxu0 %v2928
    %v3205 = vpop.f32.mrb[0].mxu0
    %v3206 = vadd.f32 0.0, %v3205
    %v3207 = vpop.f32.mrb[0].mxu0
    %v3208 = vpop.f32.mrb[0].mxu0
    %v3209 = vadd.f32 0.0, %v3208
    %v3210 = vpop.f32.mrb[0].mxu0
    %3211 = vmatprep.mubr.bf16.mxu0 0
    %3212 = vmatmul.mubr.bf16.gmra.mrb[0].mxu0 %v2929
    %v3213 = vpop.f32.mrb[0].mxu0
    %v3214 = vadd.f32 0.0, %v3213
    %v3215 = vpop.f32.mrb[0].mxu0
    %v3216 = vpop.f32.mrb[0].mxu0
    %v3217 = vadd.f32 0.0, %v3216
    %v3218 = vpop.f32.mrb[0].mxu0
    %3219 = vmatprep.mubr.bf16.mxu0 0
    %3220 = vmatmul.mubr.bf16.gmra.mrb[0].mxu0 %v2930
    %v3221 = vpop.f32.mrb[0].mxu0
    %v3222 = vadd.f32 0.0, %v3221
    %v3223 = vpop.f32.mrb[0].mxu0
    %v3224 = vpop.f32.mrb[0].mxu0
    %v3225 = vadd.f32 0.0, %v3224
    %v3226 = vpop.f32.mrb[0].mxu0
    %3227 = vmatprep.mubr.bf16.mxu0 0
    %3228 = vmatmul.mubr.bf16.gmra.mrb[0].mxu0 %v2931
    %v3229 = vpop.f32.mrb[0].mxu0
    %v3230 = vadd.f32 0.0, %v3229
    %v3231 = vpop.f32.mrb[0].mxu0
    %v3232 = vpop.f32.mrb[0].mxu0
    %v3233 = vadd.f32 0.0, %v3232
    %v3234 = vpop.f32.mrb[0].mxu0
    %3235 = vmatprep.mubr.bf16.mxu0 0
    %3236 = vmatmul.mubr.bf16.gmra.mrb[0].mxu0 %v2932
    %v3237 = vpop.f32.mrb[0].mxu0
    %v3238 = vadd.f32 0.0, %v3237
    %v3239 = vpop.f32.mrb[0].mxu0
    %v3240 = vpop.f32.mrb[0].mxu0
    %v3241 = vadd.f32 0.0, %v3240
    %v3242 = vpop.f32.mrb[0].mxu0
    %3243 = vmatprep.mubr.bf16.mxu0 0
    %3244 = vmatmul.mubr.bf16.gmra.mrb[0].mxu0 %v2933
    %v3245 = vpop.f32.mrb[0].mxu0
    %v3246 = vadd.f32 0.0, %v3245
    %v3247 = vpop.f32.mrb[0].mxu0
    %v3248 = vpop.f32.mrb[0].mxu0
    %v3249 = vadd.f32 0.0, %v3248
    %v3250 = vpop.f32.mrb[0].mxu0
    %3251 = vmatprep.mubr.bf16.mxu0 0
    %3252 = vmatmul.mubr.bf16.gmra.mrb[0].mxu0 %v2934
    %v3253 = vpop.f32.mrb[0].mxu0
    %v3254 = vadd.f32 0.0, %v3253
    %v3255 = vpop.f32.mrb[0].mxu0
    %v3256 = vpop.f32.mrb[0].mxu0
    %v3257 = vadd.f32 0.0, %v3256
    %v3258 = vpop.f32.mrb[0].mxu0
    %3259 = vmatprep.mubr.bf16.mxu0 0
    %3260 = vmatmul.mubr.bf16.gmra.mrb[0].mxu0 %v2935
    %v3261 = vpop.f32.mrb[0].mxu0
    %v3262 = vadd.f32 0.0, %v3261
    %v3263 = vpop.f32.mrb[0].mxu0
    %v3264 = vpop.f32.mrb[0].mxu0
    %v3265 = vadd.f32 0.0, %v3264
    %v3266 = vpop.f32.mrb[0].mxu0
    %3267 = vmatprep.mubr.bf16.mxu0 0
    %3268 = vmatmul.mubr.bf16.gmra.mrb[0].mxu0 %v2936
    %v3269 = vpop.f32.mrb[0].mxu0
    %v3270 = vadd.f32 0.0, %v3269
    %v3271 = vpop.f32.mrb[0].mxu0
    %v3272 = vpop.f32.mrb[0].mxu0
    %v3273 = vadd.f32 0.0, %v3272
    %v3274 = vpop.f32.mrb[0].mxu0
    %3275 = vmatprep.mubr.bf16.mxu0 0
    %3276 = vmatmul.mubr.bf16.gmra.mrb[0].mxu0 %v2937
    %v3277 = vpop.f32.mrb[0].mxu0
    %v3278 = vadd.f32 0.0, %v3277
    %v3279 = vpop.f32.mrb[0].mxu0
    %v3280 = vpop.f32.mrb[0].mxu0
    %v3281 = vadd.f32 0.0, %v3280
    %v3282 = vpop.f32.mrb[0].mxu0
    %3283 = vmatprep.mubr.bf16.mxu0 0
    %3284 = vmatmul.mubr.bf16.gmra.mrb[0].mxu0 %v2938
    %v3285 = vpop.f32.mrb[0].mxu0
    %v3286 = vadd.f32 0.0, %v3285
    %v3287 = vpop.f32.mrb[0].mxu0
    %v3288 = vpop.f32.mrb[0].mxu0
    %v3289 = vadd.f32 0.0, %v3288
    %v3290 = vpop.f32.mrb[0].mxu0
    %3291 = vdwg.mxu0
    %v3292 = vld [vmem:[%s6] sm:$0x1]
    %v3294 = vlaneseq
    %v3295 = vshrl.u32 %v3294, 7
    %v3296 = vsub.s32 0, %v3295
    %v3297 = vrot.slane %v3292, %v3296
    %v3299 = vmul.f32 %v3038, %v3297
    %v3300 = vmul.f32 %v3041, %v3297
    %v3301 = vmul.f32 %v3046, %v3297
    %v3302 = vmul.f32 %v3049, %v3297
    %v3303 = vmul.f32 %v3054, %v3297
    %v3304 = vmul.f32 %v3057, %v3297
    %v3305 = vmul.f32 %v3062, %v3297
    %v3306 = vmul.f32 %v3065, %v3297
    %v3307 = vmul.f32 %v3070, %v3297
    %v3308 = vmul.f32 %v3073, %v3297
    %v3309 = vmul.f32 %v3078, %v3297
    %v3310 = vmul.f32 %v3081, %v3297
    %v3311 = vmul.f32 %v3086, %v3297
    %v3312 = vmul.f32 %v3089, %v3297
    %v3313 = vmul.f32 %v3094, %v3297
    %v3314 = vmul.f32 %v3097, %v3297
    %v3315 = vmul.f32 %v3102, %v3297
    %v3316 = vmul.f32 %v3105, %v3297
    %v3317 = vmul.f32 %v3110, %v3297
    %v3318 = vmul.f32 %v3113, %v3297
    %v3319 = vmul.f32 %v3118, %v3297
    %v3320 = vmul.f32 %v3121, %v3297
    %v3321 = vmul.f32 %v3126, %v3297
    %v3322 = vmul.f32 %v3129, %v3297
    %v3323 = vmul.f32 %v3134, %v3297
    %v3324 = vmul.f32 %v3137, %v3297
    %v3325 = vmul.f32 %v3142, %v3297
    %v3326 = vmul.f32 %v3145, %v3297
    %v3327 = vmul.f32 %v3150, %v3297
    %v3328 = vmul.f32 %v3153, %v3297
    %v3329 = vmul.f32 %v3158, %v3297
    %v3330 = vmul.f32 %v3161, %v3297
    %v3331 = vmul.f32 %v3166, %v3297
    %v3332 = vmul.f32 %v3169, %v3297
    %v3333 = vmul.f32 %v3174, %v3297
    %v3334 = vmul.f32 %v3177, %v3297
    %v3335 = vmul.f32 %v3182, %v3297
    %v3336 = vmul.f32 %v3185, %v3297
    %v3337 = vmul.f32 %v3190, %v3297
    %v3338 = vmul.f32 %v3193, %v3297
    %v3339 = vmul.f32 %v3198, %v3297
    %v3340 = vmul.f32 %v3201, %v3297
    %v3341 = vmul.f32 %v3206, %v3297
    %v3342 = vmul.f32 %v3209, %v3297
    %v3343 = vmul.f32 %v3214, %v3297
    %v3344 = vmul.f32 %v3217, %v3297
    %v3345 = vmul.f32 %v3222, %v3297
    %v3346 = vmul.f32 %v3225, %v3297
    %v3347 = vmul.f32 %v3230, %v3297
    %v3348 = vmul.f32 %v3233, %v3297
    %v3349 = vmul.f32 %v3238, %v3297
    %v3350 = vmul.f32 %v3241, %v3297
    %v3351 = vmul.f32 %v3246, %v3297
    %v3352 = vmul.f32 %v3249, %v3297
    %v3353 = vmul.f32 %v3254, %v3297
    %v3354 = vmul.f32 %v3257, %v3297
    %v3355 = vmul.f32 %v3262, %v3297
    %v3356 = vmul.f32 %v3265, %v3297
    %v3357 = vmul.f32 %v3270, %v3297
    %v3358 = vmul.f32 %v3273, %v3297
    %v3359 = vmul.f32 %v3278, %v3297
    %v3360 = vmul.f32 %v3281, %v3297
    %v3361 = vmul.f32 %v3286, %v3297
    %v3362 = vmul.f32 %v3289, %v3297
    %v3363 = vld [vmem:[%s7] sm:$0x1]
    %v3365 = vlaneseq
    %v3366 = vshrl.u32 %v3365, 7
    %v3367 = vsub.s32 0, %v3366
    %v3368 = vrot.slane %v3363, %v3367
    %v3370 = vadd.f32 %v3299, %v3368
    %v3371 = vadd.f32 %v3300, %v3368
    %v3372 = vadd.f32 %v3301, %v3368
    %v3373 = vadd.f32 %v3302, %v3368
    %v3374 = vadd.f32 %v3303, %v3368
    %v3375 = vadd.f32 %v3304, %v3368
    %v3376 = vadd.f32 %v3305, %v3368
    %v3377 = vadd.f32 %v3306, %v3368
    %v3378 = vadd.f32 %v3307, %v3368
    %v3379 = vadd.f32 %v3308, %v3368
    %v3380 = vadd.f32 %v3309, %v3368
    %v3381 = vadd.f32 %v3310, %v3368
    %v3382 = vadd.f32 %v3311, %v3368
    %v3383 = vadd.f32 %v3312, %v3368
    %v3384 = vadd.f32 %v3313, %v3368
    %v3385 = vadd.f32 %v3314, %v3368
    %v3386 = vadd.f32 %v3315, %v3368
    %v3387 = vadd.f32 %v3316, %v3368
    %v3388 = vadd.f32 %v3317, %v3368
    %v3389 = vadd.f32 %v3318, %v3368
    %v3390 = vadd.f32 %v3319, %v3368
    %v3391 = vadd.f32 %v3320, %v3368
    %v3392 = vadd.f32 %v3321, %v3368
    %v3393 = vadd.f32 %v3322, %v3368
    %v3394 = vadd.f32 %v3323, %v3368
    %v3395 = vadd.f32 %v3324, %v3368
    %v3396 = vadd.f32 %v3325, %v3368
    %v3397 = vadd.f32 %v3326, %v3368
    %v3398 = vadd.f32 %v3327, %v3368
    %v3399 = vadd.f32 %v3328, %v3368
    %v3400 = vadd.f32 %v3329, %v3368
    %v3401 = vadd.f32 %v3330, %v3368
    %v3402 = vadd.f32 %v3331, %v3368
    %v3403 = vadd.f32 %v3332, %v3368
    %v3404 = vadd.f32 %v3333, %v3368
    %v3405 = vadd.f32 %v3334, %v3368
    %v3406 = vadd.f32 %v3335, %v3368
    %v3407 = vadd.f32 %v3336, %v3368
    %v3408 = vadd.f32 %v3337, %v3368
    %v3409 = vadd.f32 %v3338, %v3368
    %v3410 = vadd.f32 %v3339, %v3368
    %v3411 = vadd.f32 %v3340, %v3368
    %v3412 = vadd.f32 %v3341, %v3368
    %v3413 = vadd.f32 %v3342, %v3368
    %v3414 = vadd.f32 %v3343, %v3368
    %v3415 = vadd.f32 %v3344, %v3368
    %v3416 = vadd.f32 %v3345, %v3368
    %v3417 = vadd.f32 %v3346, %v3368
    %v3418 = vadd.f32 %v3347, %v3368
    %v3419 = vadd.f32 %v3348, %v3368
    %v3420 = vadd.f32 %v3349, %v3368
    %v3421 = vadd.f32 %v3350, %v3368
    %v3422 = vadd.f32 %v3351, %v3368
    %v3423 = vadd.f32 %v3352, %v3368
    %v3424 = vadd.f32 %v3353, %v3368
    %v3425 = vadd.f32 %v3354, %v3368
    %v3426 = vadd.f32 %v3355, %v3368
    %v3427 = vadd.f32 %v3356, %v3368
    %v3428 = vadd.f32 %v3357, %v3368
    %v3429 = vadd.f32 %v3358, %v3368
    %v3430 = vadd.f32 %v3359, %v3368
    %v3431 = vadd.f32 %v3360, %v3368
    %v3432 = vadd.f32 %v3361, %v3368
    %v3433 = vadd.f32 %v3362, %v3368
    %v3434 = vmax.f32 %v3370, 0.0
    %v3435 = vmax.f32 %v3371, 0.0
    %v3436 = vmax.f32 %v3372, 0.0
    %v3437 = vmax.f32 %v3373, 0.0
    %v3438 = vmax.f32 %v3374, 0.0
    %v3439 = vmax.f32 %v3375, 0.0
    %v3440 = vmax.f32 %v3376, 0.0
    %v3441 = vmax.f32 %v3377, 0.0
    %v3442 = vmax.f32 %v3378, 0.0
    %v3443 = vmax.f32 %v3379, 0.0
    %v3444 = vmax.f32 %v3380, 0.0
    %v3445 = vmax.f32 %v3381, 0.0
    %v3446 = vmax.f32 %v3382, 0.0
    %v3447 = vmax.f32 %v3383, 0.0
    %v3448 = vmax.f32 %v3384, 0.0
    %v3449 = vmax.f32 %v3385, 0.0
    %v3450 = vmax.f32 %v3386, 0.0
    %v3451 = vmax.f32 %v3387, 0.0
    %v3452 = vmax.f32 %v3388, 0.0
    %v3453 = vmax.f32 %v3389, 0.0
    %v3454 = vmax.f32 %v3390, 0.0
    %v3455 = vmax.f32 %v3391, 0.0
    %v3456 = vmax.f32 %v3392, 0.0
    %v3457 = vmax.f32 %v3393, 0.0
    %v3458 = vmax.f32 %v3394, 0.0
    %v3459 = vmax.f32 %v3395, 0.0
    %v3460 = vmax.f32 %v3396, 0.0
    %v3461 = vmax.f32 %v3397, 0.0
    %v3462 = vmax.f32 %v3398, 0.0
    %v3463 = vmax.f32 %v3399, 0.0
    %v3464 = vmax.f32 %v3400, 0.0
    %v3465 = vmax.f32 %v3401, 0.0
    %v3466 = vmax.f32 %v3402, 0.0
    %v3467 = vmax.f32 %v3403, 0.0
    %v3468 = vmax.f32 %v3404, 0.0
    %v3469 = vmax.f32 %v3405, 0.0
    %v3470 = vmax.f32 %v3406, 0.0
    %v3471 = vmax.f32 %v3407, 0.0
    %v3472 = vmax.f32 %v3408, 0.0
    %v3473 = vmax.f32 %v3409, 0.0
    %v3474 = vmax.f32 %v3410, 0.0
    %v3475 = vmax.f32 %v3411, 0.0
    %v3476 = vmax.f32 %v3412, 0.0
    %v3477 = vmax.f32 %v3413, 0.0
    %v3478 = vmax.f32 %v3414, 0.0
    %v3479 = vmax.f32 %v3415, 0.0
    %v3480 = vmax.f32 %v3416, 0.0
    %v3481 = vmax.f32 %v3417, 0.0
    %v3482 = vmax.f32 %v3418, 0.0
    %v3483 = vmax.f32 %v3419, 0.0
    %v3484 = vmax.f32 %v3420, 0.0
    %v3485 = vmax.f32 %v3421, 0.0
    %v3486 = vmax.f32 %v3422, 0.0
    %v3487 = vmax.f32 %v3423, 0.0
    %v3488 = vmax.f32 %v3424, 0.0
    %v3489 = vmax.f32 %v3425, 0.0
    %v3490 = vmax.f32 %v3426, 0.0
    %v3491 = vmax.f32 %v3427, 0.0
    %v3492 = vmax.f32 %v3428, 0.0
    %v3493 = vmax.f32 %v3429, 0.0
    %v3494 = vmax.f32 %v3430, 0.0
    %v3495 = vmax.f32 %v3431, 0.0
    %v3496 = vmax.f32 %v3432, 0.0
    %v3497 = vmax.f32 %v3433, 0.0
    %v3498 = vpack.c.bf16 %v3435, %v3434
    %v3499 = vpack.c.bf16 %v3437, %v3436
    %v3500 = vpack.c.bf16 %v3439, %v3438
    %v3501 = vpack.c.bf16 %v3441, %v3440
    %v3502 = vpack.c.bf16 %v3443, %v3442
    %v3503 = vpack.c.bf16 %v3445, %v3444
    %v3504 = vpack.c.bf16 %v3447, %v3446
    %v3505 = vpack.c.bf16 %v3449, %v3448
    %v3506 = vpack.c.bf16 %v3451, %v3450
    %v3507 = vpack.c.bf16 %v3453, %v3452
    %v3508 = vpack.c.bf16 %v3455, %v3454
    %v3509 = vpack.c.bf16 %v3457, %v3456
    %v3510 = vpack.c.bf16 %v3459, %v3458
    %v3511 = vpack.c.bf16 %v3461, %v3460
    %v3512 = vpack.c.bf16 %v3463, %v3462
    %v3513 = vpack.c.bf16 %v3465, %v3464
    %v3514 = vpack.c.bf16 %v3467, %v3466
    %v3515 = vpack.c.bf16 %v3469, %v3468
    %v3516 = vpack.c.bf16 %v3471, %v3470
    %v3517 = vpack.c.bf16 %v3473, %v3472
    %v3518 = vpack.c.bf16 %v3475, %v3474
    %v3519 = vpack.c.bf16 %v3477, %v3476
    %v3520 = vpack.c.bf16 %v3479, %v3478
    %v3521 = vpack.c.bf16 %v3481, %v3480
    %v3522 = vpack.c.bf16 %v3483, %v3482
    %v3523 = vpack.c.bf16 %v3485, %v3484
    %v3524 = vpack.c.bf16 %v3487, %v3486
    %v3525 = vpack.c.bf16 %v3489, %v3488
    %v3526 = vpack.c.bf16 %v3491, %v3490
    %v3527 = vpack.c.bf16 %v3493, %v3492
    %v3528 = vpack.c.bf16 %v3495, %v3494
    %v3529 = vpack.c.bf16 %v3497, %v3496
    %v3530 = vld [vmem:[#allocation9] sm:$0xf]
    %v3531 = vld [vmem:[#allocation9 + $0x4] sm:$0xf]
    %v3532 = vld [vmem:[#allocation9 + $0x8] sm:$0xf]
    %v3533 = vld [vmem:[#allocation9 + $0xc] sm:$0xf]
    %v3534 = vld [vmem:[#allocation9 + $0x10] sm:$0xf]
    %v3535 = vld [vmem:[#allocation9 + $0x14] sm:$0xf]
    %v3536 = vld [vmem:[#allocation9 + $0x18] sm:$0xf]
    %v3537 = vld [vmem:[#allocation9 + $0x1c] sm:$0xf]
    %v3538 = vld [vmem:[#allocation9 + $0x20] sm:$0xf]
    %v3539 = vld [vmem:[#allocation9 + $0x24] sm:$0xf]
    %v3540 = vld [vmem:[#allocation9 + $0x28] sm:$0xf]
    %v3541 = vld [vmem:[#allocation9 + $0x2c] sm:$0xf]
    %v3542 = vld [vmem:[#allocation9 + $0x30] sm:$0xf]
    %v3543 = vld [vmem:[#allocation9 + $0x34] sm:$0xf]
    %v3544 = vld [vmem:[#allocation9 + $0x38] sm:$0xf]
    %v3545 = vld [vmem:[#allocation9 + $0x3c] sm:$0xf]
    %v3562 = vunpack.c.l.b16 %v3530
    %v3563 = vunpack.c.l.b16 %v3531
    %v3564 = vunpack.c.l.b16 %v3532
    %v3565 = vunpack.c.l.b16 %v3533
    %v3566 = vunpack.c.l.b16 %v3534
    %v3567 = vunpack.c.l.b16 %v3535
    %v3568 = vunpack.c.l.b16 %v3536
    %v3569 = vunpack.c.l.b16 %v3537
    %v3570 = vunpack.c.l.b16 %v3538
    %v3571 = vunpack.c.l.b16 %v3539
    %v3572 = vunpack.c.l.b16 %v3540
    %v3573 = vunpack.c.l.b16 %v3541
    %v3574 = vunpack.c.l.b16 %v3542
    %v3575 = vunpack.c.l.b16 %v3543
    %v3576 = vunpack.c.l.b16 %v3544
    %v3577 = vunpack.c.l.b16 %v3545
    %v3578 = vpack.c.b16 %v3563, %v3562
    %v3579 = vpack.c.b16 %v3565, %v3564
    %v3580 = vpack.c.b16 %v3567, %v3566
    %v3581 = vpack.c.b16 %v3569, %v3568
    %v3582 = vpack.c.b16 %v3571, %v3570
    %v3583 = vpack.c.b16 %v3573, %v3572
    %v3584 = vpack.c.b16 %v3575, %v3574
    %v3585 = vpack.c.b16 %v3577, %v3576
    %3594 = vmatprep.subr.bf16.mxu0 0
    %3595 = vmatpush1.bf16.msra.mxu0 %v3578
    %3596 = vmatprep.subr.bf16.mxu0 0
    %3597 = vmatpush1.bf16.msra.mxu0 %v3579
    %3598 = vmatprep.subr.bf16.mxu0 0
    %3599 = vmatpush1.bf16.msra.mxu0 %v3580
    %3600 = vmatprep.subr.bf16.mxu0 0
    %3601 = vmatpush1.bf16.msra.mxu0 %v3581
    %3602 = vmatprep.subr.bf16.mxu0 0
    %3603 = vmatpush1.bf16.msra.mxu0 %v3582
    %3604 = vmatprep.subr.bf16.mxu0 0
    %3605 = vmatpush1.bf16.msra.mxu0 %v3583
    %3606 = vmatprep.subr.bf16.mxu0 0
    %3607 = vmatpush1.bf16.msra.mxu0 %v3584
    %3608 = vmatprep.subr.bf16.mxu0 0
    %3609 = vmatpush1.bf16.msra.mxu0 %v3585
    %3610 = vmatprep.subr.bf16.mxu0 0
    %3611 = vmatpush1.bf16.msra.mxu0 0
    %3612 = vmatprep.subr.bf16.mxu0 0
    %3613 = vmatpush1.bf16.msra.mxu0 0
    %3614 = vmatprep.subr.bf16.mxu0 0
    %3615 = vmatpush1.bf16.msra.mxu0 0
    %3616 = vmatprep.subr.bf16.mxu0 0
    %3617 = vmatpush1.bf16.msra.mxu0 0
    %3618 = vmatprep.subr.bf16.mxu0 0
    %3619 = vmatpush1.bf16.msra.mxu0 0
    %3620 = vmatprep.subr.bf16.mxu0 0
    %3621 = vmatpush1.bf16.msra.mxu0 0
    %3622 = vmatprep.subr.bf16.mxu0 0
    %3623 = vmatpush1.bf16.msra.mxu0 0
    %3624 = vmatprep.subr.bf16.mxu0 0
    %3625 = vmatpush1.bf16.msra.mxu0 0
    %3626 = vmatprep.mubr.bf16.mxu0 0
    %3627 = vmatmul.mubr.bf16.gmra.mrb[0].mxu0 %v3498
    %v3628 = vpop.f32.mrb[0].mxu0
    %v3629 = vadd.f32 0.0, %v3628
    %v3630 = vpop.f32.mrb[0].mxu0
    %v3631 = vpop.f32.mrb[0].mxu0
    %v3632 = vadd.f32 0.0, %v3631
    %v3633 = vpop.f32.mrb[0].mxu0
    %3634 = vmatprep.mubr.bf16.mxu0 0
    %3635 = vmatmul.mubr.bf16.gmra.mrb[0].mxu0 %v3499
    %v3636 = vpop.f32.mrb[0].mxu0
    %v3637 = vadd.f32 0.0, %v3636
    %v3638 = vpop.f32.mrb[0].mxu0
    %v3639 = vpop.f32.mrb[0].mxu0
    %v3640 = vadd.f32 0.0, %v3639
    %v3641 = vpop.f32.mrb[0].mxu0
    %3642 = vmatprep.mubr.bf16.mxu0 0
    %3643 = vmatmul.mubr.bf16.gmra.mrb[0].mxu0 %v3500
    %v3644 = vpop.f32.mrb[0].mxu0
    %v3645 = vadd.f32 0.0, %v3644
    %v3646 = vpop.f32.mrb[0].mxu0
    %v3647 = vpop.f32.mrb[0].mxu0
    %v3648 = vadd.f32 0.0, %v3647
    %v3649 = vpop.f32.mrb[0].mxu0
    %3650 = vmatprep.mubr.bf16.mxu0 0
    %3651 = vmatmul.mubr.bf16.gmra.mrb[0].mxu0 %v3501
    %v3652 = vpop.f32.mrb[0].mxu0
    %v3653 = vadd.f32 0.0, %v3652
    %v3654 = vpop.f32.mrb[0].mxu0
    %v3655 = vpop.f32.mrb[0].mxu0
    %v3656 = vadd.f32 0.0, %v3655
    %v3657 = vpop.f32.mrb[0].mxu0
    %3658 = vmatprep.mubr.bf16.mxu0 0
    %3659 = vmatmul.mubr.bf16.gmra.mrb[0].mxu0 %v3502
    %v3660 = vpop.f32.mrb[0].mxu0
    %v3661 = vadd.f32 0.0, %v3660
    %v3662 = vpop.f32.mrb[0].mxu0
    %v3663 = vpop.f32.mrb[0].mxu0
    %v3664 = vadd.f32 0.0, %v3663
    %v3665 = vpop.f32.mrb[0].mxu0
    %3666 = vmatprep.mubr.bf16.mxu0 0
    %3667 = vmatmul.mubr.bf16.gmra.mrb[0].mxu0 %v3503
    %v3668 = vpop.f32.mrb[0].mxu0
    %v3669 = vadd.f32 0.0, %v3668
    %v3670 = vpop.f32.mrb[0].mxu0
    %v3671 = vpop.f32.mrb[0].mxu0
    %v3672 = vadd.f32 0.0, %v3671
    %v3673 = vpop.f32.mrb[0].mxu0
    %3674 = vmatprep.mubr.bf16.mxu0 0
    %3675 = vmatmul.mubr.bf16.gmra.mrb[0].mxu0 %v3504
    %v3676 = vpop.f32.mrb[0].mxu0
    %v3677 = vadd.f32 0.0, %v3676
    %v3678 = vpop.f32.mrb[0].mxu0
    %v3679 = vpop.f32.mrb[0].mxu0
    %v3680 = vadd.f32 0.0, %v3679
    %v3681 = vpop.f32.mrb[0].mxu0
    %3682 = vmatprep.mubr.bf16.mxu0 0
    %3683 = vmatmul.mubr.bf16.gmra.mrb[0].mxu0 %v3505
    %v3684 = vpop.f32.mrb[0].mxu0
    %v3685 = vadd.f32 0.0, %v3684
    %v3686 = vpop.f32.mrb[0].mxu0
    %v3687 = vpop.f32.mrb[0].mxu0
    %v3688 = vadd.f32 0.0, %v3687
    %v3689 = vpop.f32.mrb[0].mxu0
    %3690 = vmatprep.mubr.bf16.mxu0 0
    %3691 = vmatmul.mubr.bf16.gmra.mrb[0].mxu0 %v3506
    %v3692 = vpop.f32.mrb[0].mxu0
    %v3693 = vadd.f32 0.0, %v3692
    %v3694 = vpop.f32.mrb[0].mxu0
    %v3695 = vpop.f32.mrb[0].mxu0
    %v3696 = vadd.f32 0.0, %v3695
    %v3697 = vpop.f32.mrb[0].mxu0
    %3698 = vmatprep.mubr.bf16.mxu0 0
    %3699 = vmatmul.mubr.bf16.gmra.mrb[0].mxu0 %v3507
    %v3700 = vpop.f32.mrb[0].mxu0
    %v3701 = vadd.f32 0.0, %v3700
    %v3702 = vpop.f32.mrb[0].mxu0
    %v3703 = vpop.f32.mrb[0].mxu0
    %v3704 = vadd.f32 0.0, %v3703
    %v3705 = vpop.f32.mrb[0].mxu0
    %3706 = vmatprep.mubr.bf16.mxu0 0
    %3707 = vmatmul.mubr.bf16.gmra.mrb[0].mxu0 %v3508
    %v3708 = vpop.f32.mrb[0].mxu0
    %v3709 = vadd.f32 0.0, %v3708
    %v3710 = vpop.f32.mrb[0].mxu0
    %v3711 = vpop.f32.mrb[0].mxu0
    %v3712 = vadd.f32 0.0, %v3711
    %v3713 = vpop.f32.mrb[0].mxu0
    %3714 = vmatprep.mubr.bf16.mxu0 0
    %3715 = vmatmul.mubr.bf16.gmra.mrb[0].mxu0 %v3509
    %v3716 = vpop.f32.mrb[0].mxu0
    %v3717 = vadd.f32 0.0, %v3716
    %v3718 = vpop.f32.mrb[0].mxu0
    %v3719 = vpop.f32.mrb[0].mxu0
    %v3720 = vadd.f32 0.0, %v3719
    %v3721 = vpop.f32.mrb[0].mxu0
    %3722 = vmatprep.mubr.bf16.mxu0 0
    %3723 = vmatmul.mubr.bf16.gmra.mrb[0].mxu0 %v3510
    %v3724 = vpop.f32.mrb[0].mxu0
    %v3725 = vadd.f32 0.0, %v3724
    %v3726 = vpop.f32.mrb[0].mxu0
    %v3727 = vpop.f32.mrb[0].mxu0
    %v3728 = vadd.f32 0.0, %v3727
    %v3729 = vpop.f32.mrb[0].mxu0
    %3730 = vmatprep.mubr.bf16.mxu0 0
    %3731 = vmatmul.mubr.bf16.gmra.mrb[0].mxu0 %v3511
    %v3732 = vpop.f32.mrb[0].mxu0
    %v3733 = vadd.f32 0.0, %v3732
    %v3734 = vpop.f32.mrb[0].mxu0
    %v3735 = vpop.f32.mrb[0].mxu0
    %v3736 = vadd.f32 0.0, %v3735
    %v3737 = vpop.f32.mrb[0].mxu0
    %3738 = vmatprep.mubr.bf16.mxu0 0
    %3739 = vmatmul.mubr.bf16.gmra.mrb[0].mxu0 %v3512
    %v3740 = vpop.f32.mrb[0].mxu0
    %v3741 = vadd.f32 0.0, %v3740
    %v3742 = vpop.f32.mrb[0].mxu0
    %v3743 = vpop.f32.mrb[0].mxu0
    %v3744 = vadd.f32 0.0, %v3743
    %v3745 = vpop.f32.mrb[0].mxu0
    %3746 = vmatprep.mubr.bf16.mxu0 0
    %3747 = vmatmul.mubr.bf16.gmra.mrb[0].mxu0 %v3513
    %v3748 = vpop.f32.mrb[0].mxu0
    %v3749 = vadd.f32 0.0, %v3748
    %v3750 = vpop.f32.mrb[0].mxu0
    %v3751 = vpop.f32.mrb[0].mxu0
    %v3752 = vadd.f32 0.0, %v3751
    %v3753 = vpop.f32.mrb[0].mxu0
    %3754 = vmatprep.mubr.bf16.mxu0 0
    %3755 = vmatmul.mubr.bf16.gmra.mrb[0].mxu0 %v3514
    %v3756 = vpop.f32.mrb[0].mxu0
    %v3757 = vadd.f32 0.0, %v3756
    %v3758 = vpop.f32.mrb[0].mxu0
    %v3759 = vpop.f32.mrb[0].mxu0
    %v3760 = vadd.f32 0.0, %v3759
    %v3761 = vpop.f32.mrb[0].mxu0
    %3762 = vmatprep.mubr.bf16.mxu0 0
    %3763 = vmatmul.mubr.bf16.gmra.mrb[0].mxu0 %v3515
    %v3764 = vpop.f32.mrb[0].mxu0
    %v3765 = vadd.f32 0.0, %v3764
    %v3766 = vpop.f32.mrb[0].mxu0
    %v3767 = vpop.f32.mrb[0].mxu0
    %v3768 = vadd.f32 0.0, %v3767
    %v3769 = vpop.f32.mrb[0].mxu0
    %3770 = vmatprep.mubr.bf16.mxu0 0
    %3771 = vmatmul.mubr.bf16.gmra.mrb[0].mxu0 %v3516
    %v3772 = vpop.f32.mrb[0].mxu0
    %v3773 = vadd.f32 0.0, %v3772
    %v3774 = vpop.f32.mrb[0].mxu0
    %v3775 = vpop.f32.mrb[0].mxu0
    %v3776 = vadd.f32 0.0, %v3775
    %v3777 = vpop.f32.mrb[0].mxu0
    %3778 = vmatprep.mubr.bf16.mxu0 0
    %3779 = vmatmul.mubr.bf16.gmra.mrb[0].mxu0 %v3517
    %v3780 = vpop.f32.mrb[0].mxu0
    %v3781 = vadd.f32 0.0, %v3780
    %v3782 = vpop.f32.mrb[0].mxu0
    %v3783 = vpop.f32.mrb[0].mxu0
    %v3784 = vadd.f32 0.0, %v3783
    %v3785 = vpop.f32.mrb[0].mxu0
    %3786 = vmatprep.mubr.bf16.mxu0 0
    %3787 = vmatmul.mubr.bf16.gmra.mrb[0].mxu0 %v3518
    %v3788 = vpop.f32.mrb[0].mxu0
    %v3789 = vadd.f32 0.0, %v3788
    %v3790 = vpop.f32.mrb[0].mxu0
    %v3791 = vpop.f32.mrb[0].mxu0
    %v3792 = vadd.f32 0.0, %v3791
    %v3793 = vpop.f32.mrb[0].mxu0
    %3794 = vmatprep.mubr.bf16.mxu0 0
    %3795 = vmatmul.mubr.bf16.gmra.mrb[0].mxu0 %v3519
    %v3796 = vpop.f32.mrb[0].mxu0
    %v3797 = vadd.f32 0.0, %v3796
    %v3798 = vpop.f32.mrb[0].mxu0
    %v3799 = vpop.f32.mrb[0].mxu0
    %v3800 = vadd.f32 0.0, %v3799
    %v3801 = vpop.f32.mrb[0].mxu0
    %3802 = vmatprep.mubr.bf16.mxu0 0
    %3803 = vmatmul.mubr.bf16.gmra.mrb[0].mxu0 %v3520
    %v3804 = vpop.f32.mrb[0].mxu0
    %v3805 = vadd.f32 0.0, %v3804
    %v3806 = vpop.f32.mrb[0].mxu0
    %v3807 = vpop.f32.mrb[0].mxu0
    %v3808 = vadd.f32 0.0, %v3807
    %v3809 = vpop.f32.mrb[0].mxu0
    %3810 = vmatprep.mubr.bf16.mxu0 0
    %3811 = vmatmul.mubr.bf16.gmra.mrb[0].mxu0 %v3521
    %v3812 = vpop.f32.mrb[0].mxu0
    %v3813 = vadd.f32 0.0, %v3812
    %v3814 = vpop.f32.mrb[0].mxu0
    %v3815 = vpop.f32.mrb[0].mxu0
    %v3816 = vadd.f32 0.0, %v3815
    %v3817 = vpop.f32.mrb[0].mxu0
    %3818 = vmatprep.mubr.bf16.mxu0 0
    %3819 = vmatmul.mubr.bf16.gmra.mrb[0].mxu0 %v3522
    %v3820 = vpop.f32.mrb[0].mxu0
    %v3821 = vadd.f32 0.0, %v3820
    %v3822 = vpop.f32.mrb[0].mxu0
    %v3823 = vpop.f32.mrb[0].mxu0
    %v3824 = vadd.f32 0.0, %v3823
    %v3825 = vpop.f32.mrb[0].mxu0
    %3826 = vmatprep.mubr.bf16.mxu0 0
    %3827 = vmatmul.mubr.bf16.gmra.mrb[0].mxu0 %v3523
    %v3828 = vpop.f32.mrb[0].mxu0
    %v3829 = vadd.f32 0.0, %v3828
    %v3830 = vpop.f32.mrb[0].mxu0
    %v3831 = vpop.f32.mrb[0].mxu0
    %v3832 = vadd.f32 0.0, %v3831
    %v3833 = vpop.f32.mrb[0].mxu0
    %3834 = vmatprep.mubr.bf16.mxu0 0
    %3835 = vmatmul.mubr.bf16.gmra.mrb[0].mxu0 %v3524
    %v3836 = vpop.f32.mrb[0].mxu0
    %v3837 = vadd.f32 0.0, %v3836
    %v3838 = vpop.f32.mrb[0].mxu0
    %v3839 = vpop.f32.mrb[0].mxu0
    %v3840 = vadd.f32 0.0, %v3839
    %v3841 = vpop.f32.mrb[0].mxu0
    %3842 = vmatprep.mubr.bf16.mxu0 0
    %3843 = vmatmul.mubr.bf16.gmra.mrb[0].mxu0 %v3525
    %v3844 = vpop.f32.mrb[0].mxu0
    %v3845 = vadd.f32 0.0, %v3844
    %v3846 = vpop.f32.mrb[0].mxu0
    %v3847 = vpop.f32.mrb[0].mxu0
    %v3848 = vadd.f32 0.0, %v3847
    %v3849 = vpop.f32.mrb[0].mxu0
    %3850 = vmatprep.mubr.bf16.mxu0 0
    %3851 = vmatmul.mubr.bf16.gmra.mrb[0].mxu0 %v3526
    %v3852 = vpop.f32.mrb[0].mxu0
    %v3853 = vadd.f32 0.0, %v3852
    %v3854 = vpop.f32.mrb[0].mxu0
    %v3855 = vpop.f32.mrb[0].mxu0
    %v3856 = vadd.f32 0.0, %v3855
    %v3857 = vpop.f32.mrb[0].mxu0
    %3858 = vmatprep.mubr.bf16.mxu0 0
    %3859 = vmatmul.mubr.bf16.gmra.mrb[0].mxu0 %v3527
    %v3860 = vpop.f32.mrb[0].mxu0
    %v3861 = vadd.f32 0.0, %v3860
    %v3862 = vpop.f32.mrb[0].mxu0
    %v3863 = vpop.f32.mrb[0].mxu0
    %v3864 = vadd.f32 0.0, %v3863
    %v3865 = vpop.f32.mrb[0].mxu0
    %3866 = vmatprep.mubr.bf16.mxu0 0
    %3867 = vmatmul.mubr.bf16.gmra.mrb[0].mxu0 %v3528
    %v3868 = vpop.f32.mrb[0].mxu0
    %v3869 = vadd.f32 0.0, %v3868
    %v3870 = vpop.f32.mrb[0].mxu0
    %v3871 = vpop.f32.mrb[0].mxu0
    %v3872 = vadd.f32 0.0, %v3871
    %v3873 = vpop.f32.mrb[0].mxu0
    %3874 = vmatprep.mubr.bf16.mxu0 0
    %3875 = vmatmul.mubr.bf16.gmra.mrb[0].mxu0 %v3529
    %v3876 = vpop.f32.mrb[0].mxu0
    %v3877 = vadd.f32 0.0, %v3876
    %v3878 = vpop.f32.mrb[0].mxu0
    %v3879 = vpop.f32.mrb[0].mxu0
    %v3880 = vadd.f32 0.0, %v3879
    %v3881 = vpop.f32.mrb[0].mxu0
    %3882 = vdwg.mxu0
    %v3883 = vpack.c.bf16 %v3632, %v3629
    %v3884 = vpack.c.bf16 %v3640, %v3637
    %v3885 = vpack.c.bf16 %v3648, %v3645
    %v3886 = vpack.c.bf16 %v3656, %v3653
    %v3887 = vpack.c.bf16 %v3664, %v3661
    %v3888 = vpack.c.bf16 %v3672, %v3669
    %v3889 = vpack.c.bf16 %v3680, %v3677
    %v3890 = vpack.c.bf16 %v3688, %v3685
    %v3891 = vpack.c.bf16 %v3696, %v3693
    %v3892 = vpack.c.bf16 %v3704, %v3701
    %v3893 = vpack.c.bf16 %v3712, %v3709
    %v3894 = vpack.c.bf16 %v3720, %v3717
    %v3895 = vpack.c.bf16 %v3728, %v3725
    %v3896 = vpack.c.bf16 %v3736, %v3733
    %v3897 = vpack.c.bf16 %v3744, %v3741
    %v3898 = vpack.c.bf16 %v3752, %v3749
    %v3899 = vpack.c.bf16 %v3760, %v3757
    %v3900 = vpack.c.bf16 %v3768, %v3765
    %v3901 = vpack.c.bf16 %v3776, %v3773
    %v3902 = vpack.c.bf16 %v3784, %v3781
    %v3903 = vpack.c.bf16 %v3792, %v3789
    %v3904 = vpack.c.bf16 %v3800, %v3797
    %v3905 = vpack.c.bf16 %v3808, %v3805
    %v3906 = vpack.c.bf16 %v3816, %v3813
    %v3907 = vpack.c.bf16 %v3824, %v3821
    %v3908 = vpack.c.bf16 %v3832, %v3829
    %v3909 = vpack.c.bf16 %v3840, %v3837
    %v3910 = vpack.c.bf16 %v3848, %v3845
    %v3911 = vpack.c.bf16 %v3856, %v3853
    %v3912 = vpack.c.bf16 %v3864, %v3861
    %v3913 = vpack.c.bf16 %v3872, %v3869
    %v3914 = vpack.c.bf16 %v3880, %v3877
    %v3915 = vld [vmem:[%s9] sm:$0x1]
    %v3917 = vlaneseq
    %v3918 = vshrl.u32 %v3917, 7
    %v3919 = vsub.s32 0, %v3918
    %v3920 = vrot.slane %v3915, %v3919
    %3922 = vmatprep.subr.bf16.mxu0 0
    %3923 = vmatpush1.bf16.msra.mxu0 %v3883
    %3924 = vmatprep.subr.bf16.mxu0 0
    %3925 = vmatpush1.bf16.msra.mxu0 %v3884
    %3926 = vmatprep.subr.bf16.mxu0 0
    %3927 = vmatpush1.bf16.msra.mxu0 %v3885
    %3928 = vmatprep.subr.bf16.mxu0 0
    %3929 = vmatpush1.bf16.msra.mxu0 %v3886
    %3930 = vmatprep.subr.bf16.mxu0 0
    %3931 = vmatpush1.bf16.msra.mxu0 %v3887
    %3932 = vmatprep.subr.bf16.mxu0 0
    %3933 = vmatpush1.bf16.msra.mxu0 %v3888
    %3934 = vmatprep.subr.bf16.mxu0 0
    %3935 = vmatpush1.bf16.msra.mxu0 %v3889
    %3936 = vmatprep.subr.bf16.mxu0 0
    %3937 = vmatpush1.bf16.msra.mxu0 %v3890
    %3938 = vmatprep.subr.bf16.mxu0 0
    %3939 = vmatpush1.bf16.msra.mxu0 %v3891
    %3940 = vmatprep.subr.bf16.mxu0 0
    %3941 = vmatpush1.bf16.msra.mxu0 %v3892
    %3942 = vmatprep.subr.bf16.mxu0 0
    %3943 = vmatpush1.bf16.msra.mxu0 %v3893
    %3944 = vmatprep.subr.bf16.mxu0 0
    %3945 = vmatpush1.bf16.msra.mxu0 %v3894
    %3946 = vmatprep.subr.bf16.mxu0 0
    %3947 = vmatpush1.bf16.msra.mxu0 %v3895
    %3948 = vmatprep.subr.bf16.mxu0 0
    %3949 = vmatpush1.bf16.msra.mxu0 %v3896
    %3950 = vmatprep.subr.bf16.mxu0 0
    %3951 = vmatpush1.bf16.msra.mxu0 %v3897
    %3952 = vmatprep.subr.bf16.mxu0 0
    %3953 = vmatpush1.bf16.msra.mxu0 %v3898
    %3954 = vmatprep.mubr.bf16.mxu0 %v681
    %3955 = vmatmul.mubr.bf16.gmra.mrb[0].mxu0 %v680
    %v3956 = vpop.f32.mrb[0].mxu0
    %v3957 = vadd.f32 %v3920, %v3956
    %v3958 = vpop.f32.mrb[0].mxu0
    %v3959 = vpop.f32.mrb[0].mxu0
    %v3960 = vadd.f32 %v3920, %v3959
    %v3961 = vpop.f32.mrb[0].mxu0
    %3962 = vmatprep.mubr.bf16.mxu0 %v685
    %3963 = vmatmul.mubr.bf16.gmra.mrb[0].mxu0 %v684
    %v3964 = vpop.f32.mrb[0].mxu0
    %v3965 = vadd.f32 %v3920, %v3964
    %v3966 = vpop.f32.mrb[0].mxu0
    %v3967 = vpop.f32.mrb[0].mxu0
    %v3968 = vadd.f32 %v3920, %v3967
    %v3969 = vpop.f32.mrb[0].mxu0
    %3970 = vmatprep.mubr.bf16.mxu0 %v689
    %3971 = vmatmul.mubr.bf16.gmra.mrb[0].mxu0 %v688
    %v3972 = vpop.f32.mrb[0].mxu0
    %v3973 = vadd.f32 %v3920, %v3972
    %v3974 = vpop.f32.mrb[0].mxu0
    %v3975 = vpop.f32.mrb[0].mxu0
    %v3976 = vadd.f32 %v3920, %v3975
    %v3977 = vpop.f32.mrb[0].mxu0
    %3978 = vmatprep.mubr.bf16.mxu0 %v693
    %3979 = vmatmul.mubr.bf16.gmra.mrb[0].mxu0 %v692
    %v3980 = vpop.f32.mrb[0].mxu0
    %v3981 = vadd.f32 %v3920, %v3980
    %v3982 = vpop.f32.mrb[0].mxu0
    %v3983 = vpop.f32.mrb[0].mxu0
    %v3984 = vadd.f32 %v3920, %v3983
    %v3985 = vpop.f32.mrb[0].mxu0
    %3986 = vmatprep.mubr.bf16.mxu0 %v697
    %3987 = vmatmul.mubr.bf16.gmra.mrb[0].mxu0 %v696
    %v3988 = vpop.f32.mrb[0].mxu0
    %v3989 = vadd.f32 %v3920, %v3988
    %v3990 = vpop.f32.mrb[0].mxu0
    %v3991 = vpop.f32.mrb[0].mxu0
    %v3992 = vadd.f32 %v3920, %v3991
    %v3993 = vpop.f32.mrb[0].mxu0
    %3994 = vmatprep.mubr.bf16.mxu0 %v701
    %3995 = vmatmul.mubr.bf16.gmra.mrb[0].mxu0 %v700
    %v3996 = vpop.f32.mrb[0].mxu0
    %v3997 = vadd.f32 %v3920, %v3996
    %v3998 = vpop.f32.mrb[0].mxu0
    %v3999 = vpop.f32.mrb[0].mxu0
    %v4000 = vadd.f32 %v3920, %v3999
    %v4001 = vpop.f32.mrb[0].mxu0
    %4002 = vmatprep.mubr.bf16.mxu0 %v705
    %4003 = vmatmul.mubr.bf16.gmra.mrb[0].mxu0 %v704
    %v4004 = vpop.f32.mrb[0].mxu0
    %v4005 = vadd.f32 %v3920, %v4004
    %v4006 = vpop.f32.mrb[0].mxu0
    %v4007 = vpop.f32.mrb[0].mxu0
    %v4008 = vadd.f32 %v3920, %v4007
    %v4009 = vpop.f32.mrb[0].mxu0
    %4010 = vmatprep.mubr.bf16.mxu0 %v709
    %4011 = vmatmul.mubr.bf16.gmra.mrb[0].mxu0 %v708
    %v4012 = vpop.f32.mrb[0].mxu0
    %v4013 = vadd.f32 %v3920, %v4012
    %v4014 = vpop.f32.mrb[0].mxu0
    %v4015 = vpop.f32.mrb[0].mxu0
    %v4016 = vadd.f32 %v3920, %v4015
    %v4017 = vpop.f32.mrb[0].mxu0
    %4018 = vmatprep.mubr.bf16.mxu0 %v713
    %4019 = vmatmul.mubr.bf16.gmra.mrb[0].mxu0 %v712
    %v4020 = vpop.f32.mrb[0].mxu0
    %v4021 = vadd.f32 %v3920, %v4020
    %v4022 = vpop.f32.mrb[0].mxu0
    %v4023 = vpop.f32.mrb[0].mxu0
    %v4024 = vadd.f32 %v3920, %v4023
    %v4025 = vpop.f32.mrb[0].mxu0
    %4026 = vmatprep.mubr.bf16.mxu0 %v717
    %4027 = vmatmul.mubr.bf16.gmra.mrb[0].mxu0 %v716
    %v4028 = vpop.f32.mrb[0].mxu0
    %v4029 = vadd.f32 %v3920, %v4028
    %v4030 = vpop.f32.mrb[0].mxu0
    %v4031 = vpop.f32.mrb[0].mxu0
    %v4032 = vadd.f32 %v3920, %v4031
    %v4033 = vpop.f32.mrb[0].mxu0
    %4034 = vmatprep.mubr.bf16.mxu0 %v721
    %4035 = vmatmul.mubr.bf16.gmra.mrb[0].mxu0 %v720
    %v4036 = vpop.f32.mrb[0].mxu0
    %v4037 = vadd.f32 %v3920, %v4036
    %v4038 = vpop.f32.mrb[0].mxu0
    %v4039 = vpop.f32.mrb[0].mxu0
    %v4040 = vadd.f32 %v3920, %v4039
    %v4041 = vpop.f32.mrb[0].mxu0
    %4042 = vmatprep.mubr.bf16.mxu0 %v725
    %4043 = vmatmul.mubr.bf16.gmra.mrb[0].mxu0 %v724
    %v4044 = vpop.f32.mrb[0].mxu0
    %v4045 = vadd.f32 %v3920, %v4044
    %v4046 = vpop.f32.mrb[0].mxu0
    %v4047 = vpop.f32.mrb[0].mxu0
    %v4048 = vadd.f32 %v3920, %v4047
    %v4049 = vpop.f32.mrb[0].mxu0
    %4050 = vmatprep.mubr.bf16.mxu0 %v729
    %4051 = vmatmul.mubr.bf16.gmra.mrb[0].mxu0 %v728
    %v4052 = vpop.f32.mrb[0].mxu0
    %v4053 = vadd.f32 %v3920, %v4052
    %v4054 = vpop.f32.mrb[0].mxu0
    %v4055 = vpop.f32.mrb[0].mxu0
    %v4056 = vadd.f32 %v3920, %v4055
    %v4057 = vpop.f32.mrb[0].mxu0
    %4058 = vmatprep.mubr.bf16.mxu0 %v733
    %4059 = vmatmul.mubr.bf16.gmra.mrb[0].mxu0 %v732
    %v4060 = vpop.f32.mrb[0].mxu0
    %v4061 = vadd.f32 %v3920, %v4060
    %v4062 = vpop.f32.mrb[0].mxu0
    %v4063 = vpop.f32.mrb[0].mxu0
    %v4064 = vadd.f32 %v3920, %v4063
    %v4065 = vpop.f32.mrb[0].mxu0
    %4066 = vmatprep.mubr.bf16.mxu0 %v737
    %4067 = vmatmul.mubr.bf16.gmra.mrb[0].mxu0 %v736
    %v4068 = vpop.f32.mrb[0].mxu0
    %v4069 = vadd.f32 %v3920, %v4068
    %v4070 = vpop.f32.mrb[0].mxu0
    %v4071 = vpop.f32.mrb[0].mxu0
    %v4072 = vadd.f32 %v3920, %v4071
    %v4073 = vpop.f32.mrb[0].mxu0
    %4074 = vmatprep.mubr.bf16.mxu0 %v741
    %4075 = vmatmul.mubr.bf16.gmra.mrb[0].mxu0 %v740
    %v4076 = vpop.f32.mrb[0].mxu0
    %v4077 = vadd.f32 %v3920, %v4076
    %v4078 = vpop.f32.mrb[0].mxu0
    %v4079 = vpop.f32.mrb[0].mxu0
    %v4080 = vadd.f32 %v3920, %v4079
    %v4081 = vpop.f32.mrb[0].mxu0
    %4082 = vmatprep.mubr.bf16.mxu0 %v745
    %4083 = vmatmul.mubr.bf16.gmra.mrb[0].mxu0 %v744
    %v4084 = vpop.f32.mrb[0].mxu0
    %v4085 = vadd.f32 %v3920, %v4084
    %v4086 = vpop.f32.mrb[0].mxu0
    %v4087 = vpop.f32.mrb[0].mxu0
    %v4088 = vadd.f32 %v3920, %v4087
    %v4089 = vpop.f32.mrb[0].mxu0
    %4090 = vmatprep.mubr.bf16.mxu0 %v749
    %4091 = vmatmul.mubr.bf16.gmra.mrb[0].mxu0 %v748
    %v4092 = vpop.f32.mrb[0].mxu0
    %v4093 = vadd.f32 %v3920, %v4092
    %v4094 = vpop.f32.mrb[0].mxu0
    %v4095 = vpop.f32.mrb[0].mxu0
    %v4096 = vadd.f32 %v3920, %v4095
    %v4097 = vpop.f32.mrb[0].mxu0
    %4098 = vmatprep.mubr.bf16.mxu0 %v753
    %4099 = vmatmul.mubr.bf16.gmra.mrb[0].mxu0 %v752
    %v4100 = vpop.f32.mrb[0].mxu0
    %v4101 = vadd.f32 %v3920, %v4100
    %v4102 = vpop.f32.mrb[0].mxu0
    %v4103 = vpop.f32.mrb[0].mxu0
    %v4104 = vadd.f32 %v3920, %v4103
    %v4105 = vpop.f32.mrb[0].mxu0
    %4106 = vmatprep.mubr.bf16.mxu0 %v757
    %4107 = vmatmul.mubr.bf16.gmra.mrb[0].mxu0 %v756
    %v4108 = vpop.f32.mrb[0].mxu0
    %v4109 = vadd.f32 %v3920, %v4108
    %v4110 = vpop.f32.mrb[0].mxu0
    %v4111 = vpop.f32.mrb[0].mxu0
    %v4112 = vadd.f32 %v3920, %v4111
    %v4113 = vpop.f32.mrb[0].mxu0
    %4114 = vmatprep.mubr.bf16.mxu0 %v761
    %4115 = vmatmul.mubr.bf16.gmra.mrb[0].mxu0 %v760
    %v4116 = vpop.f32.mrb[0].mxu0
    %v4117 = vadd.f32 %v3920, %v4116
    %v4118 = vpop.f32.mrb[0].mxu0
    %v4119 = vpop.f32.mrb[0].mxu0
    %v4120 = vadd.f32 %v3920, %v4119
    %v4121 = vpop.f32.mrb[0].mxu0
    %4122 = vmatprep.mubr.bf16.mxu0 %v765
    %4123 = vmatmul.mubr.bf16.gmra.mrb[0].mxu0 %v764
    %v4124 = vpop.f32.mrb[0].mxu0
    %v4125 = vadd.f32 %v3920, %v4124
    %v4126 = vpop.f32.mrb[0].mxu0
    %v4127 = vpop.f32.mrb[0].mxu0
    %v4128 = vadd.f32 %v3920, %v4127
    %v4129 = vpop.f32.mrb[0].mxu0
    %4130 = vmatprep.mubr.bf16.mxu0 %v769
    %4131 = vmatmul.mubr.bf16.gmra.mrb[0].mxu0 %v768
    %v4132 = vpop.f32.mrb[0].mxu0
    %v4133 = vadd.f32 %v3920, %v4132
    %v4134 = vpop.f32.mrb[0].mxu0
    %v4135 = vpop.f32.mrb[0].mxu0
    %v4136 = vadd.f32 %v3920, %v4135
    %v4137 = vpop.f32.mrb[0].mxu0
    %4138 = vmatprep.mubr.bf16.mxu0 %v773
    %4139 = vmatmul.mubr.bf16.gmra.mrb[0].mxu0 %v772
    %v4140 = vpop.f32.mrb[0].mxu0
    %v4141 = vadd.f32 %v3920, %v4140
    %v4142 = vpop.f32.mrb[0].mxu0
    %v4143 = vpop.f32.mrb[0].mxu0
    %v4144 = vadd.f32 %v3920, %v4143
    %v4145 = vpop.f32.mrb[0].mxu0
    %4146 = vmatprep.mubr.bf16.mxu0 %v777
    %4147 = vmatmul.mubr.bf16.gmra.mrb[0].mxu0 %v776
    %v4148 = vpop.f32.mrb[0].mxu0
    %v4149 = vadd.f32 %v3920, %v4148
    %v4150 = vpop.f32.mrb[0].mxu0
    %v4151 = vpop.f32.mrb[0].mxu0
    %v4152 = vadd.f32 %v3920, %v4151
    %v4153 = vpop.f32.mrb[0].mxu0
    %4154 = vmatprep.mubr.bf16.mxu0 %v781
    %4155 = vmatmul.mubr.bf16.gmra.mrb[0].mxu0 %v780
    %v4156 = vpop.f32.mrb[0].mxu0
    %v4157 = vadd.f32 %v3920, %v4156
    %v4158 = vpop.f32.mrb[0].mxu0
    %v4159 = vpop.f32.mrb[0].mxu0
    %v4160 = vadd.f32 %v3920, %v4159
    %v4161 = vpop.f32.mrb[0].mxu0
    %4162 = vmatprep.mubr.bf16.mxu0 %v785
    %4163 = vmatmul.mubr.bf16.gmra.mrb[0].mxu0 %v784
    %v4164 = vpop.f32.mrb[0].mxu0
    %v4165 = vadd.f32 %v3920, %v4164
    %v4166 = vpop.f32.mrb[0].mxu0
    %v4167 = vpop.f32.mrb[0].mxu0
    %v4168 = vadd.f32 %v3920, %v4167
    %v4169 = vpop.f32.mrb[0].mxu0
    %4170 = vmatprep.mubr.bf16.mxu0 %v789
    %4171 = vmatmul.mubr.bf16.gmra.mrb[0].mxu0 %v788
    %v4172 = vpop.f32.mrb[0].mxu0
    %v4173 = vadd.f32 %v3920, %v4172
    %v4174 = vpop.f32.mrb[0].mxu0
    %v4175 = vpop.f32.mrb[0].mxu0
    %v4176 = vadd.f32 %v3920, %v4175
    %v4177 = vpop.f32.mrb[0].mxu0
    %4178 = vmatprep.mubr.bf16.mxu0 %v793
    %4179 = vmatmul.mubr.bf16.gmra.mrb[0].mxu0 %v792
    %v4180 = vpop.f32.mrb[0].mxu0
    %v4181 = vadd.f32 %v3920, %v4180
    %v4182 = vpop.f32.mrb[0].mxu0
    %v4183 = vpop.f32.mrb[0].mxu0
    %v4184 = vadd.f32 %v3920, %v4183
    %v4185 = vpop.f32.mrb[0].mxu0
    %4186 = vmatprep.mubr.bf16.mxu0 %v797
    %4187 = vmatmul.mubr.bf16.gmra.mrb[0].mxu0 %v796
    %v4188 = vpop.f32.mrb[0].mxu0
    %v4189 = vadd.f32 %v3920, %v4188
    %v4190 = vpop.f32.mrb[0].mxu0
    %v4191 = vpop.f32.mrb[0].mxu0
    %v4192 = vadd.f32 %v3920, %v4191
    %v4193 = vpop.f32.mrb[0].mxu0
    %4194 = vmatprep.mubr.bf16.mxu0 %v801
    %4195 = vmatmul.mubr.bf16.gmra.mrb[0].mxu0 %v800
    %v4196 = vpop.f32.mrb[0].mxu0
    %v4197 = vadd.f32 %v3920, %v4196
    %v4198 = vpop.f32.mrb[0].mxu0
    %v4199 = vpop.f32.mrb[0].mxu0
    %v4200 = vadd.f32 %v3920, %v4199
    %v4201 = vpop.f32.mrb[0].mxu0
    %4202 = vmatprep.mubr.bf16.mxu0 %v805
    %4203 = vmatmul.mubr.bf16.gmra.mrb[0].mxu0 %v804
    %v4204 = vpop.f32.mrb[0].mxu0
    %v4205 = vadd.f32 %v3920, %v4204
    %v4206 = vpop.f32.mrb[0].mxu0
    %v4207 = vpop.f32.mrb[0].mxu0
    %v4208 = vadd.f32 %v3920, %v4207
    %v4209 = vpop.f32.mrb[0].mxu0
    %4210 = vdwg.mxu0
    %4211 = vmatprep.subr.bf16.mxu0 0
    %4212 = vmatpush1.bf16.msra.mxu0 %v3899
    %4213 = vmatprep.subr.bf16.mxu0 0
    %4214 = vmatpush1.bf16.msra.mxu0 %v3900
    %4215 = vmatprep.subr.bf16.mxu0 0
    %4216 = vmatpush1.bf16.msra.mxu0 %v3901
    %4217 = vmatprep.subr.bf16.mxu0 0
    %4218 = vmatpush1.bf16.msra.mxu0 %v3902
    %4219 = vmatprep.subr.bf16.mxu0 0
    %4220 = vmatpush1.bf16.msra.mxu0 %v3903
    %4221 = vmatprep.subr.bf16.mxu0 0
    %4222 = vmatpush1.bf16.msra.mxu0 %v3904
    %4223 = vmatprep.subr.bf16.mxu0 0
    %4224 = vmatpush1.bf16.msra.mxu0 %v3905
    %4225 = vmatprep.subr.bf16.mxu0 0
    %4226 = vmatpush1.bf16.msra.mxu0 %v3906
    %4227 = vmatprep.subr.bf16.mxu0 0
    %4228 = vmatpush1.bf16.msra.mxu0 %v3907
    %4229 = vmatprep.subr.bf16.mxu0 0
    %4230 = vmatpush1.bf16.msra.mxu0 %v3908
    %4231 = vmatprep.subr.bf16.mxu0 0
    %4232 = vmatpush1.bf16.msra.mxu0 %v3909
    %4233 = vmatprep.subr.bf16.mxu0 0
    %4234 = vmatpush1.bf16.msra.mxu0 %v3910
    %4235 = vmatprep.subr.bf16.mxu0 0
    %4236 = vmatpush1.bf16.msra.mxu0 %v3911
    %4237 = vmatprep.subr.bf16.mxu0 0
    %4238 = vmatpush1.bf16.msra.mxu0 %v3912
    %4239 = vmatprep.subr.bf16.mxu0 0
    %4240 = vmatpush1.bf16.msra.mxu0 %v3913
    %4241 = vmatprep.subr.bf16.mxu0 0
    %4242 = vmatpush1.bf16.msra.mxu0 %v3914
    %4243 = vmatprep.mubr.bf16.mxu0 %v683
    %4244 = vmatmul.mubr.bf16.gmra.mrb[0].mxu0 %v682
    %v4245 = vpop.f32.mrb[0].mxu0
    %v4246 = vadd.f32 %v3957, %v4245
    %v4247 = vpop.f32.mrb[0].mxu0
    %v4248 = vpop.f32.mrb[0].mxu0
    %v4249 = vadd.f32 %v3960, %v4248
    %v4250 = vpop.f32.mrb[0].mxu0
    %4251 = vmatprep.mubr.bf16.mxu0 %v687
    %4252 = vmatmul.mubr.bf16.gmra.mrb[0].mxu0 %v686
    %v4253 = vpop.f32.mrb[0].mxu0
    %v4254 = vadd.f32 %v3965, %v4253
    %v4255 = vpop.f32.mrb[0].mxu0
    %v4256 = vpop.f32.mrb[0].mxu0
    %v4257 = vadd.f32 %v3968, %v4256
    %v4258 = vpop.f32.mrb[0].mxu0
    %4259 = vmatprep.mubr.bf16.mxu0 %v691
    %4260 = vmatmul.mubr.bf16.gmra.mrb[0].mxu0 %v690
    %v4261 = vpop.f32.mrb[0].mxu0
    %v4262 = vadd.f32 %v3973, %v4261
    %v4263 = vpop.f32.mrb[0].mxu0
    %v4264 = vpop.f32.mrb[0].mxu0
    %v4265 = vadd.f32 %v3976, %v4264
    %v4266 = vpop.f32.mrb[0].mxu0
    %4267 = vmatprep.mubr.bf16.mxu0 %v695
    %4268 = vmatmul.mubr.bf16.gmra.mrb[0].mxu0 %v694
    %v4269 = vpop.f32.mrb[0].mxu0
    %v4270 = vadd.f32 %v3981, %v4269
    %v4271 = vpop.f32.mrb[0].mxu0
    %v4272 = vpop.f32.mrb[0].mxu0
    %v4273 = vadd.f32 %v3984, %v4272
    %v4274 = vpop.f32.mrb[0].mxu0
    %4275 = vmatprep.mubr.bf16.mxu0 %v699
    %4276 = vmatmul.mubr.bf16.gmra.mrb[0].mxu0 %v698
    %v4277 = vpop.f32.mrb[0].mxu0
    %v4278 = vadd.f32 %v3989, %v4277
    %v4279 = vpop.f32.mrb[0].mxu0
    %v4280 = vpop.f32.mrb[0].mxu0
    %v4281 = vadd.f32 %v3992, %v4280
    %v4282 = vpop.f32.mrb[0].mxu0
    %4283 = vmatprep.mubr.bf16.mxu0 %v703
    %4284 = vmatmul.mubr.bf16.gmra.mrb[0].mxu0 %v702
    %v4285 = vpop.f32.mrb[0].mxu0
    %v4286 = vadd.f32 %v3997, %v4285
    %v4287 = vpop.f32.mrb[0].mxu0
    %v4288 = vpop.f32.mrb[0].mxu0
    %v4289 = vadd.f32 %v4000, %v4288
    %v4290 = vpop.f32.mrb[0].mxu0
    %4291 = vmatprep.mubr.bf16.mxu0 %v707
    %4292 = vmatmul.mubr.bf16.gmra.mrb[0].mxu0 %v706
    %v4293 = vpop.f32.mrb[0].mxu0
    %v4294 = vadd.f32 %v4005, %v4293
    %v4295 = vpop.f32.mrb[0].mxu0
    %v4296 = vpop.f32.mrb[0].mxu0
    %v4297 = vadd.f32 %v4008, %v4296
    %v4298 = vpop.f32.mrb[0].mxu0
    %4299 = vmatprep.mubr.bf16.mxu0 %v711
    %4300 = vmatmul.mubr.bf16.gmra.mrb[0].mxu0 %v710
    %v4301 = vpop.f32.mrb[0].mxu0
    %v4302 = vadd.f32 %v4013, %v4301
    %v4303 = vpop.f32.mrb[0].mxu0
    %v4304 = vpop.f32.mrb[0].mxu0
    %v4305 = vadd.f32 %v4016, %v4304
    %v4306 = vpop.f32.mrb[0].mxu0
    %4307 = vmatprep.mubr.bf16.mxu0 %v715
    %4308 = vmatmul.mubr.bf16.gmra.mrb[0].mxu0 %v714
    %v4309 = vpop.f32.mrb[0].mxu0
    %v4310 = vadd.f32 %v4021, %v4309
    %v4311 = vpop.f32.mrb[0].mxu0
    %v4312 = vpop.f32.mrb[0].mxu0
    %v4313 = vadd.f32 %v4024, %v4312
    %v4314 = vpop.f32.mrb[0].mxu0
    %4315 = vmatprep.mubr.bf16.mxu0 %v719
    %4316 = vmatmul.mubr.bf16.gmra.mrb[0].mxu0 %v718
    %v4317 = vpop.f32.mrb[0].mxu0
    %v4318 = vadd.f32 %v4029, %v4317
    %v4319 = vpop.f32.mrb[0].mxu0
    %v4320 = vpop.f32.mrb[0].mxu0
    %v4321 = vadd.f32 %v4032, %v4320
    %v4322 = vpop.f32.mrb[0].mxu0
    %4323 = vmatprep.mubr.bf16.mxu0 %v723
    %4324 = vmatmul.mubr.bf16.gmra.mrb[0].mxu0 %v722
    %v4325 = vpop.f32.mrb[0].mxu0
    %v4326 = vadd.f32 %v4037, %v4325
    %v4327 = vpop.f32.mrb[0].mxu0
    %v4328 = vpop.f32.mrb[0].mxu0
    %v4329 = vadd.f32 %v4040, %v4328
    %v4330 = vpop.f32.mrb[0].mxu0
    %4331 = vmatprep.mubr.bf16.mxu0 %v727
    %4332 = vmatmul.mubr.bf16.gmra.mrb[0].mxu0 %v726
    %v4333 = vpop.f32.mrb[0].mxu0
    %v4334 = vadd.f32 %v4045, %v4333
    %v4335 = vpop.f32.mrb[0].mxu0
    %v4336 = vpop.f32.mrb[0].mxu0
    %v4337 = vadd.f32 %v4048, %v4336
    %v4338 = vpop.f32.mrb[0].mxu0
    %4339 = vmatprep.mubr.bf16.mxu0 %v731
    %4340 = vmatmul.mubr.bf16.gmra.mrb[0].mxu0 %v730
    %v4341 = vpop.f32.mrb[0].mxu0
    %v4342 = vadd.f32 %v4053, %v4341
    %v4343 = vpop.f32.mrb[0].mxu0
    %v4344 = vpop.f32.mrb[0].mxu0
    %v4345 = vadd.f32 %v4056, %v4344
    %v4346 = vpop.f32.mrb[0].mxu0
    %4347 = vmatprep.mubr.bf16.mxu0 %v735
    %4348 = vmatmul.mubr.bf16.gmra.mrb[0].mxu0 %v734
    %v4349 = vpop.f32.mrb[0].mxu0
    %v4350 = vadd.f32 %v4061, %v4349
    %v4351 = vpop.f32.mrb[0].mxu0
    %v4352 = vpop.f32.mrb[0].mxu0
    %v4353 = vadd.f32 %v4064, %v4352
    %v4354 = vpop.f32.mrb[0].mxu0
    %4355 = vmatprep.mubr.bf16.mxu0 %v739
    %4356 = vmatmul.mubr.bf16.gmra.mrb[0].mxu0 %v738
    %v4357 = vpop.f32.mrb[0].mxu0
    %v4358 = vadd.f32 %v4069, %v4357
    %v4359 = vpop.f32.mrb[0].mxu0
    %v4360 = vpop.f32.mrb[0].mxu0
    %v4361 = vadd.f32 %v4072, %v4360
    %v4362 = vpop.f32.mrb[0].mxu0
    %4363 = vmatprep.mubr.bf16.mxu0 %v743
    %4364 = vmatmul.mubr.bf16.gmra.mrb[0].mxu0 %v742
    %v4365 = vpop.f32.mrb[0].mxu0
    %v4366 = vadd.f32 %v4077, %v4365
    %v4367 = vpop.f32.mrb[0].mxu0
    %v4368 = vpop.f32.mrb[0].mxu0
    %v4369 = vadd.f32 %v4080, %v4368
    %v4370 = vpop.f32.mrb[0].mxu0
    %4371 = vmatprep.mubr.bf16.mxu0 %v747
    %4372 = vmatmul.mubr.bf16.gmra.mrb[0].mxu0 %v746
    %v4373 = vpop.f32.mrb[0].mxu0
    %v4374 = vadd.f32 %v4085, %v4373
    %v4375 = vpop.f32.mrb[0].mxu0
    %v4376 = vpop.f32.mrb[0].mxu0
    %v4377 = vadd.f32 %v4088, %v4376
    %v4378 = vpop.f32.mrb[0].mxu0
    %4379 = vmatprep.mubr.bf16.mxu0 %v751
    %4380 = vmatmul.mubr.bf16.gmra.mrb[0].mxu0 %v750
    %v4381 = vpop.f32.mrb[0].mxu0
    %v4382 = vadd.f32 %v4093, %v4381
    %v4383 = vpop.f32.mrb[0].mxu0
    %v4384 = vpop.f32.mrb[0].mxu0
    %v4385 = vadd.f32 %v4096, %v4384
    %v4386 = vpop.f32.mrb[0].mxu0
    %4387 = vmatprep.mubr.bf16.mxu0 %v755
    %4388 = vmatmul.mubr.bf16.gmra.mrb[0].mxu0 %v754
    %v4389 = vpop.f32.mrb[0].mxu0
    %v4390 = vadd.f32 %v4101, %v4389
    %v4391 = vpop.f32.mrb[0].mxu0
    %v4392 = vpop.f32.mrb[0].mxu0
    %v4393 = vadd.f32 %v4104, %v4392
    %v4394 = vpop.f32.mrb[0].mxu0
    %4395 = vmatprep.mubr.bf16.mxu0 %v759
    %4396 = vmatmul.mubr.bf16.gmra.mrb[0].mxu0 %v758
    %v4397 = vpop.f32.mrb[0].mxu0
    %v4398 = vadd.f32 %v4109, %v4397
    %v4399 = vpop.f32.mrb[0].mxu0
    %v4400 = vpop.f32.mrb[0].mxu0
    %v4401 = vadd.f32 %v4112, %v4400
    %v4402 = vpop.f32.mrb[0].mxu0
    %4403 = vmatprep.mubr.bf16.mxu0 %v763
    %4404 = vmatmul.mubr.bf16.gmra.mrb[0].mxu0 %v762
    %v4405 = vpop.f32.mrb[0].mxu0
    %v4406 = vadd.f32 %v4117, %v4405
    %v4407 = vpop.f32.mrb[0].mxu0
    %v4408 = vpop.f32.mrb[0].mxu0
    %v4409 = vadd.f32 %v4120, %v4408
    %v4410 = vpop.f32.mrb[0].mxu0
    %4411 = vmatprep.mubr.bf16.mxu0 %v767
    %4412 = vmatmul.mubr.bf16.gmra.mrb[0].mxu0 %v766
    %v4413 = vpop.f32.mrb[0].mxu0
    %v4414 = vadd.f32 %v4125, %v4413
    %v4415 = vpop.f32.mrb[0].mxu0
    %v4416 = vpop.f32.mrb[0].mxu0
    %v4417 = vadd.f32 %v4128, %v4416
    %v4418 = vpop.f32.mrb[0].mxu0
    %4419 = vmatprep.mubr.bf16.mxu0 %v771
    %4420 = vmatmul.mubr.bf16.gmra.mrb[0].mxu0 %v770
    %v4421 = vpop.f32.mrb[0].mxu0
    %v4422 = vadd.f32 %v4133, %v4421
    %v4423 = vpop.f32.mrb[0].mxu0
    %v4424 = vpop.f32.mrb[0].mxu0
    %v4425 = vadd.f32 %v4136, %v4424
    %v4426 = vpop.f32.mrb[0].mxu0
    %4427 = vmatprep.mubr.bf16.mxu0 %v775
    %4428 = vmatmul.mubr.bf16.gmra.mrb[0].mxu0 %v774
    %v4429 = vpop.f32.mrb[0].mxu0
    %v4430 = vadd.f32 %v4141, %v4429
    %v4431 = vpop.f32.mrb[0].mxu0
    %v4432 = vpop.f32.mrb[0].mxu0
    %v4433 = vadd.f32 %v4144, %v4432
    %v4434 = vpop.f32.mrb[0].mxu0
    %4435 = vmatprep.mubr.bf16.mxu0 %v779
    %4436 = vmatmul.mubr.bf16.gmra.mrb[0].mxu0 %v778
    %v4437 = vpop.f32.mrb[0].mxu0
    %v4438 = vadd.f32 %v4149, %v4437
    %v4439 = vpop.f32.mrb[0].mxu0
    %v4440 = vpop.f32.mrb[0].mxu0
    %v4441 = vadd.f32 %v4152, %v4440
    %v4442 = vpop.f32.mrb[0].mxu0
    %4443 = vmatprep.mubr.bf16.mxu0 %v783
    %4444 = vmatmul.mubr.bf16.gmra.mrb[0].mxu0 %v782
    %v4445 = vpop.f32.mrb[0].mxu0
    %v4446 = vadd.f32 %v4157, %v4445
    %v4447 = vpop.f32.mrb[0].mxu0
    %v4448 = vpop.f32.mrb[0].mxu0
    %v4449 = vadd.f32 %v4160, %v4448
    %v4450 = vpop.f32.mrb[0].mxu0
    %4451 = vmatprep.mubr.bf16.mxu0 %v787
    %4452 = vmatmul.mubr.bf16.gmra.mrb[0].mxu0 %v786
    %v4453 = vpop.f32.mrb[0].mxu0
    %v4454 = vadd.f32 %v4165, %v4453
    %v4455 = vpop.f32.mrb[0].mxu0
    %v4456 = vpop.f32.mrb[0].mxu0
    %v4457 = vadd.f32 %v4168, %v4456
    %v4458 = vpop.f32.mrb[0].mxu0
    %4459 = vmatprep.mubr.bf16.mxu0 %v791
    %4460 = vmatmul.mubr.bf16.gmra.mrb[0].mxu0 %v790
    %v4461 = vpop.f32.mrb[0].mxu0
    %v4462 = vadd.f32 %v4173, %v4461
    %v4463 = vpop.f32.mrb[0].mxu0
    %v4464 = vpop.f32.mrb[0].mxu0
    %v4465 = vadd.f32 %v4176, %v4464
    %v4466 = vpop.f32.mrb[0].mxu0
    %4467 = vmatprep.mubr.bf16.mxu0 %v795
    %4468 = vmatmul.mubr.bf16.gmra.mrb[0].mxu0 %v794
    %v4469 = vpop.f32.mrb[0].mxu0
    %v4470 = vadd.f32 %v4181, %v4469
    %v4471 = vpop.f32.mrb[0].mxu0
    %v4472 = vpop.f32.mrb[0].mxu0
    %v4473 = vadd.f32 %v4184, %v4472
    %v4474 = vpop.f32.mrb[0].mxu0
    %4475 = vmatprep.mubr.bf16.mxu0 %v799
    %4476 = vmatmul.mubr.bf16.gmra.mrb[0].mxu0 %v798
    %v4477 = vpop.f32.mrb[0].mxu0
    %v4478 = vadd.f32 %v4189, %v4477
    %v4479 = vpop.f32.mrb[0].mxu0
    %v4480 = vpop.f32.mrb[0].mxu0
    %v4481 = vadd.f32 %v4192, %v4480
    %v4482 = vpop.f32.mrb[0].mxu0
    %4483 = vmatprep.mubr.bf16.mxu0 %v803
    %4484 = vmatmul.mubr.bf16.gmra.mrb[0].mxu0 %v802
    %v4485 = vpop.f32.mrb[0].mxu0
    %v4486 = vadd.f32 %v4197, %v4485
    %v4487 = vpop.f32.mrb[0].mxu0
    %v4488 = vpop.f32.mrb[0].mxu0
    %v4489 = vadd.f32 %v4200, %v4488
    %v4490 = vpop.f32.mrb[0].mxu0
    %4491 = vmatprep.mubr.bf16.mxu0 %v807
    %4492 = vmatmul.mubr.bf16.gmra.mrb[0].mxu0 %v806
    %v4493 = vpop.f32.mrb[0].mxu0
    %v4494 = vadd.f32 %v4205, %v4493
    %v4495 = vpop.f32.mrb[0].mxu0
    %v4496 = vpop.f32.mrb[0].mxu0
    %v4497 = vadd.f32 %v4208, %v4496
    %v4498 = vpop.f32.mrb[0].mxu0
    %4499 = vdwg.mxu0
    %v4500 = vlaneseq
    %v4501 = vand.u32 %v4500, 127
    %vm4502 = vcmp.lt.s32.totalorder %v4501, 10
    %v4503 = vsel %vm4502, %v4246, -1e+30
    %v4504 = vsel %vm4502, %v4249, -1e+30
    %v4505 = vsel %vm4502, %v4254, -1e+30
    %v4506 = vsel %vm4502, %v4257, -1e+30
    %v4507 = vsel %vm4502, %v4262, -1e+30
    %v4508 = vsel %vm4502, %v4265, -1e+30
    %v4509 = vsel %vm4502, %v4270, -1e+30
    %v4510 = vsel %vm4502, %v4273, -1e+30
    %v4511 = vsel %vm4502, %v4278, -1e+30
    %v4512 = vsel %vm4502, %v4281, -1e+30
    %v4513 = vsel %vm4502, %v4286, -1e+30
    %v4514 = vsel %vm4502, %v4289, -1e+30
    %v4515 = vsel %vm4502, %v4294, -1e+30
    %v4516 = vsel %vm4502, %v4297, -1e+30
    %v4517 = vsel %vm4502, %v4302, -1e+30
    %v4518 = vsel %vm4502, %v4305, -1e+30
    %v4519 = vsel %vm4502, %v4310, -1e+30
    %v4520 = vsel %vm4502, %v4313, -1e+30
    %v4521 = vsel %vm4502, %v4318, -1e+30
    %v4522 = vsel %vm4502, %v4321, -1e+30
    %v4523 = vsel %vm4502, %v4326, -1e+30
    %v4524 = vsel %vm4502, %v4329, -1e+30
    %v4525 = vsel %vm4502, %v4334, -1e+30
    %v4526 = vsel %vm4502, %v4337, -1e+30
    %v4527 = vsel %vm4502, %v4342, -1e+30
    %v4528 = vsel %vm4502, %v4345, -1e+30
    %v4529 = vsel %vm4502, %v4350, -1e+30
    %v4530 = vsel %vm4502, %v4353, -1e+30
    %v4531 = vsel %vm4502, %v4358, -1e+30
    %v4532 = vsel %vm4502, %v4361, -1e+30
    %v4533 = vsel %vm4502, %v4366, -1e+30
    %v4534 = vsel %vm4502, %v4369, -1e+30
    %v4535 = vsel %vm4502, %v4374, -1e+30
    %v4536 = vsel %vm4502, %v4377, -1e+30
    %v4537 = vsel %vm4502, %v4382, -1e+30
    %v4538 = vsel %vm4502, %v4385, -1e+30
    %v4539 = vsel %vm4502, %v4390, -1e+30
    %v4540 = vsel %vm4502, %v4393, -1e+30
    %v4541 = vsel %vm4502, %v4398, -1e+30
    %v4542 = vsel %vm4502, %v4401, -1e+30
    %v4543 = vsel %vm4502, %v4406, -1e+30
    %v4544 = vsel %vm4502, %v4409, -1e+30
    %v4545 = vsel %vm4502, %v4414, -1e+30
    %v4546 = vsel %vm4502, %v4417, -1e+30
    %v4547 = vsel %vm4502, %v4422, -1e+30
    %v4548 = vsel %vm4502, %v4425, -1e+30
    %v4549 = vsel %vm4502, %v4430, -1e+30
    %v4550 = vsel %vm4502, %v4433, -1e+30
    %v4551 = vsel %vm4502, %v4438, -1e+30
    %v4552 = vsel %vm4502, %v4441, -1e+30
    %v4553 = vsel %vm4502, %v4446, -1e+30
    %v4554 = vsel %vm4502, %v4449, -1e+30
    %v4555 = vsel %vm4502, %v4454, -1e+30
    %v4556 = vsel %vm4502, %v4457, -1e+30
    %v4557 = vsel %vm4502, %v4462, -1e+30
    %v4558 = vsel %vm4502, %v4465, -1e+30
    %v4559 = vsel %vm4502, %v4470, -1e+30
    %v4560 = vsel %vm4502, %v4473, -1e+30
    %v4561 = vsel %vm4502, %v4478, -1e+30
    %v4562 = vsel %vm4502, %v4481, -1e+30
    %v4563 = vsel %vm4502, %v4486, -1e+30
    %v4564 = vsel %vm4502, %v4489, -1e+30
    %v4565 = vsel %vm4502, %v4494, -1e+30
    %v4566 = vsel %vm4502, %v4497, -1e+30
    %4567 = vmax.xlane.f32.xlu0 %v4503
    %v4568 = vpop.xlane.xlu0 %4567
    %4569 = vmax.xlane.f32.xlu0 %v4504
    %v4570 = vpop.xlane.xlu0 %4569
    %4571 = vmax.xlane.f32.xlu0 %v4505
    %v4572 = vpop.xlane.xlu0 %4571
    %4573 = vmax.xlane.f32.xlu0 %v4506
    %v4574 = vpop.xlane.xlu0 %4573
    %4575 = vmax.xlane.f32.xlu0 %v4507
    %v4576 = vpop.xlane.xlu0 %4575
    %4577 = vmax.xlane.f32.xlu0 %v4508
    %v4578 = vpop.xlane.xlu0 %4577
    %4579 = vmax.xlane.f32.xlu0 %v4509
    %v4580 = vpop.xlane.xlu0 %4579
    %4581 = vmax.xlane.f32.xlu0 %v4510
    %v4582 = vpop.xlane.xlu0 %4581
    %4583 = vmax.xlane.f32.xlu0 %v4511
    %v4584 = vpop.xlane.xlu0 %4583
    %4585 = vmax.xlane.f32.xlu0 %v4512
    %v4586 = vpop.xlane.xlu0 %4585
    %4587 = vmax.xlane.f32.xlu0 %v4513
    %v4588 = vpop.xlane.xlu0 %4587
    %4589 = vmax.xlane.f32.xlu0 %v4514
    %v4590 = vpop.xlane.xlu0 %4589
    %4591 = vmax.xlane.f32.xlu0 %v4515
    %v4592 = vpop.xlane.xlu0 %4591
    %4593 = vmax.xlane.f32.xlu0 %v4516
    %v4594 = vpop.xlane.xlu0 %4593
    %4595 = vmax.xlane.f32.xlu0 %v4517
    %v4596 = vpop.xlane.xlu0 %4595
    %4597 = vmax.xlane.f32.xlu0 %v4518
    %v4598 = vpop.xlane.xlu0 %4597
    %4599 = vmax.xlane.f32.xlu0 %v4519
    %v4600 = vpop.xlane.xlu0 %4599
    %4601 = vmax.xlane.f32.xlu0 %v4520
    %v4602 = vpop.xlane.xlu0 %4601
    %4603 = vmax.xlane.f32.xlu0 %v4521
    %v4604 = vpop.xlane.xlu0 %4603
    %4605 = vmax.xlane.f32.xlu0 %v4522
    %v4606 = vpop.xlane.xlu0 %4605
    %4607 = vmax.xlane.f32.xlu0 %v4523
    %v4608 = vpop.xlane.xlu0 %4607
    %4609 = vmax.xlane.f32.xlu0 %v4524
    %v4610 = vpop.xlane.xlu0 %4609
    %4611 = vmax.xlane.f32.xlu0 %v4525
    %v4612 = vpop.xlane.xlu0 %4611
    %4613 = vmax.xlane.f32.xlu0 %v4526
    %v4614 = vpop.xlane.xlu0 %4613
    %4615 = vmax.xlane.f32.xlu0 %v4527
    %v4616 = vpop.xlane.xlu0 %4615
    %4617 = vmax.xlane.f32.xlu0 %v4528
    %v4618 = vpop.xlane.xlu0 %4617
    %4619 = vmax.xlane.f32.xlu0 %v4529
    %v4620 = vpop.xlane.xlu0 %4619
    %4621 = vmax.xlane.f32.xlu0 %v4530
    %v4622 = vpop.xlane.xlu0 %4621
    %4623 = vmax.xlane.f32.xlu0 %v4531
    %v4624 = vpop.xlane.xlu0 %4623
    %4625 = vmax.xlane.f32.xlu0 %v4532
    %v4626 = vpop.xlane.xlu0 %4625
    %4627 = vmax.xlane.f32.xlu0 %v4533
    %v4628 = vpop.xlane.xlu0 %4627
    %4629 = vmax.xlane.f32.xlu0 %v4534
    %v4630 = vpop.xlane.xlu0 %4629
    %4631 = vmax.xlane.f32.xlu0 %v4535
    %v4632 = vpop.xlane.xlu0 %4631
    %4633 = vmax.xlane.f32.xlu0 %v4536
    %v4634 = vpop.xlane.xlu0 %4633
    %4635 = vmax.xlane.f32.xlu0 %v4537
    %v4636 = vpop.xlane.xlu0 %4635
    %4637 = vmax.xlane.f32.xlu0 %v4538
    %v4638 = vpop.xlane.xlu0 %4637
    %4639 = vmax.xlane.f32.xlu0 %v4539
    %v4640 = vpop.xlane.xlu0 %4639
    %4641 = vmax.xlane.f32.xlu0 %v4540
    %v4642 = vpop.xlane.xlu0 %4641
    %4643 = vmax.xlane.f32.xlu0 %v4541
    %v4644 = vpop.xlane.xlu0 %4643
    %4645 = vmax.xlane.f32.xlu0 %v4542
    %v4646 = vpop.xlane.xlu0 %4645
    %4647 = vmax.xlane.f32.xlu0 %v4543
    %v4648 = vpop.xlane.xlu0 %4647
    %4649 = vmax.xlane.f32.xlu0 %v4544
    %v4650 = vpop.xlane.xlu0 %4649
    %4651 = vmax.xlane.f32.xlu0 %v4545
    %v4652 = vpop.xlane.xlu0 %4651
    %4653 = vmax.xlane.f32.xlu0 %v4546
    %v4654 = vpop.xlane.xlu0 %4653
    %4655 = vmax.xlane.f32.xlu0 %v4547
    %v4656 = vpop.xlane.xlu0 %4655
    %4657 = vmax.xlane.f32.xlu0 %v4548
    %v4658 = vpop.xlane.xlu0 %4657
    %4659 = vmax.xlane.f32.xlu0 %v4549
    %v4660 = vpop.xlane.xlu0 %4659
    %4661 = vmax.xlane.f32.xlu0 %v4550
    %v4662 = vpop.xlane.xlu0 %4661
    %4663 = vmax.xlane.f32.xlu0 %v4551
    %v4664 = vpop.xlane.xlu0 %4663
    %4665 = vmax.xlane.f32.xlu0 %v4552
    %v4666 = vpop.xlane.xlu0 %4665
    %4667 = vmax.xlane.f32.xlu0 %v4553
    %v4668 = vpop.xlane.xlu0 %4667
    %4669 = vmax.xlane.f32.xlu0 %v4554
    %v4670 = vpop.xlane.xlu0 %4669
    %4671 = vmax.xlane.f32.xlu0 %v4555
    %v4672 = vpop.xlane.xlu0 %4671
    %4673 = vmax.xlane.f32.xlu0 %v4556
    %v4674 = vpop.xlane.xlu0 %4673
    %4675 = vmax.xlane.f32.xlu0 %v4557
    %v4676 = vpop.xlane.xlu0 %4675
    %4677 = vmax.xlane.f32.xlu0 %v4558
    %v4678 = vpop.xlane.xlu0 %4677
    %4679 = vmax.xlane.f32.xlu0 %v4559
    %v4680 = vpop.xlane.xlu0 %4679
    %4681 = vmax.xlane.f32.xlu0 %v4560
    %v4682 = vpop.xlane.xlu0 %4681
    %4683 = vmax.xlane.f32.xlu0 %v4561
    %v4684 = vpop.xlane.xlu0 %4683
    %4685 = vmax.xlane.f32.xlu0 %v4562
    %v4686 = vpop.xlane.xlu0 %4685
    %4687 = vmax.xlane.f32.xlu0 %v4563
    %v4688 = vpop.xlane.xlu0 %4687
    %4689 = vmax.xlane.f32.xlu0 %v4564
    %v4690 = vpop.xlane.xlu0 %4689
    %4691 = vmax.xlane.f32.xlu0 %v4565
    %v4692 = vpop.xlane.xlu0 %4691
    %4693 = vmax.xlane.f32.xlu0 %v4566
    %v4694 = vpop.xlane.xlu0 %4693
    %v4695 = vsub.f32 %v4503, %v4568
    %v4696 = vsub.f32 %v4504, %v4570
    %v4697 = vsub.f32 %v4505, %v4572
    %v4698 = vsub.f32 %v4506, %v4574
    %v4699 = vsub.f32 %v4507, %v4576
    %v4700 = vsub.f32 %v4508, %v4578
    %v4701 = vsub.f32 %v4509, %v4580
    %v4702 = vsub.f32 %v4510, %v4582
    %v4703 = vsub.f32 %v4511, %v4584
    %v4704 = vsub.f32 %v4512, %v4586
    %v4705 = vsub.f32 %v4513, %v4588
    %v4706 = vsub.f32 %v4514, %v4590
    %v4707 = vsub.f32 %v4515, %v4592
    %v4708 = vsub.f32 %v4516, %v4594
    %v4709 = vsub.f32 %v4517, %v4596
    %v4710 = vsub.f32 %v4518, %v4598
    %v4711 = vsub.f32 %v4519, %v4600
    %v4712 = vsub.f32 %v4520, %v4602
    %v4713 = vsub.f32 %v4521, %v4604
    %v4714 = vsub.f32 %v4522, %v4606
    %v4715 = vsub.f32 %v4523, %v4608
    %v4716 = vsub.f32 %v4524, %v4610
    %v4717 = vsub.f32 %v4525, %v4612
    %v4718 = vsub.f32 %v4526, %v4614
    %v4719 = vsub.f32 %v4527, %v4616
    %v4720 = vsub.f32 %v4528, %v4618
    %v4721 = vsub.f32 %v4529, %v4620
    %v4722 = vsub.f32 %v4530, %v4622
    %v4723 = vsub.f32 %v4531, %v4624
    %v4724 = vsub.f32 %v4532, %v4626
    %v4725 = vsub.f32 %v4533, %v4628
    %v4726 = vsub.f32 %v4534, %v4630
    %v4727 = vsub.f32 %v4535, %v4632
    %v4728 = vsub.f32 %v4536, %v4634
    %v4729 = vsub.f32 %v4537, %v4636
    %v4730 = vsub.f32 %v4538, %v4638
    %v4731 = vsub.f32 %v4539, %v4640
    %v4732 = vsub.f32 %v4540, %v4642
    %v4733 = vsub.f32 %v4541, %v4644
    %v4734 = vsub.f32 %v4542, %v4646
    %v4735 = vsub.f32 %v4543, %v4648
    %v4736 = vsub.f32 %v4544, %v4650
    %v4737 = vsub.f32 %v4545, %v4652
    %v4738 = vsub.f32 %v4546, %v4654
    %v4739 = vsub.f32 %v4547, %v4656
    %v4740 = vsub.f32 %v4548, %v4658
    %v4741 = vsub.f32 %v4549, %v4660
    %v4742 = vsub.f32 %v4550, %v4662
    %v4743 = vsub.f32 %v4551, %v4664
    %v4744 = vsub.f32 %v4552, %v4666
    %v4745 = vsub.f32 %v4553, %v4668
    %v4746 = vsub.f32 %v4554, %v4670
    %v4747 = vsub.f32 %v4555, %v4672
    %v4748 = vsub.f32 %v4556, %v4674
    %v4749 = vsub.f32 %v4557, %v4676
    %v4750 = vsub.f32 %v4558, %v4678
    %v4751 = vsub.f32 %v4559, %v4680
    %v4752 = vsub.f32 %v4560, %v4682
    %v4753 = vsub.f32 %v4561, %v4684
    %v4754 = vsub.f32 %v4562, %v4686
    %v4755 = vsub.f32 %v4563, %v4688
    %v4756 = vsub.f32 %v4564, %v4690
    %v4757 = vsub.f32 %v4565, %v4692
    %v4758 = vsub.f32 %v4566, %v4694
    %v4759 = vmul.f32 %v4695, 1.442695
    %v4760 = vpow.pop %v4759
    %v4761 = vmul.f32 %v4696, 1.442695
    %v4762 = vpow.pop %v4761
    %v4763 = vmul.f32 %v4697, 1.442695
    %v4764 = vpow.pop %v4763
    %v4765 = vmul.f32 %v4698, 1.442695
    %v4766 = vpow.pop %v4765
    %v4767 = vmul.f32 %v4699, 1.442695
    %v4768 = vpow.pop %v4767
    %v4769 = vmul.f32 %v4700, 1.442695
    %v4770 = vpow.pop %v4769
    %v4771 = vmul.f32 %v4701, 1.442695
    %v4772 = vpow.pop %v4771
    %v4773 = vmul.f32 %v4702, 1.442695
    %v4774 = vpow.pop %v4773
    %v4775 = vmul.f32 %v4703, 1.442695
    %v4776 = vpow.pop %v4775
    %v4777 = vmul.f32 %v4704, 1.442695
    %v4778 = vpow.pop %v4777
    %v4779 = vmul.f32 %v4705, 1.442695
    %v4780 = vpow.pop %v4779
    %v4781 = vmul.f32 %v4706, 1.442695
    %v4782 = vpow.pop %v4781
    %v4783 = vmul.f32 %v4707, 1.442695
    %v4784 = vpow.pop %v4783
    %v4785 = vmul.f32 %v4708, 1.442695
    %v4786 = vpow.pop %v4785
    %v4787 = vmul.f32 %v4709, 1.442695
    %v4788 = vpow.pop %v4787
    %v4789 = vmul.f32 %v4710, 1.442695
    %v4790 = vpow.pop %v4789
    %v4791 = vmul.f32 %v4711, 1.442695
    %v4792 = vpow.pop %v4791
    %v4793 = vmul.f32 %v4712, 1.442695
    %v4794 = vpow.pop %v4793
    %v4795 = vmul.f32 %v4713, 1.442695
    %v4796 = vpow.pop %v4795
    %v4797 = vmul.f32 %v4714, 1.442695
    %v4798 = vpow.pop %v4797
    %v4799 = vmul.f32 %v4715, 1.442695
    %v4800 = vpow.pop %v4799
    %v4801 = vmul.f32 %v4716, 1.442695
    %v4802 = vpow.pop %v4801
    %v4803 = vmul.f32 %v4717, 1.442695
    %v4804 = vpow.pop %v4803
    %v4805 = vmul.f32 %v4718, 1.442695
    %v4806 = vpow.pop %v4805
    %v4807 = vmul.f32 %v4719, 1.442695
    %v4808 = vpow.pop %v4807
    %v4809 = vmul.f32 %v4720, 1.442695
    %v4810 = vpow.pop %v4809
    %v4811 = vmul.f32 %v4721, 1.442695
    %v4812 = vpow.pop %v4811
    %v4813 = vmul.f32 %v4722, 1.442695
    %v4814 = vpow.pop %v4813
    %v4815 = vmul.f32 %v4723, 1.442695
    %v4816 = vpow.pop %v4815
    %v4817 = vmul.f32 %v4724, 1.442695
    %v4818 = vpow.pop %v4817
    %v4819 = vmul.f32 %v4725, 1.442695
    %v4820 = vpow.pop %v4819
    %v4821 = vmul.f32 %v4726, 1.442695
    %v4822 = vpow.pop %v4821
    %v4823 = vmul.f32 %v4727, 1.442695
    %v4824 = vpow.pop %v4823
    %v4825 = vmul.f32 %v4728, 1.442695
    %v4826 = vpow.pop %v4825
    %v4827 = vmul.f32 %v4729, 1.442695
    %v4828 = vpow.pop %v4827
    %v4829 = vmul.f32 %v4730, 1.442695
    %v4830 = vpow.pop %v4829
    %v4831 = vmul.f32 %v4731, 1.442695
    %v4832 = vpow.pop %v4831
    %v4833 = vmul.f32 %v4732, 1.442695
    %v4834 = vpow.pop %v4833
    %v4835 = vmul.f32 %v4733, 1.442695
    %v4836 = vpow.pop %v4835
    %v4837 = vmul.f32 %v4734, 1.442695
    %v4838 = vpow.pop %v4837
    %v4839 = vmul.f32 %v4735, 1.442695
    %v4840 = vpow.pop %v4839
    %v4841 = vmul.f32 %v4736, 1.442695
    %v4842 = vpow.pop %v4841
    %v4843 = vmul.f32 %v4737, 1.442695
    %v4844 = vpow.pop %v4843
    %v4845 = vmul.f32 %v4738, 1.442695
    %v4846 = vpow.pop %v4845
    %v4847 = vmul.f32 %v4739, 1.442695
    %v4848 = vpow.pop %v4847
    %v4849 = vmul.f32 %v4740, 1.442695
    %v4850 = vpow.pop %v4849
    %v4851 = vmul.f32 %v4741, 1.442695
    %v4852 = vpow.pop %v4851
    %v4853 = vmul.f32 %v4742, 1.442695
    %v4854 = vpow.pop %v4853
    %v4855 = vmul.f32 %v4743, 1.442695
    %v4856 = vpow.pop %v4855
    %v4857 = vmul.f32 %v4744, 1.442695
    %v4858 = vpow.pop %v4857
    %v4859 = vmul.f32 %v4745, 1.442695
    %v4860 = vpow.pop %v4859
    %v4861 = vmul.f32 %v4746, 1.442695
    %v4862 = vpow.pop %v4861
    %v4863 = vmul.f32 %v4747, 1.442695
    %v4864 = vpow.pop %v4863
    %v4865 = vmul.f32 %v4748, 1.442695
    %v4866 = vpow.pop %v4865
    %v4867 = vmul.f32 %v4749, 1.442695
    %v4868 = vpow.pop %v4867
    %v4869 = vmul.f32 %v4750, 1.442695
    %v4870 = vpow.pop %v4869
    %v4871 = vmul.f32 %v4751, 1.442695
    %v4872 = vpow.pop %v4871
    %v4873 = vmul.f32 %v4752, 1.442695
    %v4874 = vpow.pop %v4873
    %v4875 = vmul.f32 %v4753, 1.442695
    %v4876 = vpow.pop %v4875
    %v4877 = vmul.f32 %v4754, 1.442695
    %v4878 = vpow.pop %v4877
    %v4879 = vmul.f32 %v4755, 1.442695
    %v4880 = vpow.pop %v4879
    %v4881 = vmul.f32 %v4756, 1.442695
    %v4882 = vpow.pop %v4881
    %v4883 = vmul.f32 %v4757, 1.442695
    %v4884 = vpow.pop %v4883
    %v4885 = vmul.f32 %v4758, 1.442695
    %v4886 = vpow.pop %v4885
    %v4887 = vsel %vm4502, %v4760, 0.0
    %v4888 = vsel %vm4502, %v4762, 0.0
    %v4889 = vsel %vm4502, %v4764, 0.0
    %v4890 = vsel %vm4502, %v4766, 0.0
    %v4891 = vsel %vm4502, %v4768, 0.0
    %v4892 = vsel %vm4502, %v4770, 0.0
    %v4893 = vsel %vm4502, %v4772, 0.0
    %v4894 = vsel %vm4502, %v4774, 0.0
    %v4895 = vsel %vm4502, %v4776, 0.0
    %v4896 = vsel %vm4502, %v4778, 0.0
    %v4897 = vsel %vm4502, %v4780, 0.0
    %v4898 = vsel %vm4502, %v4782, 0.0
    %v4899 = vsel %vm4502, %v4784, 0.0
    %v4900 = vsel %vm4502, %v4786, 0.0
    %v4901 = vsel %vm4502, %v4788, 0.0
    %v4902 = vsel %vm4502, %v4790, 0.0
    %v4903 = vsel %vm4502, %v4792, 0.0
    %v4904 = vsel %vm4502, %v4794, 0.0
    %v4905 = vsel %vm4502, %v4796, 0.0
    %v4906 = vsel %vm4502, %v4798, 0.0
    %v4907 = vsel %vm4502, %v4800, 0.0
    %v4908 = vsel %vm4502, %v4802, 0.0
    %v4909 = vsel %vm4502, %v4804, 0.0
    %v4910 = vsel %vm4502, %v4806, 0.0
    %v4911 = vsel %vm4502, %v4808, 0.0
    %v4912 = vsel %vm4502, %v4810, 0.0
    %v4913 = vsel %vm4502, %v4812, 0.0
    %v4914 = vsel %vm4502, %v4814, 0.0
    %v4915 = vsel %vm4502, %v4816, 0.0
    %v4916 = vsel %vm4502, %v4818, 0.0
    %v4917 = vsel %vm4502, %v4820, 0.0
    %v4918 = vsel %vm4502, %v4822, 0.0
    %v4919 = vsel %vm4502, %v4824, 0.0
    %v4920 = vsel %vm4502, %v4826, 0.0
    %v4921 = vsel %vm4502, %v4828, 0.0
    %v4922 = vsel %vm4502, %v4830, 0.0
    %v4923 = vsel %vm4502, %v4832, 0.0
    %v4924 = vsel %vm4502, %v4834, 0.0
    %v4925 = vsel %vm4502, %v4836, 0.0
    %v4926 = vsel %vm4502, %v4838, 0.0
    %v4927 = vsel %vm4502, %v4840, 0.0
    %v4928 = vsel %vm4502, %v4842, 0.0
    %v4929 = vsel %vm4502, %v4844, 0.0
    %v4930 = vsel %vm4502, %v4846, 0.0
    %v4931 = vsel %vm4502, %v4848, 0.0
    %v4932 = vsel %vm4502, %v4850, 0.0
    %v4933 = vsel %vm4502, %v4852, 0.0
    %v4934 = vsel %vm4502, %v4854, 0.0
    %v4935 = vsel %vm4502, %v4856, 0.0
    %v4936 = vsel %vm4502, %v4858, 0.0
    %v4937 = vsel %vm4502, %v4860, 0.0
    %v4938 = vsel %vm4502, %v4862, 0.0
    %v4939 = vsel %vm4502, %v4864, 0.0
    %v4940 = vsel %vm4502, %v4866, 0.0
    %v4941 = vsel %vm4502, %v4868, 0.0
    %v4942 = vsel %vm4502, %v4870, 0.0
    %v4943 = vsel %vm4502, %v4872, 0.0
    %v4944 = vsel %vm4502, %v4874, 0.0
    %v4945 = vsel %vm4502, %v4876, 0.0
    %v4946 = vsel %vm4502, %v4878, 0.0
    %v4947 = vsel %vm4502, %v4880, 0.0
    %v4948 = vsel %vm4502, %v4882, 0.0
    %v4949 = vsel %vm4502, %v4884, 0.0
    %v4950 = vsel %vm4502, %v4886, 0.0
    %4951 = vadd.xlane.f32.xlu0 %v4887
    %v4952 = vpop.xlane.xlu0 %4951
    %4953 = vadd.xlane.f32.xlu0 %v4888
    %v4954 = vpop.xlane.xlu0 %4953
    %4955 = vadd.xlane.f32.xlu0 %v4889
    %v4956 = vpop.xlane.xlu0 %4955
    %4957 = vadd.xlane.f32.xlu0 %v4890
    %v4958 = vpop.xlane.xlu0 %4957
    %4959 = vadd.xlane.f32.xlu0 %v4891
    %v4960 = vpop.xlane.xlu0 %4959
    %4961 = vadd.xlane.f32.xlu0 %v4892
    %v4962 = vpop.xlane.xlu0 %4961
    %4963 = vadd.xlane.f32.xlu0 %v4893
    %v4964 = vpop.xlane.xlu0 %4963
    %4965 = vadd.xlane.f32.xlu0 %v4894
    %v4966 = vpop.xlane.xlu0 %4965
    %4967 = vadd.xlane.f32.xlu0 %v4895
    %v4968 = vpop.xlane.xlu0 %4967
    %4969 = vadd.xlane.f32.xlu0 %v4896
    %v4970 = vpop.xlane.xlu0 %4969
    %4971 = vadd.xlane.f32.xlu0 %v4897
    %v4972 = vpop.xlane.xlu0 %4971
    %4973 = vadd.xlane.f32.xlu0 %v4898
    %v4974 = vpop.xlane.xlu0 %4973
    %4975 = vadd.xlane.f32.xlu0 %v4899
    %v4976 = vpop.xlane.xlu0 %4975
    %4977 = vadd.xlane.f32.xlu0 %v4900
    %v4978 = vpop.xlane.xlu0 %4977
    %4979 = vadd.xlane.f32.xlu0 %v4901
    %v4980 = vpop.xlane.xlu0 %4979
    %4981 = vadd.xlane.f32.xlu0 %v4902
    %v4982 = vpop.xlane.xlu0 %4981
    %4983 = vadd.xlane.f32.xlu0 %v4903
    %v4984 = vpop.xlane.xlu0 %4983
    %4985 = vadd.xlane.f32.xlu0 %v4904
    %v4986 = vpop.xlane.xlu0 %4985
    %4987 = vadd.xlane.f32.xlu0 %v4905
    %v4988 = vpop.xlane.xlu0 %4987
    %4989 = vadd.xlane.f32.xlu0 %v4906
    %v4990 = vpop.xlane.xlu0 %4989
    %4991 = vadd.xlane.f32.xlu0 %v4907
    %v4992 = vpop.xlane.xlu0 %4991
    %4993 = vadd.xlane.f32.xlu0 %v4908
    %v4994 = vpop.xlane.xlu0 %4993
    %4995 = vadd.xlane.f32.xlu0 %v4909
    %v4996 = vpop.xlane.xlu0 %4995
    %4997 = vadd.xlane.f32.xlu0 %v4910
    %v4998 = vpop.xlane.xlu0 %4997
    %4999 = vadd.xlane.f32.xlu0 %v4911
    %v5000 = vpop.xlane.xlu0 %4999
    %5001 = vadd.xlane.f32.xlu0 %v4912
    %v5002 = vpop.xlane.xlu0 %5001
    %5003 = vadd.xlane.f32.xlu0 %v4913
    %v5004 = vpop.xlane.xlu0 %5003
    %5005 = vadd.xlane.f32.xlu0 %v4914
    %v5006 = vpop.xlane.xlu0 %5005
    %5007 = vadd.xlane.f32.xlu0 %v4915
    %v5008 = vpop.xlane.xlu0 %5007
    %5009 = vadd.xlane.f32.xlu0 %v4916
    %v5010 = vpop.xlane.xlu0 %5009
    %5011 = vadd.xlane.f32.xlu0 %v4917
    %v5012 = vpop.xlane.xlu0 %5011
    %5013 = vadd.xlane.f32.xlu0 %v4918
    %v5014 = vpop.xlane.xlu0 %5013
    %5015 = vadd.xlane.f32.xlu0 %v4919
    %v5016 = vpop.xlane.xlu0 %5015
    %5017 = vadd.xlane.f32.xlu0 %v4920
    %v5018 = vpop.xlane.xlu0 %5017
    %5019 = vadd.xlane.f32.xlu0 %v4921
    %v5020 = vpop.xlane.xlu0 %5019
    %5021 = vadd.xlane.f32.xlu0 %v4922
    %v5022 = vpop.xlane.xlu0 %5021
    %5023 = vadd.xlane.f32.xlu0 %v4923
    %v5024 = vpop.xlane.xlu0 %5023
    %5025 = vadd.xlane.f32.xlu0 %v4924
    %v5026 = vpop.xlane.xlu0 %5025
    %5027 = vadd.xlane.f32.xlu0 %v4925
    %v5028 = vpop.xlane.xlu0 %5027
    %5029 = vadd.xlane.f32.xlu0 %v4926
    %v5030 = vpop.xlane.xlu0 %5029
    %5031 = vadd.xlane.f32.xlu0 %v4927
    %v5032 = vpop.xlane.xlu0 %5031
    %5033 = vadd.xlane.f32.xlu0 %v4928
    %v5034 = vpop.xlane.xlu0 %5033
    %5035 = vadd.xlane.f32.xlu0 %v4929
    %v5036 = vpop.xlane.xlu0 %5035
    %5037 = vadd.xlane.f32.xlu0 %v4930
    %v5038 = vpop.xlane.xlu0 %5037
    %5039 = vadd.xlane.f32.xlu0 %v4931
    %v5040 = vpop.xlane.xlu0 %5039
    %5041 = vadd.xlane.f32.xlu0 %v4932
    %v5042 = vpop.xlane.xlu0 %5041
    %5043 = vadd.xlane.f32.xlu0 %v4933
    %v5044 = vpop.xlane.xlu0 %5043
    %5045 = vadd.xlane.f32.xlu0 %v4934
    %v5046 = vpop.xlane.xlu0 %5045
    %5047 = vadd.xlane.f32.xlu0 %v4935
    %v5048 = vpop.xlane.xlu0 %5047
    %5049 = vadd.xlane.f32.xlu0 %v4936
    %v5050 = vpop.xlane.xlu0 %5049
    %5051 = vadd.xlane.f32.xlu0 %v4937
    %v5052 = vpop.xlane.xlu0 %5051
    %5053 = vadd.xlane.f32.xlu0 %v4938
    %v5054 = vpop.xlane.xlu0 %5053
    %5055 = vadd.xlane.f32.xlu0 %v4939
    %v5056 = vpop.xlane.xlu0 %5055
    %5057 = vadd.xlane.f32.xlu0 %v4940
    %v5058 = vpop.xlane.xlu0 %5057
    %5059 = vadd.xlane.f32.xlu0 %v4941
    %v5060 = vpop.xlane.xlu0 %5059
    %5061 = vadd.xlane.f32.xlu0 %v4942
    %v5062 = vpop.xlane.xlu0 %5061
    %5063 = vadd.xlane.f32.xlu0 %v4943
    %v5064 = vpop.xlane.xlu0 %5063
    %5065 = vadd.xlane.f32.xlu0 %v4944
    %v5066 = vpop.xlane.xlu0 %5065
    %5067 = vadd.xlane.f32.xlu0 %v4945
    %v5068 = vpop.xlane.xlu0 %5067
    %5069 = vadd.xlane.f32.xlu0 %v4946
    %v5070 = vpop.xlane.xlu0 %5069
    %5071 = vadd.xlane.f32.xlu0 %v4947
    %v5072 = vpop.xlane.xlu0 %5071
    %5073 = vadd.xlane.f32.xlu0 %v4948
    %v5074 = vpop.xlane.xlu0 %5073
    %5075 = vadd.xlane.f32.xlu0 %v4949
    %v5076 = vpop.xlane.xlu0 %5075
    %5077 = vadd.xlane.f32.xlu0 %v4950
    %v5078 = vpop.xlane.xlu0 %5077
    %v5079 = vlog2.pop %v4952
    %v5080 = vmul.f32 %v5079, 0.6931472
    %v5081 = vlog2.pop %v4954
    %v5082 = vmul.f32 %v5081, 0.6931472
    %v5083 = vlog2.pop %v4956
    %v5084 = vmul.f32 %v5083, 0.6931472
    %v5085 = vlog2.pop %v4958
    %v5086 = vmul.f32 %v5085, 0.6931472
    %v5087 = vlog2.pop %v4960
    %v5088 = vmul.f32 %v5087, 0.6931472
    %v5089 = vlog2.pop %v4962
    %v5090 = vmul.f32 %v5089, 0.6931472
    %v5091 = vlog2.pop %v4964
    %v5092 = vmul.f32 %v5091, 0.6931472
    %v5093 = vlog2.pop %v4966
    %v5094 = vmul.f32 %v5093, 0.6931472
    %v5095 = vlog2.pop %v4968
    %v5096 = vmul.f32 %v5095, 0.6931472
    %v5097 = vlog2.pop %v4970
    %v5098 = vmul.f32 %v5097, 0.6931472
    %v5099 = vlog2.pop %v4972
    %v5100 = vmul.f32 %v5099, 0.6931472
    %v5101 = vlog2.pop %v4974
    %v5102 = vmul.f32 %v5101, 0.6931472
    %v5103 = vlog2.pop %v4976
    %v5104 = vmul.f32 %v5103, 0.6931472
    %v5105 = vlog2.pop %v4978
    %v5106 = vmul.f32 %v5105, 0.6931472
    %v5107 = vlog2.pop %v4980
    %v5108 = vmul.f32 %v5107, 0.6931472
    %v5109 = vlog2.pop %v4982
    %v5110 = vmul.f32 %v5109, 0.6931472
    %v5111 = vlog2.pop %v4984
    %v5112 = vmul.f32 %v5111, 0.6931472
    %v5113 = vlog2.pop %v4986
    %v5114 = vmul.f32 %v5113, 0.6931472
    %v5115 = vlog2.pop %v4988
    %v5116 = vmul.f32 %v5115, 0.6931472
    %v5117 = vlog2.pop %v4990
    %v5118 = vmul.f32 %v5117, 0.6931472
    %v5119 = vlog2.pop %v4992
    %v5120 = vmul.f32 %v5119, 0.6931472
    %v5121 = vlog2.pop %v4994
    %v5122 = vmul.f32 %v5121, 0.6931472
    %v5123 = vlog2.pop %v4996
    %v5124 = vmul.f32 %v5123, 0.6931472
    %v5125 = vlog2.pop %v4998
    %v5126 = vmul.f32 %v5125, 0.6931472
    %v5127 = vlog2.pop %v5000
    %v5128 = vmul.f32 %v5127, 0.6931472
    %v5129 = vlog2.pop %v5002
    %v5130 = vmul.f32 %v5129, 0.6931472
    %v5131 = vlog2.pop %v5004
    %v5132 = vmul.f32 %v5131, 0.6931472
    %v5133 = vlog2.pop %v5006
    %v5134 = vmul.f32 %v5133, 0.6931472
    %v5135 = vlog2.pop %v5008
    %v5136 = vmul.f32 %v5135, 0.6931472
    %v5137 = vlog2.pop %v5010
    %v5138 = vmul.f32 %v5137, 0.6931472
    %v5139 = vlog2.pop %v5012
    %v5140 = vmul.f32 %v5139, 0.6931472
    %v5141 = vlog2.pop %v5014
    %v5142 = vmul.f32 %v5141, 0.6931472
    %v5143 = vlog2.pop %v5016
    %v5144 = vmul.f32 %v5143, 0.6931472
    %v5145 = vlog2.pop %v5018
    %v5146 = vmul.f32 %v5145, 0.6931472
    %v5147 = vlog2.pop %v5020
    %v5148 = vmul.f32 %v5147, 0.6931472
    %v5149 = vlog2.pop %v5022
    %v5150 = vmul.f32 %v5149, 0.6931472
    %v5151 = vlog2.pop %v5024
    %v5152 = vmul.f32 %v5151, 0.6931472
    %v5153 = vlog2.pop %v5026
    %v5154 = vmul.f32 %v5153, 0.6931472
    %v5155 = vlog2.pop %v5028
    %v5156 = vmul.f32 %v5155, 0.6931472
    %v5157 = vlog2.pop %v5030
    %v5158 = vmul.f32 %v5157, 0.6931472
    %v5159 = vlog2.pop %v5032
    %v5160 = vmul.f32 %v5159, 0.6931472
    %v5161 = vlog2.pop %v5034
    %v5162 = vmul.f32 %v5161, 0.6931472
    %v5163 = vlog2.pop %v5036
    %v5164 = vmul.f32 %v5163, 0.6931472
    %v5165 = vlog2.pop %v5038
    %v5166 = vmul.f32 %v5165, 0.6931472
    %v5167 = vlog2.pop %v5040
    %v5168 = vmul.f32 %v5167, 0.6931472
    %v5169 = vlog2.pop %v5042
    %v5170 = vmul.f32 %v5169, 0.6931472
    %v5171 = vlog2.pop %v5044
    %v5172 = vmul.f32 %v5171, 0.6931472
    %v5173 = vlog2.pop %v5046
    %v5174 = vmul.f32 %v5173, 0.6931472
    %v5175 = vlog2.pop %v5048
    %v5176 = vmul.f32 %v5175, 0.6931472
    %v5177 = vlog2.pop %v5050
    %v5178 = vmul.f32 %v5177, 0.6931472
    %v5179 = vlog2.pop %v5052
    %v5180 = vmul.f32 %v5179, 0.6931472
    %v5181 = vlog2.pop %v5054
    %v5182 = vmul.f32 %v5181, 0.6931472
    %v5183 = vlog2.pop %v5056
    %v5184 = vmul.f32 %v5183, 0.6931472
    %v5185 = vlog2.pop %v5058
    %v5186 = vmul.f32 %v5185, 0.6931472
    %v5187 = vlog2.pop %v5060
    %v5188 = vmul.f32 %v5187, 0.6931472
    %v5189 = vlog2.pop %v5062
    %v5190 = vmul.f32 %v5189, 0.6931472
    %v5191 = vlog2.pop %v5064
    %v5192 = vmul.f32 %v5191, 0.6931472
    %v5193 = vlog2.pop %v5066
    %v5194 = vmul.f32 %v5193, 0.6931472
    %v5195 = vlog2.pop %v5068
    %v5196 = vmul.f32 %v5195, 0.6931472
    %v5197 = vlog2.pop %v5070
    %v5198 = vmul.f32 %v5197, 0.6931472
    %v5199 = vlog2.pop %v5072
    %v5200 = vmul.f32 %v5199, 0.6931472
    %v5201 = vlog2.pop %v5074
    %v5202 = vmul.f32 %v5201, 0.6931472
    %v5203 = vlog2.pop %v5076
    %v5204 = vmul.f32 %v5203, 0.6931472
    %v5205 = vlog2.pop %v5078
    %v5206 = vmul.f32 %v5205, 0.6931472
    %v5207 = vsub.f32 %v4695, %v5080
    %v5208 = vsub.f32 %v4696, %v5082
    %v5209 = vsub.f32 %v4697, %v5084
    %v5210 = vsub.f32 %v4698, %v5086
    %v5211 = vsub.f32 %v4699, %v5088
    %v5212 = vsub.f32 %v4700, %v5090
    %v5213 = vsub.f32 %v4701, %v5092
    %v5214 = vsub.f32 %v4702, %v5094
    %v5215 = vsub.f32 %v4703, %v5096
    %v5216 = vsub.f32 %v4704, %v5098
    %v5217 = vsub.f32 %v4705, %v5100
    %v5218 = vsub.f32 %v4706, %v5102
    %v5219 = vsub.f32 %v4707, %v5104
    %v5220 = vsub.f32 %v4708, %v5106
    %v5221 = vsub.f32 %v4709, %v5108
    %v5222 = vsub.f32 %v4710, %v5110
    %v5223 = vsub.f32 %v4711, %v5112
    %v5224 = vsub.f32 %v4712, %v5114
    %v5225 = vsub.f32 %v4713, %v5116
    %v5226 = vsub.f32 %v4714, %v5118
    %v5227 = vsub.f32 %v4715, %v5120
    %v5228 = vsub.f32 %v4716, %v5122
    %v5229 = vsub.f32 %v4717, %v5124
    %v5230 = vsub.f32 %v4718, %v5126
    %v5231 = vsub.f32 %v4719, %v5128
    %v5232 = vsub.f32 %v4720, %v5130
    %v5233 = vsub.f32 %v4721, %v5132
    %v5234 = vsub.f32 %v4722, %v5134
    %v5235 = vsub.f32 %v4723, %v5136
    %v5236 = vsub.f32 %v4724, %v5138
    %v5237 = vsub.f32 %v4725, %v5140
    %v5238 = vsub.f32 %v4726, %v5142
    %v5239 = vsub.f32 %v4727, %v5144
    %v5240 = vsub.f32 %v4728, %v5146
    %v5241 = vsub.f32 %v4729, %v5148
    %v5242 = vsub.f32 %v4730, %v5150
    %v5243 = vsub.f32 %v4731, %v5152
    %v5244 = vsub.f32 %v4732, %v5154
    %v5245 = vsub.f32 %v4733, %v5156
    %v5246 = vsub.f32 %v4734, %v5158
    %v5247 = vsub.f32 %v4735, %v5160
    %v5248 = vsub.f32 %v4736, %v5162
    %v5249 = vsub.f32 %v4737, %v5164
    %v5250 = vsub.f32 %v4738, %v5166
    %v5251 = vsub.f32 %v4739, %v5168
    %v5252 = vsub.f32 %v4740, %v5170
    %v5253 = vsub.f32 %v4741, %v5172
    %v5254 = vsub.f32 %v4742, %v5174
    %v5255 = vsub.f32 %v4743, %v5176
    %v5256 = vsub.f32 %v4744, %v5178
    %v5257 = vsub.f32 %v4745, %v5180
    %v5258 = vsub.f32 %v4746, %v5182
    %v5259 = vsub.f32 %v4747, %v5184
    %v5260 = vsub.f32 %v4748, %v5186
    %v5261 = vsub.f32 %v4749, %v5188
    %v5262 = vsub.f32 %v4750, %v5190
    %v5263 = vsub.f32 %v4751, %v5192
    %v5264 = vsub.f32 %v4752, %v5194
    %v5265 = vsub.f32 %v4753, %v5196
    %v5266 = vsub.f32 %v4754, %v5198
    %v5267 = vsub.f32 %v4755, %v5200
    %v5268 = vsub.f32 %v4756, %v5202
    %v5269 = vsub.f32 %v4757, %v5204
    %v5270 = vsub.f32 %v4758, %v5206
    %5271 = vst [vmem:[%s10] sm:$0xff] %v5207
    %5272 = vst [vmem:[%s10 + $0x8] sm:$0xff] %v5208
    %5273 = vst [vmem:[%s10 + $0x10] sm:$0xff] %v5209
    %5274 = vst [vmem:[%s10 + $0x18] sm:$0xff] %v5210
    %5275 = vst [vmem:[%s10 + $0x20] sm:$0xff] %v5211
    %5276 = vst [vmem:[%s10 + $0x28] sm:$0xff] %v5212
    %5277 = vst [vmem:[%s10 + $0x30] sm:$0xff] %v5213
    %5278 = vst [vmem:[%s10 + $0x38] sm:$0xff] %v5214
    %5279 = vst [vmem:[%s10 + $0x40] sm:$0xff] %v5215
    %5280 = vst [vmem:[%s10 + $0x48] sm:$0xff] %v5216
    %5281 = vst [vmem:[%s10 + $0x50] sm:$0xff] %v5217
    %5282 = vst [vmem:[%s10 + $0x58] sm:$0xff] %v5218
    %5283 = vst [vmem:[%s10 + $0x60] sm:$0xff] %v5219
    %5284 = vst [vmem:[%s10 + $0x68] sm:$0xff] %v5220
    %5285 = vst [vmem:[%s10 + $0x70] sm:$0xff] %v5221
    %5286 = vst [vmem:[%s10 + $0x78] sm:$0xff] %v5222
    %5287 = vst [vmem:[%s10 + $0x80] sm:$0xff] %v5223
    %5288 = vst [vmem:[%s10 + $0x88] sm:$0xff] %v5224
    %5289 = vst [vmem:[%s10 + $0x90] sm:$0xff] %v5225
    %5290 = vst [vmem:[%s10 + $0x98] sm:$0xff] %v5226
    %5291 = vst [vmem:[%s10 + $0xa0] sm:$0xff] %v5227
    %5292 = vst [vmem:[%s10 + $0xa8] sm:$0xff] %v5228
    %5293 = vst [vmem:[%s10 + $0xb0] sm:$0xff] %v5229
    %5294 = vst [vmem:[%s10 + $0xb8] sm:$0xff] %v5230
    %5295 = vst [vmem:[%s10 + $0xc0] sm:$0xff] %v5231
    %5296 = vst [vmem:[%s10 + $0xc8] sm:$0xff] %v5232
    %5297 = vst [vmem:[%s10 + $0xd0] sm:$0xff] %v5233
    %5298 = vst [vmem:[%s10 + $0xd8] sm:$0xff] %v5234
    %5299 = vst [vmem:[%s10 + $0xe0] sm:$0xff] %v5235
    %5300 = vst [vmem:[%s10 + $0xe8] sm:$0xff] %v5236
    %5301 = vst [vmem:[%s10 + $0xf0] sm:$0xff] %v5237
    %5302 = vst [vmem:[%s10 + $0xf8] sm:$0xff] %v5238
    %5303 = vst [vmem:[%s10 + $0x100] sm:$0xff] %v5239
    %5304 = vst [vmem:[%s10 + $0x108] sm:$0xff] %v5240
    %5305 = vst [vmem:[%s10 + $0x110] sm:$0xff] %v5241
    %5306 = vst [vmem:[%s10 + $0x118] sm:$0xff] %v5242
    %5307 = vst [vmem:[%s10 + $0x120] sm:$0xff] %v5243
    %5308 = vst [vmem:[%s10 + $0x128] sm:$0xff] %v5244
    %5309 = vst [vmem:[%s10 + $0x130] sm:$0xff] %v5245
    %5310 = vst [vmem:[%s10 + $0x138] sm:$0xff] %v5246
    %5311 = vst [vmem:[%s10 + $0x140] sm:$0xff] %v5247
    %5312 = vst [vmem:[%s10 + $0x148] sm:$0xff] %v5248
    %5313 = vst [vmem:[%s10 + $0x150] sm:$0xff] %v5249
    %5314 = vst [vmem:[%s10 + $0x158] sm:$0xff] %v5250
    %5315 = vst [vmem:[%s10 + $0x160] sm:$0xff] %v5251
    %5316 = vst [vmem:[%s10 + $0x168] sm:$0xff] %v5252
    %5317 = vst [vmem:[%s10 + $0x170] sm:$0xff] %v5253
    %5318 = vst [vmem:[%s10 + $0x178] sm:$0xff] %v5254
    %5319 = vst [vmem:[%s10 + $0x180] sm:$0xff] %v5255
    %5320 = vst [vmem:[%s10 + $0x188] sm:$0xff] %v5256
    %5321 = vst [vmem:[%s10 + $0x190] sm:$0xff] %v5257
    %5322 = vst [vmem:[%s10 + $0x198] sm:$0xff] %v5258
    %5323 = vst [vmem:[%s10 + $0x1a0] sm:$0xff] %v5259
    %5324 = vst [vmem:[%s10 + $0x1a8] sm:$0xff] %v5260
    %5325 = vst [vmem:[%s10 + $0x1b0] sm:$0xff] %v5261
    %5326 = vst [vmem:[%s10 + $0x1b8] sm:$0xff] %v5262
    %5327 = vst [vmem:[%s10 + $0x1c0] sm:$0xff] %v5263
    %5328 = vst [vmem:[%s10 + $0x1c8] sm:$0xff] %v5264
    %5329 = vst [vmem:[%s10 + $0x1d0] sm:$0xff] %v5265
    %5330 = vst [vmem:[%s10 + $0x1d8] sm:$0xff] %v5266
    %5331 = vst [vmem:[%s10 + $0x1e0] sm:$0xff] %v5267
    %5332 = vst [vmem:[%s10 + $0x1e8] sm:$0xff] %v5268
    %5333 = vst [vmem:[%s10 + $0x1f0] sm:$0xff] %v5269
    %5334 = vst [vmem:[%s10 + $0x1f8] sm:$0xff] %v5270
    // Predicated region
    $region62: #{gcn_classifier_forward.1} parent=1 // pred_check
      _
    $region63: #{gcn_classifier_forward.1} parent=1 // pred_check_branch
      %5336 = sbr.rel (0) target = $region65
    $region64: #{gcn_classifier_forward.1} parent=1 // pred_region
      _
    $region65: #{gcn_classifier_forward.1} parent=1 // pred_fallthru
      _
    // Predicated region
    $region66: #{gcn_classifier_forward.1} parent=1 // pred_check
      _
    $region67: #{gcn_classifier_forward.1} parent=1 // pred_check_branch
      %5338 = sbr.rel (0) target = $region69
    $region68: #{gcn_classifier_forward.1} parent=1 // pred_region
      _
    $region69: #{gcn_classifier_forward.1} parent=1 // pred_fallthru
      _
    %5339 = vsyncpa [#allocation3], 1
    %5340 = vsyncpa [#allocation5], 1
    %5341 = vsyncpa [#allocation8], 1

</llo_original>
